<compile_context>
chip_gen: v7x
topology: tpu7x:2x2x1
jax: 0.10.0
libtpu: 0.0.40
codegen_flags: <defaults>
</compile_context>

<pallas_src>
from functools import partial

import jax
import jax.numpy as jnp
from jax.experimental import pallas as pl
from jax.experimental.pallas import tpu as pltpu

SUBLANE = 8     # f32 sublane count -> batch padding / per-core batch block
LANE = 128      # lane width        -> feature / hidden / vocab padding


def _round_up(x: int, m: int) -> int:
    return ((x + m - 1) // m) * m


# ----------------------------------------------------------------------------
# Weight preparation: fuse + pad + cast (done once, outside the decode loop).
# ----------------------------------------------------------------------------
def _prepare_weights(params):
    embed = params["embed"]    # (VP1, E)
    w_ih = params["w_ih"]      # (E, 4H)  -- PyTorch weight_ih_l0 (4H, E) transposed,
    w_hh = params["w_hh"]      # (H, 4H)     gate order i, f, g, o preserved.
    b = params["b"]            # (1, 4H)     (b_ih + b_hh)
    w_enc = params["w_enc"]    # (F, J)
    b_enc = params["b_enc"]    # (1, J)
    w_pred = params["w_pred"]  # (H, J)
    b_pred = params["b_pred"]  # (1, J)
    w_out = params["w_out"]    # (J, VP1)
    b_out = params["b_out"]    # (1, VP1)

    VP1, E = embed.shape
    H = w_hh.shape[0]
    F = w_enc.shape[0]
    J = w_out.shape[0]
    assert w_ih.shape == (E, 4 * H), "w_ih must be (embed_dim, 4H) (gate order i,f,g,o)"
    assert w_hh.shape == (H, 4 * H) and b.shape == (1, 4 * H)
    assert w_pred.shape == (H, J) and w_out.shape == (J, VP1)

    Hp = _round_up(H, LANE)
    VP1p = _round_up(VP1, LANE)
    Fp = _round_up(F, LANE)
    Jp = _round_up(J, LANE)   # NOTE: use 256-multiples on v6e/v7x for full MXU tiles

    # Fold the embedding into the input->gates matmul (one-hot(label) trick).
    wg_emb = embed @ w_ih                        # (VP1, 4H)

    # Fused LSTM weight: rows = [one_hot(label) | h], cols = gate blocks of Hp.
    wg = jnp.zeros((VP1p + Hp, 4 * Hp), jnp.float32)
    bg = jnp.zeros((1, 4 * Hp), jnp.float32)
    for q in range(4):
        wg = wg.at[:VP1, q * Hp:q * Hp + H].set(wg_emb[:, q * H:(q + 1) * H])
        wg = wg.at[VP1p:VP1p + H, q * Hp:q * Hp + H].set(w_hh[:, q * H:(q + 1) * H])
        bg = bg.at[:, q * Hp:q * Hp + H].set(b[:, q * H:(q + 1) * H])

    # Fused joint projection: rows = [f | h'].
    wj = jnp.zeros((Fp + Hp, Jp), jnp.float32)
    wj = wj.at[:F, :J].set(w_enc).at[Fp:Fp + H, :J].set(w_pred)
    bj = jnp.zeros((1, Jp), jnp.float32).at[:, :J].set(b_enc + b_pred)

    wo = jnp.zeros((Jp, VP1p), jnp.float32).at[:J, :VP1].set(w_out)
    bo = jnp.full((1, VP1p), -1e30, jnp.float32).at[:, :VP1].set(b_out)

    weights = dict(
        wg=wg.astype(jnp.bfloat16), bg=bg,
        wj=wj.astype(jnp.bfloat16), bj=bj,
        wo=wo.astype(jnp.bfloat16), bo=bo,
    )
    dims = dict(H=H, Hp=Hp, VP1=VP1, VP1p=VP1p, F=F, Fp=Fp, J=J, Jp=Jp)
    return weights, dims


# ----------------------------------------------------------------------------
# Persistent Pallas kernel: full greedy decode for one (batch block, all T).
# ----------------------------------------------------------------------------
def _greedy_decode_kernel(
    # inputs
    x_ref,       # (1, BBLK, Fp)    bf16  encoder frame at time t for batch block b
    len_ref,     # (BBLK, 1)        i32   encoded lengths (padded rows = 0)
    wg_ref,      # (VP1p+Hp, 4*Hp)  bf16  fused [embed@w_ih ; w_hh]
    bg_ref,      # (1, 4*Hp)        f32
    wj_ref,      # (Fp+Hp, Jp)      bf16  fused [w_enc ; w_pred]
    bj_ref,      # (1, Jp)          f32
    wo_ref,      # (Jp, VP1p)       bf16
    bo_ref,      # (1, VP1p)        f32   (-1e30 on padded vocab columns)
    # outputs (resident across the time axis -> on-chip decoder state)
    labels_ref,  # (BBLK, Lp)       i32
    lens_ref,    # (BBLK, 1)        i32
    h_ref,       # (BBLK, Hp)       f32
    c_ref,       # (BBLK, Hp)       f32
    # scratch (persists across grid steps)
    last_sc,     # (BBLK, 1)        i32   last_label
    blank_sc,    # (BBLK, 1)        i32   per-row blank mask for current t
    ablk_sc,     # (1, 1)           i32   1 iff every row of the block is blank
    pin_sc,      # (BBLK, VP1p+Hp)  bf16  staged predictor matmul input
    jin_sc,      # (BBLK, Fp+Hp)    bf16  staged joint matmul input
    *, blank, max_symbols, Hp, VP1p, Fp, Lp, BBLK,
):
    t = pl.program_id(1)

    # ---- one-time init for this batch block (hidden starts as `None`) ------
    @pl.when(t == 0)
    def _init():
        h_ref[...] = jnp.zeros_like(h_ref)
        c_ref[...] = jnp.zeros_like(c_ref)
        labels_ref[...] = jnp.full_like(labels_ref, -1)
        lens_ref[...] = jnp.zeros_like(lens_ref)
        last_sc[...] = jnp.full_like(last_sc, blank)

    # ---- per-time-step init:  blank_mask = (time_idx >= out_len) -----------
    blank0 = (t >= len_ref[...]).astype(jnp.int32)             # (BBLK, 1)
    blank_sc[...] = blank0
    ablk_sc[...] = jnp.min(blank0, axis=0, keepdims=True)
    # Stage the encoder frame once; it is reused by every symbol iteration.
    jin_sc[:, 0:Fp] = x_ref[0]

    # ---- `while not_blank and symbols_added < max_symbols` (unrolled) ------
    for s in range(max_symbols):

        @pl.when(ablk_sc[0, 0] == 0)   # skip dead iterations once all rows are blank
        def _symbol_step():
            last = last_sc[...]                                    # (BBLK, 1)
            h_prev = h_ref[...]                                    # (BBLK, Hp)
            c_prev = c_ref[...]

            # -- predictor: embedding (one-hot, folded into W) + LSTM cell ----
            viota = jax.lax.broadcasted_iota(jnp.int32, (BBLK, VP1p), 1)
            oh = viota == last
            if s == 0:
                # SOS (zero embedding) only at time_idx == 0, symbols_added == 0
                oh = jnp.logical_and(oh, t != 0)
            pin_sc[:, 0:VP1p] = oh.astype(jnp.bfloat16)
            pin_sc[:, VP1p:VP1p + Hp] = h_prev.astype(jnp.bfloat16)
            gates = jnp.dot(pin_sc[...], wg_ref[...],
                            preferred_element_type=jnp.float32) + bg_ref[...]
            i_g = jax.nn.sigmoid(gates[:, 0 * Hp:1 * Hp])
            f_g = jax.nn.sigmoid(gates[:, 1 * Hp:2 * Hp])
            g_g = jnp.tanh(gates[:, 2 * Hp:3 * Hp])
            o_g = jax.nn.sigmoid(gates[:, 3 * Hp:4 * Hp])
            c_new = f_g * c_prev + i_g * g_g
            h_new = o_g * jnp.tanh(c_new)

            # -- joint: relu(enc_proj(f) + pred_proj(h')) -> out_proj ---------
            jin_sc[:, Fp:Fp + Hp] = h_new.astype(jnp.bfloat16)
            hidden_j = jnp.maximum(
                jnp.dot(jin_sc[...], wj_ref[...],
                        preferred_element_type=jnp.float32) + bj_ref[...],
                0.0)
            logits = jnp.dot(hidden_j.astype(jnp.bfloat16), wo_ref[...],
                             preferred_element_type=jnp.float32) + bo_ref[...]
            # (log_softmax dropped: argmax of logits == argmax of log_softmax)

            # -- greedy argmax (first occurrence); padded vocab is -1e30 ------
            vmax = jnp.max(logits, axis=-1, keepdims=True)
            cidx = jax.lax.broadcasted_iota(jnp.int32, logits.shape, 1)
            k = jnp.min(jnp.where(logits == vmax, cidx, VP1p),
                        axis=-1, keepdims=True)                    # (BBLK, 1)

            # -- blank-mask bookkeeping + branchless commit -------------------
            blank_new = jnp.maximum(blank_sc[...],
                                    (k == blank).astype(jnp.int32))
            blank_sc[...] = blank_new
            all_blank = jnp.min(blank_new, axis=0, keepdims=True)  # (1, 1)
            ablk_sc[...] = all_blank
            do_commit = all_blank == 0                             # (1, 1) bool

            cur_len = lens_ref[...]                                # (BBLK, 1)
            # `hidden is not None`  <=>  some commit already happened for this block
            have_hidden = jnp.sum(cur_len, axis=0, keepdims=True) > 0
            # rows keeping their previous (h, c, last_label): no commit at all,
            # or a blank row whose state is restored (only once hidden exists).
            keep = jnp.logical_not(do_commit) | ((blank_new > 0) & have_hidden)
            h_ref[...] = jnp.where(keep, h_prev, h_new)
            c_ref[...] = jnp.where(keep, c_prev, c_new)
            last_sc[...] = jnp.where(keep, last, k)

            # append k to the hypothesis of every non-blank row
            emit = do_commit & (blank_new == 0)                    # (BBLK, 1)
            col = jax.lax.broadcasted_iota(jnp.int32, (BBLK, Lp), 1)
            write_mask = emit & (col == cur_len)
            labels_ref[...] = jnp.where(write_mask, k, labels_ref[...])
            lens_ref[...] = cur_len + emit.astype(jnp.int32)


# ----------------------------------------------------------------------------
# Greedy batched decode (GreedyInference.forward semantics)
# ----------------------------------------------------------------------------
@partial(jax.jit, static_argnames=("blank", "max_symbols"))
def greedy_inference(encoder_output, encoded_lengths, params, *, blank, max_symbols):
    # encoder_output: (B, F, T) exactly like the PyTorch module.
    B, F, T = encoder_output.shape
    weights, d = _prepare_weights(params)
    H, Hp, VP1p, Fp = d["H"], d["Hp"], d["VP1p"], d["Fp"]

    Bp = _round_up(B, SUBLANE)
    Lp = _round_up(T * max_symbols, LANE)
    nb = Bp // SUBLANE

    # (B, F, T) -> (T, Bp, Fp), zero padded, bf16 for the MXU.
    x = jnp.transpose(encoder_output, (2, 0, 1))
    x = jnp.pad(x, ((0, 0), (0, Bp - B), (0, Fp - F))).astype(jnp.bfloat16)
    # Padded batch rows get length 0 so they are permanently blank.
    lens = jnp.pad(encoded_lengths.astype(jnp.int32), (0, Bp - B)).reshape(Bp, 1)

    kernel = partial(
        _greedy_decode_kernel,
        blank=blank, max_symbols=max_symbols,
        Hp=Hp, VP1p=VP1p, Fp=Fp, Lp=Lp, BBLK=SUBLANE,
    )
    const = lambda b, t: (0, 0)   # weights: loaded into VMEM once, stay resident

    labels, out_lens, h, c = pl.pallas_call(
        kernel,
        out_shape=(
            jax.ShapeDtypeStruct((Bp, Lp), jnp.int32),
            jax.ShapeDtypeStruct((Bp, 1), jnp.int32),
            jax.ShapeDtypeStruct((Bp, Hp), jnp.float32),
            jax.ShapeDtypeStruct((Bp, Hp), jnp.float32),
        ),
        grid_spec=pltpu.PrefetchScalarGridSpec(
            num_scalar_prefetch=0,
            grid=(nb, T),
            in_specs=[
                pl.BlockSpec((1, SUBLANE, Fp), lambda b, t: (t, b, 0)),   # frame
                pl.BlockSpec((SUBLANE, 1), lambda b, t: (b, 0)),          # lengths
                pl.BlockSpec(weights["wg"].shape, const),
                pl.BlockSpec(weights["bg"].shape, const),
                pl.BlockSpec(weights["wj"].shape, const),
                pl.BlockSpec(weights["bj"].shape, const),
                pl.BlockSpec(weights["wo"].shape, const),
                pl.BlockSpec(weights["bo"].shape, const),
            ],
            out_specs=(
                pl.BlockSpec((SUBLANE, Lp), lambda b, t: (b, 0)),
                pl.BlockSpec((SUBLANE, 1), lambda b, t: (b, 0)),
                pl.BlockSpec((SUBLANE, Hp), lambda b, t: (b, 0)),
                pl.BlockSpec((SUBLANE, Hp), lambda b, t: (b, 0)),
            ),
            scratch_shapes=[
                pltpu.VMEM((SUBLANE, 1), jnp.int32),               # last_label
                pltpu.VMEM((SUBLANE, 1), jnp.int32),               # blank mask
                pltpu.VMEM((1, 1), jnp.int32),                     # all-blank flag
                pltpu.VMEM((SUBLANE, VP1p + Hp), jnp.bfloat16),    # predictor matmul input
                pltpu.VMEM((SUBLANE, Fp + Hp), jnp.bfloat16),      # joint matmul input
            ],
        ),
        compiler_params=pltpu.CompilerParams(
            dimension_semantics=("parallel", "arbitrary"),
            vmem_limit_bytes=48 * 1024 * 1024,   # headroom below v7x's 64 MiB
        ),
    )(x, lens, weights["wg"], weights["bg"], weights["wj"], weights["bj"],
      weights["wo"], weights["bo"])

    labels = labels[:B, : T * max_symbols]
    out_lens = out_lens[:B, 0]
    # cache_rnn_state: (h, c) each of shape (L=1, B, H)
    cache = (h[None, :B, :H], c[None, :B, :H])
    return labels, out_lens, cache


# ----------------------------------------------------------------------------
# Deterministic synthetic parameters (predictor = embed + 1-layer LSTM,
# joint = enc-proj + pred-proj + relu + out-proj).
# ----------------------------------------------------------------------------
def make_params(key, embed_dim, pred_hidden, enc_hidden, joint_hidden, vocab_plus_blank):
    ks = jax.random.split(key, 10)
    s = 0.1
    return {
        "embed":  jax.random.normal(ks[0], (vocab_plus_blank, embed_dim), jnp.float32) * s,
        "w_ih":   jax.random.normal(ks[1], (embed_dim, 4 * pred_hidden), jnp.float32) * s,
        "w_hh":   jax.random.normal(ks[2], (pred_hidden, 4 * pred_hidden), jnp.float32) * s,
        "b":      jax.random.normal(ks[3], (1, 4 * pred_hidden), jnp.float32) * s,
        "w_enc":  jax.random.normal(ks[4], (enc_hidden, joint_hidden), jnp.float32) * s,
        "b_enc":  jax.random.normal(ks[5], (1, joint_hidden), jnp.float32) * s,
        "w_pred": jax.random.normal(ks[6], (pred_hidden, joint_hidden), jnp.float32) * s,
        "b_pred": jax.random.normal(ks[7], (1, joint_hidden), jnp.float32) * s,
        "w_out":  jax.random.normal(ks[8], (joint_hidden, vocab_plus_blank), jnp.float32) * s,
        "b_out":  jax.random.normal(ks[9], (1, vocab_plus_blank), jnp.float32) * s,
    }


if __name__ == "__main__":
    B, ENC_H, T = 2, 32, 8
    EMBED, PRED_H, JOINT_H = 16, 32, 32
    VOCAB = 7
    VP1 = VOCAB + 1
    BLANK = VP1 - 1          # blank = len(vocabulary)
    MAX_SYMBOLS = 3          # max_symbols_per_step
    # TODO(synk): max_symbols_per_step=None (unbounded inner while-loop) has no
    # clean static-shape equivalent; a finite bound is required here.
    # TODO(synk): an externally supplied cache_rnn_state (initial hidden) is not
    # plumbed through; decoding always starts from hidden=None as in the default call.

    key = jax.random.PRNGKey(0)
    kp, kx = jax.random.split(key)
    params = make_params(kp, EMBED, PRED_H, ENC_H, JOINT_H, VP1)

    encoder_output = jax.random.normal(kx, (B, ENC_H, T), jnp.float32)  # (batch, features, timesteps)
    encoded_lengths = jnp.array([T, 5], dtype=jnp.int32)

    labels, label_lens, cache_rnn_state = greedy_inference(
        encoder_output, encoded_lengths, params, blank=BLANK, max_symbols=MAX_SYMBOLS
    )
    jax.block_until_ready((labels, label_lens, cache_rnn_state))

    # Pack into per-utterance hypothesis lists (the `hypotheses_list` output).
    lens_host = jax.device_get(label_lens)
    labels_host = jax.device_get(labels)
    hypotheses_list = [
        [int(tok) for tok in labels_host[b, : int(lens_host[b])]] for b in range(B)
    ]

    # Basic invariants (independent of numerics).
    assert len(hypotheses_list) == B
    assert labels.shape == (B, T * MAX_SYMBOLS)
    assert int(lens_host.max()) <= T * MAX_SYMBOLS and int(lens_host.min()) >= 0
    assert int(labels_host.min()) >= -1 and int(labels_host.max()) < VP1
    assert cache_rnn_state[0].shape == (1, B, PRED_H)
    assert cache_rnn_state[1].shape == (1, B, PRED_H)
    print("KERNEL_OK")
</pallas_src>

<mosaic_0001>
module attributes {stable_mosaic.version = 11 : i64} {
  func.func @_greedy_decode_kernel(%arg0: i32, %arg1: i32, %arg2: memref<1x8x128xbf16, #tpu.memory_space<vmem>>, %arg3: memref<8x1xi32, #tpu.memory_space<vmem>>, %arg4: memref<256x512xbf16, #tpu.memory_space<vmem>>, %arg5: memref<1x512xf32, #tpu.memory_space<vmem>>, %arg6: memref<256x128xbf16, #tpu.memory_space<vmem>>, %arg7: memref<1x128xf32, #tpu.memory_space<vmem>>, %arg8: memref<128x128xbf16, #tpu.memory_space<vmem>>, %arg9: memref<1x128xf32, #tpu.memory_space<vmem>>, %arg10: memref<8x128xi32, #tpu.memory_space<vmem>>, %arg11: memref<8x1xi32, #tpu.memory_space<vmem>>, %arg12: memref<8x128xf32, #tpu.memory_space<vmem>>, %arg13: memref<8x128xf32, #tpu.memory_space<vmem>>, %arg14: memref<8x1xi32, #tpu.memory_space<vmem>>, %arg15: memref<8x1xi32, #tpu.memory_space<vmem>>, %arg16: memref<1x1xi32, #tpu.memory_space<vmem>>, %arg17: memref<8x256xbf16, #tpu.memory_space<vmem>>, %arg18: memref<8x256xbf16, #tpu.memory_space<vmem>>) attributes {dimension_semantics = [#tpu.dimension_semantics<parallel>, #tpu.dimension_semantics<arbitrary>], iteration_bounds = array<i64: 1, 8>, scalar_prefetch = 0 : i64, scratch_operands = 5 : i64, tpu.core_type = #tpu.core_type<tc>, window_params = [{transform_indices = @transform_0, window_bounds = array<i64: 1, 8, 128>}, {transform_indices = @transform_1, window_bounds = array<i64: 8, 1>}, {pipeline_mode = #tpu.pipeline_mode<synchronous>, transform_indices = @transform_2, window_bounds = array<i64: 256, 512>}, {pipeline_mode = #tpu.pipeline_mode<synchronous>, transform_indices = @transform_3, window_bounds = array<i64: 1, 512>}, {pipeline_mode = #tpu.pipeline_mode<synchronous>, transform_indices = @transform_4, window_bounds = array<i64: 256, 128>}, {pipeline_mode = #tpu.pipeline_mode<synchronous>, transform_indices = @transform_5, window_bounds = array<i64: 1, 128>}, {pipeline_mode = #tpu.pipeline_mode<synchronous>, transform_indices = @transform_6, window_bounds = array<i64: 128, 128>}, {pipeline_mode = #tpu.pipeline_mode<synchronous>, transform_indices = @transform_7, window_bounds = array<i64: 1, 128>}, {transform_indices = @transform_8, window_bounds = array<i64: 8, 128>}, {transform_indices = @transform_9, window_bounds = array<i64: 8, 1>}, {transform_indices = @transform_10, window_bounds = array<i64: 8, 128>}, {transform_indices = @transform_11, window_bounds = array<i64: 8, 128>}]} {
    %c0_i32 = arith.constant 0 : i32
    %0 = arith.cmpi eq, %arg1, %c0_i32 : i32
    %1 = arith.extui %0 : i1 to i32
    %c0_i32_0 = arith.constant 0 : i32
    %2 = arith.cmpi ne, %1, %c0_i32_0 : i32
    scf.if %2 {
      %cst_23 = arith.constant 0.000000e+00 : f32
      %29 = vector.broadcast %cst_23 : f32 to vector<8x128xf32>
      %c0_24 = arith.constant 0 : index
      %c0_25 = arith.constant 0 : index
      %30 = vector.load %arg12[%c0_24, %c0_25] : memref<8x128xf32, #tpu.memory_space<vmem>>, vector<8x128xf32>
      tpu.vector_store %arg12[%c0_24, %c0_25], %29 {strides = array<i32>} : memref<8x128xf32, #tpu.memory_space<vmem>>, vector<8x128xf32>,
      %cst_26 = arith.constant 0.000000e+00 : f32
      %31 = vector.broadcast %cst_26 : f32 to vector<8x128xf32>
      %c0_27 = arith.constant 0 : index
      %c0_28 = arith.constant 0 : index
      %32 = vector.load %arg13[%c0_27, %c0_28] : memref<8x128xf32, #tpu.memory_space<vmem>>, vector<8x128xf32>
      tpu.vector_store %arg13[%c0_27, %c0_28], %31 {strides = array<i32>} : memref<8x128xf32, #tpu.memory_space<vmem>>, vector<8x128xf32>,
      %c-1_i32 = arith.constant -1 : i32
      %33 = vector.broadcast %c-1_i32 : i32 to vector<8x128xi32>
      %c0_29 = arith.constant 0 : index
      %c0_30 = arith.constant 0 : index
      %34 = vector.load %arg10[%c0_29, %c0_30] : memref<8x128xi32, #tpu.memory_space<vmem>>, vector<8x128xi32>
      tpu.vector_store %arg10[%c0_29, %c0_30], %33 {strides = array<i32>} : memref<8x128xi32, #tpu.memory_space<vmem>>, vector<8x128xi32>,
      %c0_i32_31 = arith.constant 0 : i32
      %35 = vector.broadcast %c0_i32_31 : i32 to vector<8x1xi32>
      %c0_32 = arith.constant 0 : index
      %c0_33 = arith.constant 0 : index
      %36 = vector.load %arg11[%c0_32, %c0_33] : memref<8x1xi32, #tpu.memory_space<vmem>>, vector<8x1xi32>
      tpu.vector_store %arg11[%c0_32, %c0_33], %35 {strides = array<i32>} : memref<8x1xi32, #tpu.memory_space<vmem>>, vector<8x1xi32>,
      %c7_i32 = arith.constant 7 : i32
      %37 = vector.broadcast %c7_i32 : i32 to vector<8x1xi32>
      %c0_34 = arith.constant 0 : index
      %c0_35 = arith.constant 0 : index
      %38 = vector.load %arg14[%c0_34, %c0_35] : memref<8x1xi32, #tpu.memory_space<vmem>>, vector<8x1xi32>
      tpu.vector_store %arg14[%c0_34, %c0_35], %37 {strides = array<i32>} : memref<8x1xi32, #tpu.memory_space<vmem>>, vector<8x1xi32>,
    } else {
    }
    %c0 = arith.constant 0 : index
    %c0_1 = arith.constant 0 : index
    %3 = vector.load %arg3[%c0, %c0_1] : memref<8x1xi32, #tpu.memory_space<vmem>>, vector<8x1xi32>
    %4 = vector.broadcast %arg1 : i32 to vector<8x1xi32>
    %5 = arith.cmpi sge, %4, %3 : vector<8x1xi32>
    %6 = arith.extui %5 : vector<8x1xi1> to vector<8x1xi32>
    %c0_2 = arith.constant 0 : index
    %c0_3 = arith.constant 0 : index
    %7 = vector.load %arg15[%c0_2, %c0_3] : memref<8x1xi32, #tpu.memory_space<vmem>>, vector<8x1xi32>
    tpu.vector_store %arg15[%c0_2, %c0_3], %6 {strides = array<i32>} : memref<8x1xi32, #tpu.memory_space<vmem>>, vector<8x1xi32>,
    %cst = arith.constant dense<2147483647> : vector<1xi32>
    %8 = vector.multi_reduction <minsi>, %6, %cst [0] : vector<8x1xi32> to vector<1xi32>
    %9 = vector.shape_cast %8 : vector<1xi32> to vector<1x1xi32>
    %c0_4 = arith.constant 0 : index
    %c0_5 = arith.constant 0 : index
    %10 = vector.load %arg16[%c0_4, %c0_5] : memref<1x1xi32, #tpu.memory_space<vmem>>, vector<1x1xi32>
    tpu.vector_store %arg16[%c0_4, %c0_5], %9 {strides = array<i32>} : memref<1x1xi32, #tpu.memory_space<vmem>>, vector<1x1xi32>,
    %c0_6 = arith.constant 0 : index
    %c0_7 = arith.constant 0 : index
    %c0_8 = arith.constant 0 : index
    %11 = vector.load %arg2[%c0_6, %c0_7, %c0_8] : memref<1x8x128xbf16, #tpu.memory_space<vmem>>, vector<1x8x128xbf16>
    %12 = vector.shape_cast %11 : vector<1x8x128xbf16> to vector<8x128xbf16>
    %c0_9 = arith.constant 0 : index
    %c0_10 = arith.constant 0 : index
    %13 = vector.load %arg18[%c0_9, %c0_10] : memref<8x256xbf16, #tpu.memory_space<vmem>>, vector<8x128xbf16>
    tpu.vector_store %arg18[%c0_9, %c0_10], %12 {strides = array<i32>} : memref<8x256xbf16, #tpu.memory_space<vmem>>, vector<8x128xbf16>,
    %c0_11 = arith.constant 0 : index
    %c0_12 = arith.constant 0 : index
    %14 = vector.load %arg16[%c0_11, %c0_12] : memref<1x1xi32, #tpu.memory_space<vmem>>, vector<1x1xi32>
    %15 = vector.extract %14[0, 0] : i32 from vector<1x1xi32>
    %c0_i32_13 = arith.constant 0 : i32
    %16 = arith.cmpi eq, %15, %c0_i32_13 : i32
    %17 = arith.extui %16 : i1 to i32
    %c0_i32_14 = arith.constant 0 : i32
    %18 = arith.cmpi ne, %17, %c0_i32_14 : i32
    scf.if %18 {
      %c0_23 = arith.constant 0 : index
      %c0_24 = arith.constant 0 : index
      %29 = vector.load %arg14[%c0_23, %c0_24] : memref<8x1xi32, #tpu.memory_space<vmem>>, vector<8x1xi32>
      %c0_25 = arith.constant 0 : index
      %c0_26 = arith.constant 0 : index
      %30 = vector.load %arg12[%c0_25, %c0_26] : memref<8x128xf32, #tpu.memory_space<vmem>>, vector<8x128xf32>
      %c0_27 = arith.constant 0 : index
      %c0_28 = arith.constant 0 : index
      %31 = vector.load %arg13[%c0_27, %c0_28] : memref<8x128xf32, #tpu.memory_space<vmem>>, vector<8x128xf32>
      %32 = tpu.iota {dimensions = array<i32: 1>} : vector<8x128xi32>
      %33 = vector.broadcast %29 : vector<8x1xi32> to vector<8x128xi32>
      %34 = arith.cmpi eq, %32, %33 : vector<8x128xi32>
      %c0_i32_29 = arith.constant 0 : i32
      %35 = arith.cmpi ne, %arg1, %c0_i32_29 : i32
      %36 = vector.broadcast %35 : i1 to vector<8x128xi1>
      %37 = arith.andi %34, %36 : vector<8x128xi1>
      %38 = arith.extui %37 : vector<8x128xi1> to vector<8x128xi32>
      %39 = arith.sitofp %38 : vector<8x128xi32> to vector<8x128xf32>
      %40 = arith.truncf %39 : vector<8x128xf32> to vector<8x128xbf16>
      %c0_30 = arith.constant 0 : index
      %c0_31 = arith.constant 0 : index
      %41 = vector.load %arg17[%c0_30, %c0_31] : memref<8x256xbf16, #tpu.memory_space<vmem>>, vector<8x128xbf16>
      tpu.vector_store %arg17[%c0_30, %c0_31], %40 {strides = array<i32>} : memref<8x256xbf16, #tpu.memory_space<vmem>>, vector<8x128xbf16>,
      %42 = arith.truncf %30 : vector<8x128xf32> to vector<8x128xbf16>
      %c0_32 = arith.constant 0 : index
      %c128 = arith.constant 128 : index
      %43 = vector.load %arg17[%c0_32, %c128] : memref<8x256xbf16, #tpu.memory_space<vmem>>, vector<8x128xbf16>
      tpu.vector_store %arg17[%c0_32, %c128], %42 {strides = array<i32>} : memref<8x256xbf16, #tpu.memory_space<vmem>>, vector<8x128xbf16>,
      %c0_33 = arith.constant 0 : index
      %c0_34 = arith.constant 0 : index
      %44 = vector.load %arg17[%c0_33, %c0_34] : memref<8x256xbf16, #tpu.memory_space<vmem>>, vector<8x256xbf16>
      %c0_35 = arith.constant 0 : index
      %c0_36 = arith.constant 0 : index
      %45 = vector.load %arg4[%c0_35, %c0_36] : memref<256x512xbf16, #tpu.memory_space<vmem>>, vector<256x512xbf16>
      %cst_37 = arith.constant dense<0.000000e+00> : vector<8x512xf32>
      %46 = tpu.matmul %44, %45, %cst_37 {dimension_numbers = #tpu.dot_dimension_numbers<[1], [0], [0], [1], [0, 0, 1, 1], [], []>} : vector<8x256xbf16>, vector<256x512xbf16>, vector<8x512xf32> -> vector<8x512xf32>
      %c0_38 = arith.constant 0 : index
      %c0_39 = arith.constant 0 : index
      %47 = vector.load %arg5[%c0_38, %c0_39] : memref<1x512xf32, #tpu.memory_space<vmem>>, vector<1x512xf32>
      %48 = vector.broadcast %47 : vector<1x512xf32> to vector<8x512xf32>
      %49 = arith.addf %46, %48 : vector<8x512xf32>
      %50 = vector.extract_strided_slice %49 {offsets = [0, 0], sizes = [8, 128], strides = [1, 1]} : vector<8x512xf32> to vector<8x128xf32>
      %51 = arith.negf %50 : vector<8x128xf32>
      %52 = math.exp %51 : vector<8x128xf32>
      %cst_40 = arith.constant 1.000000e+00 : f32
      %53 = vector.broadcast %cst_40 : f32 to vector<8x128xf32>
      %54 = arith.addf %53, %52 : vector<8x128xf32>
      %55 = arith.divf %53, %54 : vector<8x128xf32>
      %56 = vector.extract_strided_slice %49 {offsets = [0, 128], sizes = [8, 128], strides = [1, 1]} : vector<8x512xf32> to vector<8x128xf32>
      %57 = arith.negf %56 : vector<8x128xf32>
      %58 = math.exp %57 : vector<8x128xf32>
      %cst_41 = arith.constant 1.000000e+00 : f32
      %59 = vector.broadcast %cst_41 : f32 to vector<8x128xf32>
      %60 = arith.addf %59, %58 : vector<8x128xf32>
      %61 = arith.divf %59, %60 : vector<8x128xf32>
      %62 = vector.extract_strided_slice %49 {offsets = [0, 256], sizes = [8, 128], strides = [1, 1]} : vector<8x512xf32> to vector<8x128xf32>
      %63 = math.tanh %62 : vector<8x128xf32>
      %64 = vector.extract_strided_slice %49 {offsets = [0, 384], sizes = [8, 128], strides = [1, 1]} : vector<8x512xf32> to vector<8x128xf32>
      %65 = arith.negf %64 : vector<8x128xf32>
      %66 = math.exp %65 : vector<8x128xf32>
      %cst_42 = arith.constant 1.000000e+00 : f32
      %67 = vector.broadcast %cst_42 : f32 to vector<8x128xf32>
      %68 = arith.addf %67, %66 : vector<8x128xf32>
      %69 = arith.divf %67, %68 : vector<8x128xf32>
      %70 = arith.mulf %61, %31 : vector<8x128xf32>
      %71 = arith.mulf %55, %63 : vector<8x128xf32>
      %72 = arith.addf %70, %71 : vector<8x128xf32>
      %73 = math.tanh %72 : vector<8x128xf32>
      %74 = arith.mulf %69, %73 : vector<8x128xf32>
      %75 = arith.truncf %74 : vector<8x128xf32> to vector<8x128xbf16>
      %c0_43 = arith.constant 0 : index
      %c128_44 = arith.constant 128 : index
      %76 = vector.load %arg18[%c0_43, %c128_44] : memref<8x256xbf16, #tpu.memory_space<vmem>>, vector<8x128xbf16>
      tpu.vector_store %arg18[%c0_43, %c128_44], %75 {strides = array<i32>} : memref<8x256xbf16, #tpu.memory_space<vmem>>, vector<8x128xbf16>,
      %c0_45 = arith.constant 0 : index
      %c0_46 = arith.constant 0 : index
      %77 = vector.load %arg18[%c0_45, %c0_46] : memref<8x256xbf16, #tpu.memory_space<vmem>>, vector<8x256xbf16>
      %c0_47 = arith.constant 0 : index
      %c0_48 = arith.constant 0 : index
      %78 = vector.load %arg6[%c0_47, %c0_48] : memref<256x128xbf16, #tpu.memory_space<vmem>>, vector<256x128xbf16>
      %cst_49 = arith.constant dense<0.000000e+00> : vector<8x128xf32>
      %79 = tpu.matmul %77, %78, %cst_49 {dimension_numbers = #tpu.dot_dimension_numbers<[1], [0], [0], [1], [0, 0, 1, 1], [], []>} : vector<8x256xbf16>, vector<256x128xbf16>, vector<8x128xf32> -> vector<8x128xf32>
      %c0_50 = arith.constant 0 : index
      %c0_51 = arith.constant 0 : index
      %80 = vector.load %arg7[%c0_50, %c0_51] : memref<1x128xf32, #tpu.memory_space<vmem>>, vector<1x128xf32>
      %81 = vector.broadcast %80 : vector<1x128xf32> to vector<8x128xf32>
      %82 = arith.addf %79, %81 : vector<8x128xf32>
      %cst_52 = arith.constant 0.000000e+00 : f32
      %83 = vector.broadcast %cst_52 : f32 to vector<8x128xf32>
      %84 = arith.maximumf %82, %83 : vector<8x128xf32>
      %85 = arith.truncf %84 : vector<8x128xf32> to vector<8x128xbf16>
      %c0_53 = arith.constant 0 : index
      %c0_54 = arith.constant 0 : index
      %86 = vector.load %arg8[%c0_53, %c0_54] : memref<128x128xbf16, #tpu.memory_space<vmem>>, vector<128x128xbf16>
      %cst_55 = arith.constant dense<0.000000e+00> : vector<8x128xf32>
      %87 = tpu.matmul %85, %86, %cst_55 {dimension_numbers = #tpu.dot_dimension_numbers<[1], [0], [0], [1], [0, 0, 1, 1], [], []>} : vector<8x128xbf16>, vector<128x128xbf16>, vector<8x128xf32> -> vector<8x128xf32>
      %c0_56 = arith.constant 0 : index
      %c0_57 = arith.constant 0 : index
      %88 = vector.load %arg9[%c0_56, %c0_57] : memref<1x128xf32, #tpu.memory_space<vmem>>, vector<1x128xf32>
      %89 = vector.broadcast %88 : vector<1x128xf32> to vector<8x128xf32>
      %90 = arith.addf %87, %89 : vector<8x128xf32>
      %cst_58 = arith.constant dense<0xFF800000> : vector<8xf32>
      %91 = vector.multi_reduction <maximumf>, %90, %cst_58 [1] : vector<8x128xf32> to vector<8xf32>
      %92 = vector.shape_cast %91 : vector<8xf32> to vector<8x1xf32>
      %93 = tpu.iota {dimensions = array<i32: 1>} : vector<8x128xi32>
      %94 = vector.broadcast %92 : vector<8x1xf32> to vector<8x128xf32>
      %95 = arith.cmpf oeq, %90, %94 : vector<8x128xf32>
      %c128_i32 = arith.constant 128 : i32
      %96 = vector.broadcast %c128_i32 : i32 to vector<8x128xi32>
      %97 = arith.select %95, %93, %96 : vector<8x128xi1>, vector<8x128xi32>
      %cst_59 = arith.constant dense<2147483647> : vector<8xi32>
      %98 = vector.multi_reduction <minsi>, %97, %cst_59 [1] : vector<8x128xi32> to vector<8xi32>
      %99 = vector.shape_cast %98 : vector<8xi32> to vector<8x1xi32>
      %c0_60 = arith.constant 0 : index
      %c0_61 = arith.constant 0 : index
      %100 = vector.load %arg15[%c0_60, %c0_61] : memref<8x1xi32, #tpu.memory_space<vmem>>, vector<8x1xi32>
      %c7_i32 = arith.constant 7 : i32
      %101 = vector.broadcast %c7_i32 : i32 to vector<8x1xi32>
      %102 = arith.cmpi eq, %99, %101 : vector<8x1xi32>
      %103 = arith.extui %102 : vector<8x1xi1> to vector<8x1xi32>
      %104 = arith.maxsi %100, %103 : vector<8x1xi32>
      %c0_62 = arith.constant 0 : index
      %c0_63 = arith.constant 0 : index
      %105 = vector.load %arg15[%c0_62, %c0_63] : memref<8x1xi32, #tpu.memory_space<vmem>>, vector<8x1xi32>
      tpu.vector_store %arg15[%c0_62, %c0_63], %104 {strides = array<i32>} : memref<8x1xi32, #tpu.memory_space<vmem>>, vector<8x1xi32>,
      %cst_64 = arith.constant dense<2147483647> : vector<1xi32>
      %106 = vector.multi_reduction <minsi>, %104, %cst_64 [0] : vector<8x1xi32> to vector<1xi32>
      %107 = vector.shape_cast %106 : vector<1xi32> to vector<1x1xi32>
      %c0_65 = arith.constant 0 : index
      %c0_66 = arith.constant 0 : index
      %108 = vector.load %arg16[%c0_65, %c0_66] : memref<1x1xi32, #tpu.memory_space<vmem>>, vector<1x1xi32>
      tpu.vector_store %arg16[%c0_65, %c0_66], %107 {strides = array<i32>} : memref<1x1xi32, #tpu.memory_space<vmem>>, vector<1x1xi32>,
      %c0_i32_67 = arith.constant 0 : i32
      %109 = vector.broadcast %c0_i32_67 : i32 to vector<1x1xi32>
      %110 = arith.cmpi eq, %107, %109 : vector<1x1xi32>
      %c0_68 = arith.constant 0 : index
      %c0_69 = arith.constant 0 : index
      %111 = vector.load %arg11[%c0_68, %c0_69] : memref<8x1xi32, #tpu.memory_space<vmem>>, vector<8x1xi32>
      %cst_70 = arith.constant dense<0> : vector<1xi32>
      %112 = vector.multi_reduction <add>, %111, %cst_70 [0] : vector<8x1xi32> to vector<1xi32>
      %113 = vector.shape_cast %112 : vector<1xi32> to vector<1x1xi32>
      %c0_i32_71 = arith.constant 0 : i32
      %114 = vector.broadcast %c0_i32_71 : i32 to vector<1x1xi32>
      %115 = arith.cmpi sgt, %113, %114 : vector<1x1xi32>
      %cst_72 = arith.constant dense<true> : vector<1x1xi1>
      %116 = arith.xori %110, %cst_72 : vector<1x1xi1>
      %c0_i32_73 = arith.constant 0 : i32
      %117 = vector.broadcast %c0_i32_73 : i32 to vector<8x1xi32>
      %118 = arith.cmpi sgt, %104, %117 : vector<8x1xi32>
      %119 = vector.broadcast %115 : vector<1x1xi1> to vector<8x1xi1>
      %120 = arith.andi %118, %119 : vector<8x1xi1>
      %121 = vector.broadcast %116 : vector<1x1xi1> to vector<8x1xi1>
      %122 = arith.ori %121, %120 : vector<8x1xi1>
      %123 = vector.shape_cast %122 : vector<8x1xi1> to vector<8x1xi1>
      %124 = vector.broadcast %123 : vector<8x1xi1> to vector<8x128xi1>
      %125 = arith.select %124, %30, %74 : vector<8x128xi1>, vector<8x128xf32>
      %c0_74 = arith.constant 0 : index
      %c0_75 = arith.constant 0 : index
      %126 = vector.load %arg12[%c0_74, %c0_75] : memref<8x128xf32, #tpu.memory_space<vmem>>, vector<8x128xf32>
      tpu.vector_store %arg12[%c0_74, %c0_75], %125 {strides = array<i32>} : memref<8x128xf32, #tpu.memory_space<vmem>>, vector<8x128xf32>,
      %127 = vector.shape_cast %122 : vector<8x1xi1> to vector<8x1xi1>
      %128 = vector.broadcast %127 : vector<8x1xi1> to vector<8x128xi1>
      %129 = arith.select %128, %31, %72 : vector<8x128xi1>, vector<8x128xf32>
      %c0_76 = arith.constant 0 : index
      %c0_77 = arith.constant 0 : index
      %130 = vector.load %arg13[%c0_76, %c0_77] : memref<8x128xf32, #tpu.memory_space<vmem>>, vector<8x128xf32>
      tpu.vector_store %arg13[%c0_76, %c0_77], %129 {strides = array<i32>} : memref<8x128xf32, #tpu.memory_space<vmem>>, vector<8x128xf32>,
      %131 = arith.select %122, %29, %99 : vector<8x1xi1>, vector<8x1xi32>
      %c0_78 = arith.constant 0 : index
      %c0_79 = arith.constant 0 : index
      %132 = vector.load %arg14[%c0_78, %c0_79] : memref<8x1xi32, #tpu.memory_space<vmem>>, vector<8x1xi32>
      tpu.vector_store %arg14[%c0_78, %c0_79], %131 {strides = array<i32>} : memref<8x1xi32, #tpu.memory_space<vmem>>, vector<8x1xi32>,
      %c0_i32_80 = arith.constant 0 : i32
      %133 = vector.broadcast %c0_i32_80 : i32 to vector<8x1xi32>
      %134 = arith.cmpi eq, %104, %133 : vector<8x1xi32>
      %135 = vector.broadcast %110 : vector<1x1xi1> to vector<8x1xi1>
      %136 = arith.andi %135, %134 : vector<8x1xi1>
      %137 = tpu.iota {dimensions = array<i32: 1>} : vector<8x128xi32>
      %138 = vector.broadcast %111 : vector<8x1xi32> to vector<8x128xi32>
      %139 = arith.cmpi eq, %137, %138 : vector<8x128xi32>
      %140 = vector.broadcast %136 : vector<8x1xi1> to vector<8x128xi1>
      %141 = arith.andi %140, %139 : vector<8x128xi1>
      %c0_81 = arith.constant 0 : index
      %c0_82 = arith.constant 0 : index
      %142 = vector.load %arg10[%c0_81, %c0_82] : memref<8x128xi32, #tpu.memory_space<vmem>>, vector<8x128xi32>
      %143 = vector.shape_cast %99 : vector<8x1xi32> to vector<8x1xi32>
      %144 = vector.broadcast %143 : vector<8x1xi32> to vector<8x128xi32>
      %145 = arith.select %141, %144, %142 : vector<8x128xi1>, vector<8x128xi32>
      %c0_83 = arith.constant 0 : index
      %c0_84 = arith.constant 0 : index
      %146 = vector.load %arg10[%c0_83, %c0_84] : memref<8x128xi32, #tpu.memory_space<vmem>>, vector<8x128xi32>
      tpu.vector_store %arg10[%c0_83, %c0_84], %145 {strides = array<i32>} : memref<8x128xi32, #tpu.memory_space<vmem>>, vector<8x128xi32>,
      %147 = arith.extui %136 : vector<8x1xi1> to vector<8x1xi32>
      %148 = arith.addi %111, %147 : vector<8x1xi32>
      %c0_85 = arith.constant 0 : index
      %c0_86 = arith.constant 0 : index
      %149 = vector.load %arg11[%c0_85, %c0_86] : memref<8x1xi32, #tpu.memory_space<vmem>>, vector<8x1xi32>
      tpu.vector_store %arg11[%c0_85, %c0_86], %148 {strides = array<i32>} : memref<8x1xi32, #tpu.memory_space<vmem>>, vector<8x1xi32>,
    } else {
    }
    %c0_15 = arith.constant 0 : index
    %c0_16 = arith.constant 0 : index
    %19 = vector.load %arg16[%c0_15, %c0_16] : memref<1x1xi32, #tpu.memory_space<vmem>>, vector<1x1xi32>
    %20 = vector.extract %19[0, 0] : i32 from vector<1x1xi32>
    %c0_i32_17 = arith.constant 0 : i32
    %21 = arith.cmpi eq, %20, %c0_i32_17 : i32
    %22 = arith.extui %21 : i1 to i32
    %c0_i32_18 = arith.constant 0 : i32
    %23 = arith.cmpi ne, %22, %c0_i32_18 : i32
    scf.if %23 {
      %c0_23 = arith.constant 0 : index
      %c0_24 = arith.constant 0 : index
      %29 = vector.load %arg14[%c0_23, %c0_24] : memref<8x1xi32, #tpu.memory_space<vmem>>, vector<8x1xi32>
      %c0_25 = arith.constant 0 : index
      %c0_26 = arith.constant 0 : index
      %30 = vector.load %arg12[%c0_25, %c0_26] : memref<8x128xf32, #tpu.memory_space<vmem>>, vector<8x128xf32>
      %c0_27 = arith.constant 0 : index
      %c0_28 = arith.constant 0 : index
      %31 = vector.load %arg13[%c0_27, %c0_28] : memref<8x128xf32, #tpu.memory_space<vmem>>, vector<8x128xf32>
      %32 = tpu.iota {dimensions = array<i32: 1>} : vector<8x128xi32>
      %33 = vector.broadcast %29 : vector<8x1xi32> to vector<8x128xi32>
      %34 = arith.cmpi eq, %32, %33 : vector<8x128xi32>
      %35 = arith.extui %34 : vector<8x128xi1> to vector<8x128xi32>
      %36 = arith.sitofp %35 : vector<8x128xi32> to vector<8x128xf32>
      %37 = arith.truncf %36 : vector<8x128xf32> to vector<8x128xbf16>
      %c0_29 = arith.constant 0 : index
      %c0_30 = arith.constant 0 : index
      %38 = vector.load %arg17[%c0_29, %c0_30] : memref<8x256xbf16, #tpu.memory_space<vmem>>, vector<8x128xbf16>
      tpu.vector_store %arg17[%c0_29, %c0_30], %37 {strides = array<i32>} : memref<8x256xbf16, #tpu.memory_space<vmem>>, vector<8x128xbf16>,
      %39 = arith.truncf %30 : vector<8x128xf32> to vector<8x128xbf16>
      %c0_31 = arith.constant 0 : index
      %c128 = arith.constant 128 : index
      %40 = vector.load %arg17[%c0_31, %c128] : memref<8x256xbf16, #tpu.memory_space<vmem>>, vector<8x128xbf16>
      tpu.vector_store %arg17[%c0_31, %c128], %39 {strides = array<i32>} : memref<8x256xbf16, #tpu.memory_space<vmem>>, vector<8x128xbf16>,
      %c0_32 = arith.constant 0 : index
      %c0_33 = arith.constant 0 : index
      %41 = vector.load %arg17[%c0_32, %c0_33] : memref<8x256xbf16, #tpu.memory_space<vmem>>, vector<8x256xbf16>
      %c0_34 = arith.constant 0 : index
      %c0_35 = arith.constant 0 : index
      %42 = vector.load %arg4[%c0_34, %c0_35] : memref<256x512xbf16, #tpu.memory_space<vmem>>, vector<256x512xbf16>
      %cst_36 = arith.constant dense<0.000000e+00> : vector<8x512xf32>
      %43 = tpu.matmul %41, %42, %cst_36 {dimension_numbers = #tpu.dot_dimension_numbers<[1], [0], [0], [1], [0, 0, 1, 1], [], []>} : vector<8x256xbf16>, vector<256x512xbf16>, vector<8x512xf32> -> vector<8x512xf32>
      %c0_37 = arith.constant 0 : index
      %c0_38 = arith.constant 0 : index
      %44 = vector.load %arg5[%c0_37, %c0_38] : memref<1x512xf32, #tpu.memory_space<vmem>>, vector<1x512xf32>
      %45 = vector.broadcast %44 : vector<1x512xf32> to vector<8x512xf32>
      %46 = arith.addf %43, %45 : vector<8x512xf32>
      %47 = vector.extract_strided_slice %46 {offsets = [0, 0], sizes = [8, 128], strides = [1, 1]} : vector<8x512xf32> to vector<8x128xf32>
      %48 = arith.negf %47 : vector<8x128xf32>
      %49 = math.exp %48 : vector<8x128xf32>
      %cst_39 = arith.constant 1.000000e+00 : f32
      %50 = vector.broadcast %cst_39 : f32 to vector<8x128xf32>
      %51 = arith.addf %50, %49 : vector<8x128xf32>
      %52 = arith.divf %50, %51 : vector<8x128xf32>
      %53 = vector.extract_strided_slice %46 {offsets = [0, 128], sizes = [8, 128], strides = [1, 1]} : vector<8x512xf32> to vector<8x128xf32>
      %54 = arith.negf %53 : vector<8x128xf32>
      %55 = math.exp %54 : vector<8x128xf32>
      %cst_40 = arith.constant 1.000000e+00 : f32
      %56 = vector.broadcast %cst_40 : f32 to vector<8x128xf32>
      %57 = arith.addf %56, %55 : vector<8x128xf32>
      %58 = arith.divf %56, %57 : vector<8x128xf32>
      %59 = vector.extract_strided_slice %46 {offsets = [0, 256], sizes = [8, 128], strides = [1, 1]} : vector<8x512xf32> to vector<8x128xf32>
      %60 = math.tanh %59 : vector<8x128xf32>
      %61 = vector.extract_strided_slice %46 {offsets = [0, 384], sizes = [8, 128], strides = [1, 1]} : vector<8x512xf32> to vector<8x128xf32>
      %62 = arith.negf %61 : vector<8x128xf32>
      %63 = math.exp %62 : vector<8x128xf32>
      %cst_41 = arith.constant 1.000000e+00 : f32
      %64 = vector.broadcast %cst_41 : f32 to vector<8x128xf32>
      %65 = arith.addf %64, %63 : vector<8x128xf32>
      %66 = arith.divf %64, %65 : vector<8x128xf32>
      %67 = arith.mulf %58, %31 : vector<8x128xf32>
      %68 = arith.mulf %52, %60 : vector<8x128xf32>
      %69 = arith.addf %67, %68 : vector<8x128xf32>
      %70 = math.tanh %69 : vector<8x128xf32>
      %71 = arith.mulf %66, %70 : vector<8x128xf32>
      %72 = arith.truncf %71 : vector<8x128xf32> to vector<8x128xbf16>
      %c0_42 = arith.constant 0 : index
      %c128_43 = arith.constant 128 : index
      %73 = vector.load %arg18[%c0_42, %c128_43] : memref<8x256xbf16, #tpu.memory_space<vmem>>, vector<8x128xbf16>
      tpu.vector_store %arg18[%c0_42, %c128_43], %72 {strides = array<i32>} : memref<8x256xbf16, #tpu.memory_space<vmem>>, vector<8x128xbf16>,
      %c0_44 = arith.constant 0 : index
      %c0_45 = arith.constant 0 : index
      %74 = vector.load %arg18[%c0_44, %c0_45] : memref<8x256xbf16, #tpu.memory_space<vmem>>, vector<8x256xbf16>
      %c0_46 = arith.constant 0 : index
      %c0_47 = arith.constant 0 : index
      %75 = vector.load %arg6[%c0_46, %c0_47] : memref<256x128xbf16, #tpu.memory_space<vmem>>, vector<256x128xbf16>
      %cst_48 = arith.constant dense<0.000000e+00> : vector<8x128xf32>
      %76 = tpu.matmul %74, %75, %cst_48 {dimension_numbers = #tpu.dot_dimension_numbers<[1], [0], [0], [1], [0, 0, 1, 1], [], []>} : vector<8x256xbf16>, vector<256x128xbf16>, vector<8x128xf32> -> vector<8x128xf32>
      %c0_49 = arith.constant 0 : index
      %c0_50 = arith.constant 0 : index
      %77 = vector.load %arg7[%c0_49, %c0_50] : memref<1x128xf32, #tpu.memory_space<vmem>>, vector<1x128xf32>
      %78 = vector.broadcast %77 : vector<1x128xf32> to vector<8x128xf32>
      %79 = arith.addf %76, %78 : vector<8x128xf32>
      %cst_51 = arith.constant 0.000000e+00 : f32
      %80 = vector.broadcast %cst_51 : f32 to vector<8x128xf32>
      %81 = arith.maximumf %79, %80 : vector<8x128xf32>
      %82 = arith.truncf %81 : vector<8x128xf32> to vector<8x128xbf16>
      %c0_52 = arith.constant 0 : index
      %c0_53 = arith.constant 0 : index
      %83 = vector.load %arg8[%c0_52, %c0_53] : memref<128x128xbf16, #tpu.memory_space<vmem>>, vector<128x128xbf16>
      %cst_54 = arith.constant dense<0.000000e+00> : vector<8x128xf32>
      %84 = tpu.matmul %82, %83, %cst_54 {dimension_numbers = #tpu.dot_dimension_numbers<[1], [0], [0], [1], [0, 0, 1, 1], [], []>} : vector<8x128xbf16>, vector<128x128xbf16>, vector<8x128xf32> -> vector<8x128xf32>
      %c0_55 = arith.constant 0 : index
      %c0_56 = arith.constant 0 : index
      %85 = vector.load %arg9[%c0_55, %c0_56] : memref<1x128xf32, #tpu.memory_space<vmem>>, vector<1x128xf32>
      %86 = vector.broadcast %85 : vector<1x128xf32> to vector<8x128xf32>
      %87 = arith.addf %84, %86 : vector<8x128xf32>
      %cst_57 = arith.constant dense<0xFF800000> : vector<8xf32>
      %88 = vector.multi_reduction <maximumf>, %87, %cst_57 [1] : vector<8x128xf32> to vector<8xf32>
      %89 = vector.shape_cast %88 : vector<8xf32> to vector<8x1xf32>
      %90 = tpu.iota {dimensions = array<i32: 1>} : vector<8x128xi32>
      %91 = vector.broadcast %89 : vector<8x1xf32> to vector<8x128xf32>
      %92 = arith.cmpf oeq, %87, %91 : vector<8x128xf32>
      %c128_i32 = arith.constant 128 : i32
      %93 = vector.broadcast %c128_i32 : i32 to vector<8x128xi32>
      %94 = arith.select %92, %90, %93 : vector<8x128xi1>, vector<8x128xi32>
      %cst_58 = arith.constant dense<2147483647> : vector<8xi32>
      %95 = vector.multi_reduction <minsi>, %94, %cst_58 [1] : vector<8x128xi32> to vector<8xi32>
      %96 = vector.shape_cast %95 : vector<8xi32> to vector<8x1xi32>
      %c0_59 = arith.constant 0 : index
      %c0_60 = arith.constant 0 : index
      %97 = vector.load %arg15[%c0_59, %c0_60] : memref<8x1xi32, #tpu.memory_space<vmem>>, vector<8x1xi32>
      %c7_i32 = arith.constant 7 : i32
      %98 = vector.broadcast %c7_i32 : i32 to vector<8x1xi32>
      %99 = arith.cmpi eq, %96, %98 : vector<8x1xi32>
      %100 = arith.extui %99 : vector<8x1xi1> to vector<8x1xi32>
      %101 = arith.maxsi %97, %100 : vector<8x1xi32>
      %c0_61 = arith.constant 0 : index
      %c0_62 = arith.constant 0 : index
      %102 = vector.load %arg15[%c0_61, %c0_62] : memref<8x1xi32, #tpu.memory_space<vmem>>, vector<8x1xi32>
      tpu.vector_store %arg15[%c0_61, %c0_62], %101 {strides = array<i32>} : memref<8x1xi32, #tpu.memory_space<vmem>>, vector<8x1xi32>,
      %cst_63 = arith.constant dense<2147483647> : vector<1xi32>
      %103 = vector.multi_reduction <minsi>, %101, %cst_63 [0] : vector<8x1xi32> to vector<1xi32>
      %104 = vector.shape_cast %103 : vector<1xi32> to vector<1x1xi32>
      %c0_64 = arith.constant 0 : index
      %c0_65 = arith.constant 0 : index
      %105 = vector.load %arg16[%c0_64, %c0_65] : memref<1x1xi32, #tpu.memory_space<vmem>>, vector<1x1xi32>
      tpu.vector_store %arg16[%c0_64, %c0_65], %104 {strides = array<i32>} : memref<1x1xi32, #tpu.memory_space<vmem>>, vector<1x1xi32>,
      %c0_i32_66 = arith.constant 0 : i32
      %106 = vector.broadcast %c0_i32_66 : i32 to vector<1x1xi32>
      %107 = arith.cmpi eq, %104, %106 : vector<1x1xi32>
      %c0_67 = arith.constant 0 : index
      %c0_68 = arith.constant 0 : index
      %108 = vector.load %arg11[%c0_67, %c0_68] : memref<8x1xi32, #tpu.memory_space<vmem>>, vector<8x1xi32>
      %cst_69 = arith.constant dense<0> : vector<1xi32>
      %109 = vector.multi_reduction <add>, %108, %cst_69 [0] : vector<8x1xi32> to vector<1xi32>
      %110 = vector.shape_cast %109 : vector<1xi32> to vector<1x1xi32>
      %c0_i32_70 = arith.constant 0 : i32
      %111 = vector.broadcast %c0_i32_70 : i32 to vector<1x1xi32>
      %112 = arith.cmpi sgt, %110, %111 : vector<1x1xi32>
      %cst_71 = arith.constant dense<true> : vector<1x1xi1>
      %113 = arith.xori %107, %cst_71 : vector<1x1xi1>
      %c0_i32_72 = arith.constant 0 : i32
      %114 = vector.broadcast %c0_i32_72 : i32 to vector<8x1xi32>
      %115 = arith.cmpi sgt, %101, %114 : vector<8x1xi32>
      %116 = vector.broadcast %112 : vector<1x1xi1> to vector<8x1xi1>
      %117 = arith.andi %115, %116 : vector<8x1xi1>
      %118 = vector.broadcast %113 : vector<1x1xi1> to vector<8x1xi1>
      %119 = arith.ori %118, %117 : vector<8x1xi1>
      %120 = vector.shape_cast %119 : vector<8x1xi1> to vector<8x1xi1>
      %121 = vector.broadcast %120 : vector<8x1xi1> to vector<8x128xi1>
      %122 = arith.select %121, %30, %71 : vector<8x128xi1>, vector<8x128xf32>
      %c0_73 = arith.constant 0 : index
      %c0_74 = arith.constant 0 : index
      %123 = vector.load %arg12[%c0_73, %c0_74] : memref<8x128xf32, #tpu.memory_space<vmem>>, vector<8x128xf32>
      tpu.vector_store %arg12[%c0_73, %c0_74], %122 {strides = array<i32>} : memref<8x128xf32, #tpu.memory_space<vmem>>, vector<8x128xf32>,
      %124 = vector.shape_cast %119 : vector<8x1xi1> to vector<8x1xi1>
      %125 = vector.broadcast %124 : vector<8x1xi1> to vector<8x128xi1>
      %126 = arith.select %125, %31, %69 : vector<8x128xi1>, vector<8x128xf32>
      %c0_75 = arith.constant 0 : index
      %c0_76 = arith.constant 0 : index
      %127 = vector.load %arg13[%c0_75, %c0_76] : memref<8x128xf32, #tpu.memory_space<vmem>>, vector<8x128xf32>
      tpu.vector_store %arg13[%c0_75, %c0_76], %126 {strides = array<i32>} : memref<8x128xf32, #tpu.memory_space<vmem>>, vector<8x128xf32>,
      %128 = arith.select %119, %29, %96 : vector<8x1xi1>, vector<8x1xi32>
      %c0_77 = arith.constant 0 : index
      %c0_78 = arith.constant 0 : index
      %129 = vector.load %arg14[%c0_77, %c0_78] : memref<8x1xi32, #tpu.memory_space<vmem>>, vector<8x1xi32>
      tpu.vector_store %arg14[%c0_77, %c0_78], %128 {strides = array<i32>} : memref<8x1xi32, #tpu.memory_space<vmem>>, vector<8x1xi32>,
      %c0_i32_79 = arith.constant 0 : i32
      %130 = vector.broadcast %c0_i32_79 : i32 to vector<8x1xi32>
      %131 = arith.cmpi eq, %101, %130 : vector<8x1xi32>
      %132 = vector.broadcast %107 : vector<1x1xi1> to vector<8x1xi1>
      %133 = arith.andi %132, %131 : vector<8x1xi1>
      %134 = tpu.iota {dimensions = array<i32: 1>} : vector<8x128xi32>
      %135 = vector.broadcast %108 : vector<8x1xi32> to vector<8x128xi32>
      %136 = arith.cmpi eq, %134, %135 : vector<8x128xi32>
      %137 = vector.broadcast %133 : vector<8x1xi1> to vector<8x128xi1>
      %138 = arith.andi %137, %136 : vector<8x128xi1>
      %c0_80 = arith.constant 0 : index
      %c0_81 = arith.constant 0 : index
      %139 = vector.load %arg10[%c0_80, %c0_81] : memref<8x128xi32, #tpu.memory_space<vmem>>, vector<8x128xi32>
      %140 = vector.shape_cast %96 : vector<8x1xi32> to vector<8x1xi32>
      %141 = vector.broadcast %140 : vector<8x1xi32> to vector<8x128xi32>
      %142 = arith.select %138, %141, %139 : vector<8x128xi1>, vector<8x128xi32>
      %c0_82 = arith.constant 0 : index
      %c0_83 = arith.constant 0 : index
      %143 = vector.load %arg10[%c0_82, %c0_83] : memref<8x128xi32, #tpu.memory_space<vmem>>, vector<8x128xi32>
      tpu.vector_store %arg10[%c0_82, %c0_83], %142 {strides = array<i32>} : memref<8x128xi32, #tpu.memory_space<vmem>>, vector<8x128xi32>,
      %144 = arith.extui %133 : vector<8x1xi1> to vector<8x1xi32>
      %145 = arith.addi %108, %144 : vector<8x1xi32>
      %c0_84 = arith.constant 0 : index
      %c0_85 = arith.constant 0 : index
      %146 = vector.load %arg11[%c0_84, %c0_85] : memref<8x1xi32, #tpu.memory_space<vmem>>, vector<8x1xi32>
      tpu.vector_store %arg11[%c0_84, %c0_85], %145 {strides = array<i32>} : memref<8x1xi32, #tpu.memory_space<vmem>>, vector<8x1xi32>,
    } else {
    }
    %c0_19 = arith.constant 0 : index
    %c0_20 = arith.constant 0 : index
    %24 = vector.load %arg16[%c0_19, %c0_20] : memref<1x1xi32, #tpu.memory_space<vmem>>, vector<1x1xi32>
    %25 = vector.extract %24[0, 0] : i32 from vector<1x1xi32>
    %c0_i32_21 = arith.constant 0 : i32
    %26 = arith.cmpi eq, %25, %c0_i32_21 : i32
    %27 = arith.extui %26 : i1 to i32
    %c0_i32_22 = arith.constant 0 : i32
    %28 = arith.cmpi ne, %27, %c0_i32_22 : i32
    scf.if %28 {
      %c0_23 = arith.constant 0 : index
      %c0_24 = arith.constant 0 : index
      %29 = vector.load %arg14[%c0_23, %c0_24] : memref<8x1xi32, #tpu.memory_space<vmem>>, vector<8x1xi32>
      %c0_25 = arith.constant 0 : index
      %c0_26 = arith.constant 0 : index
      %30 = vector.load %arg12[%c0_25, %c0_26] : memref<8x128xf32, #tpu.memory_space<vmem>>, vector<8x128xf32>
      %c0_27 = arith.constant 0 : index
      %c0_28 = arith.constant 0 : index
      %31 = vector.load %arg13[%c0_27, %c0_28] : memref<8x128xf32, #tpu.memory_space<vmem>>, vector<8x128xf32>
      %32 = tpu.iota {dimensions = array<i32: 1>} : vector<8x128xi32>
      %33 = vector.broadcast %29 : vector<8x1xi32> to vector<8x128xi32>
      %34 = arith.cmpi eq, %32, %33 : vector<8x128xi32>
      %35 = arith.extui %34 : vector<8x128xi1> to vector<8x128xi32>
      %36 = arith.sitofp %35 : vector<8x128xi32> to vector<8x128xf32>
      %37 = arith.truncf %36 : vector<8x128xf32> to vector<8x128xbf16>
      %c0_29 = arith.constant 0 : index
      %c0_30 = arith.constant 0 : index
      %38 = vector.load %arg17[%c0_29, %c0_30] : memref<8x256xbf16, #tpu.memory_space<vmem>>, vector<8x128xbf16>
      tpu.vector_store %arg17[%c0_29, %c0_30], %37 {strides = array<i32>} : memref<8x256xbf16, #tpu.memory_space<vmem>>, vector<8x128xbf16>,
      %39 = arith.truncf %30 : vector<8x128xf32> to vector<8x128xbf16>
      %c0_31 = arith.constant 0 : index
      %c128 = arith.constant 128 : index
      %40 = vector.load %arg17[%c0_31, %c128] : memref<8x256xbf16, #tpu.memory_space<vmem>>, vector<8x128xbf16>
      tpu.vector_store %arg17[%c0_31, %c128], %39 {strides = array<i32>} : memref<8x256xbf16, #tpu.memory_space<vmem>>, vector<8x128xbf16>,
      %c0_32 = arith.constant 0 : index
      %c0_33 = arith.constant 0 : index
      %41 = vector.load %arg17[%c0_32, %c0_33] : memref<8x256xbf16, #tpu.memory_space<vmem>>, vector<8x256xbf16>
      %c0_34 = arith.constant 0 : index
      %c0_35 = arith.constant 0 : index
      %42 = vector.load %arg4[%c0_34, %c0_35] : memref<256x512xbf16, #tpu.memory_space<vmem>>, vector<256x512xbf16>
      %cst_36 = arith.constant dense<0.000000e+00> : vector<8x512xf32>
      %43 = tpu.matmul %41, %42, %cst_36 {dimension_numbers = #tpu.dot_dimension_numbers<[1], [0], [0], [1], [0, 0, 1, 1], [], []>} : vector<8x256xbf16>, vector<256x512xbf16>, vector<8x512xf32> -> vector<8x512xf32>
      %c0_37 = arith.constant 0 : index
      %c0_38 = arith.constant 0 : index
      %44 = vector.load %arg5[%c0_37, %c0_38] : memref<1x512xf32, #tpu.memory_space<vmem>>, vector<1x512xf32>
      %45 = vector.broadcast %44 : vector<1x512xf32> to vector<8x512xf32>
      %46 = arith.addf %43, %45 : vector<8x512xf32>
      %47 = vector.extract_strided_slice %46 {offsets = [0, 0], sizes = [8, 128], strides = [1, 1]} : vector<8x512xf32> to vector<8x128xf32>
      %48 = arith.negf %47 : vector<8x128xf32>
      %49 = math.exp %48 : vector<8x128xf32>
      %cst_39 = arith.constant 1.000000e+00 : f32
      %50 = vector.broadcast %cst_39 : f32 to vector<8x128xf32>
      %51 = arith.addf %50, %49 : vector<8x128xf32>
      %52 = arith.divf %50, %51 : vector<8x128xf32>
      %53 = vector.extract_strided_slice %46 {offsets = [0, 128], sizes = [8, 128], strides = [1, 1]} : vector<8x512xf32> to vector<8x128xf32>
      %54 = arith.negf %53 : vector<8x128xf32>
      %55 = math.exp %54 : vector<8x128xf32>
      %cst_40 = arith.constant 1.000000e+00 : f32
      %56 = vector.broadcast %cst_40 : f32 to vector<8x128xf32>
      %57 = arith.addf %56, %55 : vector<8x128xf32>
      %58 = arith.divf %56, %57 : vector<8x128xf32>
      %59 = vector.extract_strided_slice %46 {offsets = [0, 256], sizes = [8, 128], strides = [1, 1]} : vector<8x512xf32> to vector<8x128xf32>
      %60 = math.tanh %59 : vector<8x128xf32>
      %61 = vector.extract_strided_slice %46 {offsets = [0, 384], sizes = [8, 128], strides = [1, 1]} : vector<8x512xf32> to vector<8x128xf32>
      %62 = arith.negf %61 : vector<8x128xf32>
      %63 = math.exp %62 : vector<8x128xf32>
      %cst_41 = arith.constant 1.000000e+00 : f32
      %64 = vector.broadcast %cst_41 : f32 to vector<8x128xf32>
      %65 = arith.addf %64, %63 : vector<8x128xf32>
      %66 = arith.divf %64, %65 : vector<8x128xf32>
      %67 = arith.mulf %58, %31 : vector<8x128xf32>
      %68 = arith.mulf %52, %60 : vector<8x128xf32>
      %69 = arith.addf %67, %68 : vector<8x128xf32>
      %70 = math.tanh %69 : vector<8x128xf32>
      %71 = arith.mulf %66, %70 : vector<8x128xf32>
      %72 = arith.truncf %71 : vector<8x128xf32> to vector<8x128xbf16>
      %c0_42 = arith.constant 0 : index
      %c128_43 = arith.constant 128 : index
      %73 = vector.load %arg18[%c0_42, %c128_43] : memref<8x256xbf16, #tpu.memory_space<vmem>>, vector<8x128xbf16>
      tpu.vector_store %arg18[%c0_42, %c128_43], %72 {strides = array<i32>} : memref<8x256xbf16, #tpu.memory_space<vmem>>, vector<8x128xbf16>,
      %c0_44 = arith.constant 0 : index
      %c0_45 = arith.constant 0 : index
      %74 = vector.load %arg18[%c0_44, %c0_45] : memref<8x256xbf16, #tpu.memory_space<vmem>>, vector<8x256xbf16>
      %c0_46 = arith.constant 0 : index
      %c0_47 = arith.constant 0 : index
      %75 = vector.load %arg6[%c0_46, %c0_47] : memref<256x128xbf16, #tpu.memory_space<vmem>>, vector<256x128xbf16>
      %cst_48 = arith.constant dense<0.000000e+00> : vector<8x128xf32>
      %76 = tpu.matmul %74, %75, %cst_48 {dimension_numbers = #tpu.dot_dimension_numbers<[1], [0], [0], [1], [0, 0, 1, 1], [], []>} : vector<8x256xbf16>, vector<256x128xbf16>, vector<8x128xf32> -> vector<8x128xf32>
      %c0_49 = arith.constant 0 : index
      %c0_50 = arith.constant 0 : index
      %77 = vector.load %arg7[%c0_49, %c0_50] : memref<1x128xf32, #tpu.memory_space<vmem>>, vector<1x128xf32>
      %78 = vector.broadcast %77 : vector<1x128xf32> to vector<8x128xf32>
      %79 = arith.addf %76, %78 : vector<8x128xf32>
      %cst_51 = arith.constant 0.000000e+00 : f32
      %80 = vector.broadcast %cst_51 : f32 to vector<8x128xf32>
      %81 = arith.maximumf %79, %80 : vector<8x128xf32>
      %82 = arith.truncf %81 : vector<8x128xf32> to vector<8x128xbf16>
      %c0_52 = arith.constant 0 : index
      %c0_53 = arith.constant 0 : index
      %83 = vector.load %arg8[%c0_52, %c0_53] : memref<128x128xbf16, #tpu.memory_space<vmem>>, vector<128x128xbf16>
      %cst_54 = arith.constant dense<0.000000e+00> : vector<8x128xf32>
      %84 = tpu.matmul %82, %83, %cst_54 {dimension_numbers = #tpu.dot_dimension_numbers<[1], [0], [0], [1], [0, 0, 1, 1], [], []>} : vector<8x128xbf16>, vector<128x128xbf16>, vector<8x128xf32> -> vector<8x128xf32>
      %c0_55 = arith.constant 0 : index
      %c0_56 = arith.constant 0 : index
      %85 = vector.load %arg9[%c0_55, %c0_56] : memref<1x128xf32, #tpu.memory_space<vmem>>, vector<1x128xf32>
      %86 = vector.broadcast %85 : vector<1x128xf32> to vector<8x128xf32>
      %87 = arith.addf %84, %86 : vector<8x128xf32>
      %cst_57 = arith.constant dense<0xFF800000> : vector<8xf32>
      %88 = vector.multi_reduction <maximumf>, %87, %cst_57 [1] : vector<8x128xf32> to vector<8xf32>
      %89 = vector.shape_cast %88 : vector<8xf32> to vector<8x1xf32>
      %90 = tpu.iota {dimensions = array<i32: 1>} : vector<8x128xi32>
      %91 = vector.broadcast %89 : vector<8x1xf32> to vector<8x128xf32>
      %92 = arith.cmpf oeq, %87, %91 : vector<8x128xf32>
      %c128_i32 = arith.constant 128 : i32
      %93 = vector.broadcast %c128_i32 : i32 to vector<8x128xi32>
      %94 = arith.select %92, %90, %93 : vector<8x128xi1>, vector<8x128xi32>
      %cst_58 = arith.constant dense<2147483647> : vector<8xi32>
      %95 = vector.multi_reduction <minsi>, %94, %cst_58 [1] : vector<8x128xi32> to vector<8xi32>
      %96 = vector.shape_cast %95 : vector<8xi32> to vector<8x1xi32>
      %c0_59 = arith.constant 0 : index
      %c0_60 = arith.constant 0 : index
      %97 = vector.load %arg15[%c0_59, %c0_60] : memref<8x1xi32, #tpu.memory_space<vmem>>, vector<8x1xi32>
      %c7_i32 = arith.constant 7 : i32
      %98 = vector.broadcast %c7_i32 : i32 to vector<8x1xi32>
      %99 = arith.cmpi eq, %96, %98 : vector<8x1xi32>
      %100 = arith.extui %99 : vector<8x1xi1> to vector<8x1xi32>
      %101 = arith.maxsi %97, %100 : vector<8x1xi32>
      %c0_61 = arith.constant 0 : index
      %c0_62 = arith.constant 0 : index
      %102 = vector.load %arg15[%c0_61, %c0_62] : memref<8x1xi32, #tpu.memory_space<vmem>>, vector<8x1xi32>
      tpu.vector_store %arg15[%c0_61, %c0_62], %101 {strides = array<i32>} : memref<8x1xi32, #tpu.memory_space<vmem>>, vector<8x1xi32>,
      %cst_63 = arith.constant dense<2147483647> : vector<1xi32>
      %103 = vector.multi_reduction <minsi>, %101, %cst_63 [0] : vector<8x1xi32> to vector<1xi32>
      %104 = vector.shape_cast %103 : vector<1xi32> to vector<1x1xi32>
      %c0_64 = arith.constant 0 : index
      %c0_65 = arith.constant 0 : index
      %105 = vector.load %arg16[%c0_64, %c0_65] : memref<1x1xi32, #tpu.memory_space<vmem>>, vector<1x1xi32>
      tpu.vector_store %arg16[%c0_64, %c0_65], %104 {strides = array<i32>} : memref<1x1xi32, #tpu.memory_space<vmem>>, vector<1x1xi32>,
      %c0_i32_66 = arith.constant 0 : i32
      %106 = vector.broadcast %c0_i32_66 : i32 to vector<1x1xi32>
      %107 = arith.cmpi eq, %104, %106 : vector<1x1xi32>
      %c0_67 = arith.constant 0 : index
      %c0_68 = arith.constant 0 : index
      %108 = vector.load %arg11[%c0_67, %c0_68] : memref<8x1xi32, #tpu.memory_space<vmem>>, vector<8x1xi32>
      %cst_69 = arith.constant dense<0> : vector<1xi32>
      %109 = vector.multi_reduction <add>, %108, %cst_69 [0] : vector<8x1xi32> to vector<1xi32>
      %110 = vector.shape_cast %109 : vector<1xi32> to vector<1x1xi32>
      %c0_i32_70 = arith.constant 0 : i32
      %111 = vector.broadcast %c0_i32_70 : i32 to vector<1x1xi32>
      %112 = arith.cmpi sgt, %110, %111 : vector<1x1xi32>
      %cst_71 = arith.constant dense<true> : vector<1x1xi1>
      %113 = arith.xori %107, %cst_71 : vector<1x1xi1>
      %c0_i32_72 = arith.constant 0 : i32
      %114 = vector.broadcast %c0_i32_72 : i32 to vector<8x1xi32>
      %115 = arith.cmpi sgt, %101, %114 : vector<8x1xi32>
      %116 = vector.broadcast %112 : vector<1x1xi1> to vector<8x1xi1>
      %117 = arith.andi %115, %116 : vector<8x1xi1>
      %118 = vector.broadcast %113 : vector<1x1xi1> to vector<8x1xi1>
      %119 = arith.ori %118, %117 : vector<8x1xi1>
      %120 = vector.shape_cast %119 : vector<8x1xi1> to vector<8x1xi1>
      %121 = vector.broadcast %120 : vector<8x1xi1> to vector<8x128xi1>
      %122 = arith.select %121, %30, %71 : vector<8x128xi1>, vector<8x128xf32>
      %c0_73 = arith.constant 0 : index
      %c0_74 = arith.constant 0 : index
      %123 = vector.load %arg12[%c0_73, %c0_74] : memref<8x128xf32, #tpu.memory_space<vmem>>, vector<8x128xf32>
      tpu.vector_store %arg12[%c0_73, %c0_74], %122 {strides = array<i32>} : memref<8x128xf32, #tpu.memory_space<vmem>>, vector<8x128xf32>,
      %124 = vector.shape_cast %119 : vector<8x1xi1> to vector<8x1xi1>
      %125 = vector.broadcast %124 : vector<8x1xi1> to vector<8x128xi1>
      %126 = arith.select %125, %31, %69 : vector<8x128xi1>, vector<8x128xf32>
      %c0_75 = arith.constant 0 : index
      %c0_76 = arith.constant 0 : index
      %127 = vector.load %arg13[%c0_75, %c0_76] : memref<8x128xf32, #tpu.memory_space<vmem>>, vector<8x128xf32>
      tpu.vector_store %arg13[%c0_75, %c0_76], %126 {strides = array<i32>} : memref<8x128xf32, #tpu.memory_space<vmem>>, vector<8x128xf32>,
      %128 = arith.select %119, %29, %96 : vector<8x1xi1>, vector<8x1xi32>
      %c0_77 = arith.constant 0 : index
      %c0_78 = arith.constant 0 : index
      %129 = vector.load %arg14[%c0_77, %c0_78] : memref<8x1xi32, #tpu.memory_space<vmem>>, vector<8x1xi32>
      tpu.vector_store %arg14[%c0_77, %c0_78], %128 {strides = array<i32>} : memref<8x1xi32, #tpu.memory_space<vmem>>, vector<8x1xi32>,
      %c0_i32_79 = arith.constant 0 : i32
      %130 = vector.broadcast %c0_i32_79 : i32 to vector<8x1xi32>
      %131 = arith.cmpi eq, %101, %130 : vector<8x1xi32>
      %132 = vector.broadcast %107 : vector<1x1xi1> to vector<8x1xi1>
      %133 = arith.andi %132, %131 : vector<8x1xi1>
      %134 = tpu.iota {dimensions = array<i32: 1>} : vector<8x128xi32>
      %135 = vector.broadcast %108 : vector<8x1xi32> to vector<8x128xi32>
      %136 = arith.cmpi eq, %134, %135 : vector<8x128xi32>
      %137 = vector.broadcast %133 : vector<8x1xi1> to vector<8x128xi1>
      %138 = arith.andi %137, %136 : vector<8x128xi1>
      %c0_80 = arith.constant 0 : index
      %c0_81 = arith.constant 0 : index
      %139 = vector.load %arg10[%c0_80, %c0_81] : memref<8x128xi32, #tpu.memory_space<vmem>>, vector<8x128xi32>
      %140 = vector.shape_cast %96 : vector<8x1xi32> to vector<8x1xi32>
      %141 = vector.broadcast %140 : vector<8x1xi32> to vector<8x128xi32>
      %142 = arith.select %138, %141, %139 : vector<8x128xi1>, vector<8x128xi32>
      %c0_82 = arith.constant 0 : index
      %c0_83 = arith.constant 0 : index
      %143 = vector.load %arg10[%c0_82, %c0_83] : memref<8x128xi32, #tpu.memory_space<vmem>>, vector<8x128xi32>
      tpu.vector_store %arg10[%c0_82, %c0_83], %142 {strides = array<i32>} : memref<8x128xi32, #tpu.memory_space<vmem>>, vector<8x128xi32>,
      %144 = arith.extui %133 : vector<8x1xi1> to vector<8x1xi32>
      %145 = arith.addi %108, %144 : vector<8x1xi32>
      %c0_84 = arith.constant 0 : index
      %c0_85 = arith.constant 0 : index
      %146 = vector.load %arg11[%c0_84, %c0_85] : memref<8x1xi32, #tpu.memory_space<vmem>>, vector<8x1xi32>
      tpu.vector_store %arg11[%c0_84, %c0_85], %145 {strides = array<i32>} : memref<8x1xi32, #tpu.memory_space<vmem>>, vector<8x1xi32>,
    } else {
    }
    return
  }
  func.func @transform_0(%arg0: i32, %arg1: i32) -> (i32, i32, i32) {
    %c0_i32 = arith.constant 0 : i32
    %c0_i32_0 = arith.constant 0 : i32
    return %arg1, %arg0, %c0_i32 : i32, i32, i32
  }
  func.func @transform_1(%arg0: i32, %arg1: i32) -> (i32, i32) {
    %c0_i32 = arith.constant 0 : i32
    %c0_i32_0 = arith.constant 0 : i32
    return %arg0, %c0_i32 : i32, i32
  }
  func.func @transform_2(%arg0: i32, %arg1: i32) -> (i32, i32) {
    %c0_i32 = arith.constant 0 : i32
    %c0_i32_0 = arith.constant 0 : i32
    %c0_i32_1 = arith.constant 0 : i32
    return %c0_i32, %c0_i32_0 : i32, i32
  }
  func.func @transform_3(%arg0: i32, %arg1: i32) -> (i32, i32) {
    %c0_i32 = arith.constant 0 : i32
    %c0_i32_0 = arith.constant 0 : i32
    %c0_i32_1 = arith.constant 0 : i32
    return %c0_i32, %c0_i32_0 : i32, i32
  }
  func.func @transform_4(%arg0: i32, %arg1: i32) -> (i32, i32) {
    %c0_i32 = arith.constant 0 : i32
    %c0_i32_0 = arith.constant 0 : i32
    %c0_i32_1 = arith.constant 0 : i32
    return %c0_i32, %c0_i32_0 : i32, i32
  }
  func.func @transform_5(%arg0: i32, %arg1: i32) -> (i32, i32) {
    %c0_i32 = arith.constant 0 : i32
    %c0_i32_0 = arith.constant 0 : i32
    %c0_i32_1 = arith.constant 0 : i32
    return %c0_i32, %c0_i32_0 : i32, i32
  }
  func.func @transform_6(%arg0: i32, %arg1: i32) -> (i32, i32) {
    %c0_i32 = arith.constant 0 : i32
    %c0_i32_0 = arith.constant 0 : i32
    %c0_i32_1 = arith.constant 0 : i32
    return %c0_i32, %c0_i32_0 : i32, i32
  }
  func.func @transform_7(%arg0: i32, %arg1: i32) -> (i32, i32) {
    %c0_i32 = arith.constant 0 : i32
    %c0_i32_0 = arith.constant 0 : i32
    %c0_i32_1 = arith.constant 0 : i32
    return %c0_i32, %c0_i32_0 : i32, i32
  }
  func.func @transform_8(%arg0: i32, %arg1: i32) -> (i32, i32) {
    %c0_i32 = arith.constant 0 : i32
    %c0_i32_0 = arith.constant 0 : i32
    return %arg0, %c0_i32 : i32, i32
  }
  func.func @transform_9(%arg0: i32, %arg1: i32) -> (i32, i32) {
    %c0_i32 = arith.constant 0 : i32
    %c0_i32_0 = arith.constant 0 : i32
    return %arg0, %c0_i32 : i32, i32
  }
  func.func @transform_10(%arg0: i32, %arg1: i32) -> (i32, i32) {
    %c0_i32 = arith.constant 0 : i32
    %c0_i32_0 = arith.constant 0 : i32
    return %arg0, %c0_i32 : i32, i32
  }
  func.func @transform_11(%arg0: i32, %arg1: i32) -> (i32, i32) {
    %c0_i32 = arith.constant 0 : i32
    %c0_i32_0 = arith.constant 0 : i32
    return %arg0, %c0_i32 : i32, i32
  }
}

</mosaic_0001>

<llo_original>
// kernel: greedy_inference.1
$region0: #{greedy_inference.1}
  #allocation0 [shape = 'u32[]', space=smem, size = 0x4, offset = 0x4, fixed_abs, tag = 'smem constant byte address 0x4 - core index']
  #allocation1 [shape = 'u32[144,128]{1,0:T(1,128)}', space=vmem, size = 0x12000, scoped, tag = 'internal scratch']
  #allocation2 [shape = 's32[8,1]{1,0:T(8,128)}', space=vmem, size = 0x1000, scoped, tag = 'scratch operand']
  #allocation3 [shape = 's32[8,1]{1,0:T(8,128)}', space=vmem, size = 0x1000, scoped, tag = 'scratch operand']
  #allocation4 [shape = 's32[1,1]{1,0:T(1,128)}', space=vmem, size = 0x200, scoped, tag = 'scratch operand']
  #allocation5 [shape = 'bf16[8,256]{1,0:T(8,128)(2,1)}', space=vmem, size = 0x1000, scoped, tag = 'scratch operand']
  #allocation6 [shape = 'bf16[8,256]{1,0:T(8,128)(2,1)}', space=vmem, size = 0x1000, scoped, tag = 'scratch operand']
  %s0 = inlined_call_operand.vmem [shape: bf16[8,8,128], index: 0, kind: input, shape index: {}]
  %s1 = inlined_call_operand.vmem [shape: s32[8,1], index: 1, kind: input, shape index: {}]
  %s2 = inlined_call_operand.vmem [shape: bf16[256,512], index: 2, kind: input, shape index: {}]
  %s3 = inlined_call_operand.vmem [shape: f32[1,512], index: 3, kind: input, shape index: {}]
  %s4 = inlined_call_operand.vmem [shape: bf16[256,128], index: 4, kind: input, shape index: {}]
  %s5 = inlined_call_operand.vmem [shape: f32[1,128], index: 5, kind: input, shape index: {}]
  %s6 = inlined_call_operand.vmem [shape: bf16[128,128], index: 6, kind: input, shape index: {}]
  %s7 = inlined_call_operand.vmem [shape: f32[1,128], index: 7, kind: input, shape index: {}]
  %s8 = inlined_call_operand.vmem [shape: s32[8,128], index: 8, kind: output, shape index: {0}]
  %s9 = inlined_call_operand.vmem [shape: s32[8,1], index: 9, kind: output, shape index: {1}]
  %s10 = inlined_call_operand.vmem [shape: f32[8,128], index: 10, kind: output, shape index: {2}]
  %s11 = inlined_call_operand.vmem [shape: f32[8,128], index: 11, kind: output, shape index: {3}]
  %12 = xla_tuple %s8, %s9, %s10, %s11
  %s13 = sld [smem:[#allocation0]]
  $region105: #{greedy_inference.1} parent=0
    _
  %s15 = ssub.s32 1, %s13
  %s16 = scalar_select 0, %s15, %s13
  loop: start=0, step=1, limit=10
  $region2: #{greedy_inference.1} parent=0 // loop_pre_header
    _
  $region3: #{greedy_inference.1} parent=0 // loop_header
    %s18 = sphi 0, %s22
    %p19 = scmp.ge.s32.totalorder %s18, 10
    %s25 = sphi 0, %s37
    %s26 = sphi 0, %s33
    %s27 = sphi 0, %s25
    %s28 = sphi 0, %s26
    %s29 = sphi 0, %s27
    %s30 = sphi 0, %s28
    %s42 = sphi 0, %s44
    %s45 = sphi 0, %s42
    %s46 = sphi 0, %s45
    %s62 = sphi 0, %s46
    %s68 = sphi 0, %s70
    %s71 = sphi 0, %s68
    %s72 = sphi 0, %s71
    %s88 = sphi 0, %s72
    %s92 = sphi 0, %s92
    %s94 = sphi 0, %s92
    %s95 = sphi 0, %s94
    %s109 = sphi 0, %s95
    %s113 = sphi 0, %s113
    %s115 = sphi 0, %s113
    %s116 = sphi 0, %s115
    %s130 = sphi 0, %s116
    %s134 = sphi 0, %s134
    %s136 = sphi 0, %s134
    %s137 = sphi 0, %s136
    %s151 = sphi 0, %s137
    %s155 = sphi 0, %s155
    %s157 = sphi 0, %s155
    %s158 = sphi 0, %s157
    %s172 = sphi 0, %s158
    %s176 = sphi 0, %s176
    %s178 = sphi 0, %s176
    %s179 = sphi 0, %s178
    %s193 = sphi 0, %s179
    %s197 = sphi 0, %s197
    %s199 = sphi 0, %s197
    %s200 = sphi 0, %s199
    %s214 = sphi 0, %s200
    %s220 = sphi 0, %s222
    %s223 = sphi 0, %s220
    %s224 = sphi 0, %s223
    %s240 = sphi 0, %s224
    %s246 = sphi 0, %s248
    %s249 = sphi 0, %s246
    %s250 = sphi 0, %s249
    %s266 = sphi 0, %s250
    %s272 = sphi 0, %s274
    %s275 = sphi 0, %s272
    %s276 = sphi 0, %s275
    %s292 = sphi 0, %s276
    %s298 = sphi 0, %s300
    %s301 = sphi 0, %s298
    %s302 = sphi 0, %s301
    %s318 = sphi 0, %s302
  $region4: #{greedy_inference.1} parent=0 // loop_header_branch
    %21 = sbr.rel (%p19) target = $region8
  $region5: #{greedy_inference.1} parent=0 // loop_body
    %s23 = ssub.s32 %s18, 1
    %s24 = ssub.s32 %s18, 2
    %s31 = sadd.s32 1, %s26
    %p32 = scmp.ge.s32.totalorder %s31, 8
    %s33 = scalar_select %p32, 0, %s31
    %s34 = sadd.s32 1, %s25
    %s35 = scalar_select %p32, %s34, %s25
    %p36 = scmp.ge.s32.totalorder %s35, 1
    %s37 = scalar_select %p36, 0, %s35
    %s38 = ssub.s32 %s26, %s33
    %s39 = ssub.s32 %s25, %s37
    %s40 = sor.u32 %s38, %s39
    %p41 = scmp.eq.s32.totalorder %s40, 0
    %s43 = sadd.s32 %s42, 1
    %s44 = scalar_select %p41, %s42, %s43
    %p47 = pneg %p41
    %p48 = scmp.eq.s32.totalorder %s18, 7
    %p49 = por %p47, %p48
    %p50 = scmp.ne.s32.totalorder %s42, %s45
    %p51 = scmp.eq.s32.totalorder %s18, 0
    %p52 = por %p50, %p51
    %p53 = scmp.ne.s32.totalorder %s42, %s45
    %p54 = scmp.eq.s32.totalorder %s23, 7
    %p55 = por %p53, %p54
    %p56 = scmp.ne.s32.totalorder %s45, %s46
    %p57 = scmp.eq.s32.totalorder %s23, 0
    %p58 = por %p56, %p57
    %p59 = scmp.ne.s32.totalorder %s45, %s46
    %p60 = scmp.eq.s32.totalorder %s24, 7
    %p61 = por %p59, %p60
    %p63 = scmp.ne.s32.totalorder %s46, %s62
    %p64 = scmp.eq.s32.totalorder %s24, 0
    %p65 = por %p63, %p64
    %s66 = ssub.s32 %s25, %s37
    %p67 = scmp.eq.s32.totalorder %s66, 0
    %s69 = sadd.s32 %s68, 1
    %s70 = scalar_select %p67, %s68, %s69
    %p73 = pneg %p67
    %p74 = scmp.eq.s32.totalorder %s18, 7
    %p75 = por %p73, %p74
    %p76 = scmp.ne.s32.totalorder %s68, %s71
    %p77 = scmp.eq.s32.totalorder %s18, 0
    %p78 = por %p76, %p77
    %p79 = scmp.ne.s32.totalorder %s68, %s71
    %p80 = scmp.eq.s32.totalorder %s23, 7
    %p81 = por %p79, %p80
    %p82 = scmp.ne.s32.totalorder %s71, %s72
    %p83 = scmp.eq.s32.totalorder %s23, 0
    %p84 = por %p82, %p83
    %p85 = scmp.ne.s32.totalorder %s71, %s72
    %p86 = scmp.eq.s32.totalorder %s24, 7
    %p87 = por %p85, %p86
    %p89 = scmp.ne.s32.totalorder %s72, %s88
    %p90 = scmp.eq.s32.totalorder %s24, 0
    %p91 = por %p89, %p90
    %s93 = sadd.s32 %s92, 1
    %p96 = scmp.eq.s32.totalorder %s18, 7
    %p97 = scmp.ne.s32.totalorder %s92, %s94
    %p98 = scmp.eq.s32.totalorder %s18, 0
    %p99 = por %p97, %p98
    %p100 = scmp.ne.s32.totalorder %s92, %s94
    %p101 = scmp.eq.s32.totalorder %s23, 7
    %p102 = por %p100, %p101
    %p103 = scmp.ne.s32.totalorder %s94, %s95
    %p104 = scmp.eq.s32.totalorder %s23, 0
    %p105 = por %p103, %p104
    %p106 = scmp.ne.s32.totalorder %s94, %s95
    %p107 = scmp.eq.s32.totalorder %s24, 7
    %p108 = por %p106, %p107
    %p110 = scmp.ne.s32.totalorder %s95, %s109
    %p111 = scmp.eq.s32.totalorder %s24, 0
    %p112 = por %p110, %p111
    %s114 = sadd.s32 %s113, 1
    %p117 = scmp.eq.s32.totalorder %s18, 7
    %p118 = scmp.ne.s32.totalorder %s113, %s115
    %p119 = scmp.eq.s32.totalorder %s18, 0
    %p120 = por %p118, %p119
    %p121 = scmp.ne.s32.totalorder %s113, %s115
    %p122 = scmp.eq.s32.totalorder %s23, 7
    %p123 = por %p121, %p122
    %p124 = scmp.ne.s32.totalorder %s115, %s116
    %p125 = scmp.eq.s32.totalorder %s23, 0
    %p126 = por %p124, %p125
    %p127 = scmp.ne.s32.totalorder %s115, %s116
    %p128 = scmp.eq.s32.totalorder %s24, 7
    %p129 = por %p127, %p128
    %p131 = scmp.ne.s32.totalorder %s116, %s130
    %p132 = scmp.eq.s32.totalorder %s24, 0
    %p133 = por %p131, %p132
    %s135 = sadd.s32 %s134, 1
    %p138 = scmp.eq.s32.totalorder %s18, 7
    %p139 = scmp.ne.s32.totalorder %s134, %s136
    %p140 = scmp.eq.s32.totalorder %s18, 0
    %p141 = por %p139, %p140
    %p142 = scmp.ne.s32.totalorder %s134, %s136
    %p143 = scmp.eq.s32.totalorder %s23, 7
    %p144 = por %p142, %p143
    %p145 = scmp.ne.s32.totalorder %s136, %s137
    %p146 = scmp.eq.s32.totalorder %s23, 0
    %p147 = por %p145, %p146
    %p148 = scmp.ne.s32.totalorder %s136, %s137
    %p149 = scmp.eq.s32.totalorder %s24, 7
    %p150 = por %p148, %p149
    %p152 = scmp.ne.s32.totalorder %s137, %s151
    %p153 = scmp.eq.s32.totalorder %s24, 0
    %p154 = por %p152, %p153
    %s156 = sadd.s32 %s155, 1
    %p159 = scmp.eq.s32.totalorder %s18, 7
    %p160 = scmp.ne.s32.totalorder %s155, %s157
    %p161 = scmp.eq.s32.totalorder %s18, 0
    %p162 = por %p160, %p161
    %p163 = scmp.ne.s32.totalorder %s155, %s157
    %p164 = scmp.eq.s32.totalorder %s23, 7
    %p165 = por %p163, %p164
    %p166 = scmp.ne.s32.totalorder %s157, %s158
    %p167 = scmp.eq.s32.totalorder %s23, 0
    %p168 = por %p166, %p167
    %p169 = scmp.ne.s32.totalorder %s157, %s158
    %p170 = scmp.eq.s32.totalorder %s24, 7
    %p171 = por %p169, %p170
    %p173 = scmp.ne.s32.totalorder %s158, %s172
    %p174 = scmp.eq.s32.totalorder %s24, 0
    %p175 = por %p173, %p174
    %s177 = sadd.s32 %s176, 1
    %p180 = scmp.eq.s32.totalorder %s18, 7
    %p181 = scmp.ne.s32.totalorder %s176, %s178
    %p182 = scmp.eq.s32.totalorder %s18, 0
    %p183 = por %p181, %p182
    %p184 = scmp.ne.s32.totalorder %s176, %s178
    %p185 = scmp.eq.s32.totalorder %s23, 7
    %p186 = por %p184, %p185
    %p187 = scmp.ne.s32.totalorder %s178, %s179
    %p188 = scmp.eq.s32.totalorder %s23, 0
    %p189 = por %p187, %p188
    %p190 = scmp.ne.s32.totalorder %s178, %s179
    %p191 = scmp.eq.s32.totalorder %s24, 7
    %p192 = por %p190, %p191
    %p194 = scmp.ne.s32.totalorder %s179, %s193
    %p195 = scmp.eq.s32.totalorder %s24, 0
    %p196 = por %p194, %p195
    %s198 = sadd.s32 %s197, 1
    %p201 = scmp.eq.s32.totalorder %s18, 7
    %p202 = scmp.ne.s32.totalorder %s197, %s199
    %p203 = scmp.eq.s32.totalorder %s18, 0
    %p204 = por %p202, %p203
    %p205 = scmp.ne.s32.totalorder %s197, %s199
    %p206 = scmp.eq.s32.totalorder %s23, 7
    %p207 = por %p205, %p206
    %p208 = scmp.ne.s32.totalorder %s199, %s200
    %p209 = scmp.eq.s32.totalorder %s23, 0
    %p210 = por %p208, %p209
    %p211 = scmp.ne.s32.totalorder %s199, %s200
    %p212 = scmp.eq.s32.totalorder %s24, 7
    %p213 = por %p211, %p212
    %p215 = scmp.ne.s32.totalorder %s200, %s214
    %p216 = scmp.eq.s32.totalorder %s24, 0
    %p217 = por %p215, %p216
    %s218 = ssub.s32 %s25, %s37
    %p219 = scmp.eq.s32.totalorder %s218, 0
    %s221 = sadd.s32 %s220, 1
    %s222 = scalar_select %p219, %s220, %s221
    %p225 = pneg %p219
    %p226 = scmp.eq.s32.totalorder %s18, 7
    %p227 = por %p225, %p226
    %p228 = scmp.ne.s32.totalorder %s220, %s223
    %p229 = scmp.eq.s32.totalorder %s18, 0
    %p230 = por %p228, %p229
    %p231 = scmp.ne.s32.totalorder %s220, %s223
    %p232 = scmp.eq.s32.totalorder %s23, 7
    %p233 = por %p231, %p232
    %p234 = scmp.ne.s32.totalorder %s223, %s224
    %p235 = scmp.eq.s32.totalorder %s23, 0
    %p236 = por %p234, %p235
    %p237 = scmp.ne.s32.totalorder %s223, %s224
    %p238 = scmp.eq.s32.totalorder %s24, 7
    %p239 = por %p237, %p238
    %p241 = scmp.ne.s32.totalorder %s224, %s240
    %p242 = scmp.eq.s32.totalorder %s24, 0
    %p243 = por %p241, %p242
    %s244 = ssub.s32 %s25, %s37
    %p245 = scmp.eq.s32.totalorder %s244, 0
    %s247 = sadd.s32 %s246, 1
    %s248 = scalar_select %p245, %s246, %s247
    %p251 = pneg %p245
    %p252 = scmp.eq.s32.totalorder %s18, 7
    %p253 = por %p251, %p252
    %p254 = scmp.ne.s32.totalorder %s246, %s249
    %p255 = scmp.eq.s32.totalorder %s18, 0
    %p256 = por %p254, %p255
    %p257 = scmp.ne.s32.totalorder %s246, %s249
    %p258 = scmp.eq.s32.totalorder %s23, 7
    %p259 = por %p257, %p258
    %p260 = scmp.ne.s32.totalorder %s249, %s250
    %p261 = scmp.eq.s32.totalorder %s23, 0
    %p262 = por %p260, %p261
    %p263 = scmp.ne.s32.totalorder %s249, %s250
    %p264 = scmp.eq.s32.totalorder %s24, 7
    %p265 = por %p263, %p264
    %p267 = scmp.ne.s32.totalorder %s250, %s266
    %p268 = scmp.eq.s32.totalorder %s24, 0
    %p269 = por %p267, %p268
    %s270 = ssub.s32 %s25, %s37
    %p271 = scmp.eq.s32.totalorder %s270, 0
    %s273 = sadd.s32 %s272, 1
    %s274 = scalar_select %p271, %s272, %s273
    %p277 = pneg %p271
    %p278 = scmp.eq.s32.totalorder %s18, 7
    %p279 = por %p277, %p278
    %p280 = scmp.ne.s32.totalorder %s272, %s275
    %p281 = scmp.eq.s32.totalorder %s18, 0
    %p282 = por %p280, %p281
    %p283 = scmp.ne.s32.totalorder %s272, %s275
    %p284 = scmp.eq.s32.totalorder %s23, 7
    %p285 = por %p283, %p284
    %p286 = scmp.ne.s32.totalorder %s275, %s276
    %p287 = scmp.eq.s32.totalorder %s23, 0
    %p288 = por %p286, %p287
    %p289 = scmp.ne.s32.totalorder %s275, %s276
    %p290 = scmp.eq.s32.totalorder %s24, 7
    %p291 = por %p289, %p290
    %p293 = scmp.ne.s32.totalorder %s276, %s292
    %p294 = scmp.eq.s32.totalorder %s24, 0
    %p295 = por %p293, %p294
    %s296 = ssub.s32 %s25, %s37
    %p297 = scmp.eq.s32.totalorder %s296, 0
    %s299 = sadd.s32 %s298, 1
    %s300 = scalar_select %p297, %s298, %s299
    %p303 = pneg %p297
    %p304 = scmp.eq.s32.totalorder %s18, 7
    %p305 = por %p303, %p304
    %p306 = scmp.ne.s32.totalorder %s298, %s301
    %p307 = scmp.eq.s32.totalorder %s18, 0
    %p308 = por %p306, %p307
    %p309 = scmp.ne.s32.totalorder %s298, %s301
    %p310 = scmp.eq.s32.totalorder %s23, 7
    %p311 = por %p309, %p310
    %p312 = scmp.ne.s32.totalorder %s301, %s302
    %p313 = scmp.eq.s32.totalorder %s23, 0
    %p314 = por %p312, %p313
    %p315 = scmp.ne.s32.totalorder %s301, %s302
    %p316 = scmp.eq.s32.totalorder %s24, 7
    %p317 = por %p315, %p316
    %p319 = scmp.ne.s32.totalorder %s302, %s318
    %p320 = scmp.eq.s32.totalorder %s24, 0
    %p321 = por %p319, %p320
    %p322 = scmp.le.s32.totalorder 1, %s18
    %p323 = scmp.lt.s32.totalorder %s18, 9
    %p324 = pnand %p322, %p323
    %p325 = pneg %p324
    // Predicated region
    $region9: #{greedy_inference.1} parent=5 // pred_check
      _
    $region10: #{greedy_inference.1} parent=5 // pred_check_branch
      %327 = sbr.rel (%p324) target = $region12
    $region11: #{greedy_inference.1} parent=5 // pred_region
      %s328 = ssub.s32 %s18, 1
      // Predicated region
      $region13: #{greedy_inference.1} parent=11 // pred_check
        %p329 = pneg %p84
      $region14: #{greedy_inference.1} parent=11 // pred_check_branch
        %331 = sbr.rel (%p329) target = $region16
      $region15: #{greedy_inference.1} parent=11 // pred_region
        %p332 = scmp.lt.s32.totalorder %s27, 0
        %s333 = scalar_select %p332, %s27, 0
        %s334 = smul.addr %s333, 8
        %s335 = scalar_lea.vmem %s1, %s334
      $region16: #{greedy_inference.1} parent=11 // pred_fallthru
        _
      // Predicated region
      $region17: #{greedy_inference.1} parent=11 // pred_check
        %p336 = pneg %p105
      $region18: #{greedy_inference.1} parent=11 // pred_check_branch
        %338 = sbr.rel (%p336) target = $region20
      $region19: #{greedy_inference.1} parent=11 // pred_region
        _
      $region20: #{greedy_inference.1} parent=11 // pred_fallthru
        _
      // Predicated region
      $region21: #{greedy_inference.1} parent=11 // pred_check
        %p339 = pneg %p126
      $region22: #{greedy_inference.1} parent=11 // pred_check_branch
        %341 = sbr.rel (%p339) target = $region24
      $region23: #{greedy_inference.1} parent=11 // pred_region
        _
      $region24: #{greedy_inference.1} parent=11 // pred_fallthru
        _
      // Predicated region
      $region25: #{greedy_inference.1} parent=11 // pred_check
        %p342 = pneg %p147
      $region26: #{greedy_inference.1} parent=11 // pred_check_branch
        %344 = sbr.rel (%p342) target = $region28
      $region27: #{greedy_inference.1} parent=11 // pred_region
        _
      $region28: #{greedy_inference.1} parent=11 // pred_fallthru
        _
      // Predicated region
      $region29: #{greedy_inference.1} parent=11 // pred_check
        %p345 = pneg %p168
      $region30: #{greedy_inference.1} parent=11 // pred_check_branch
        %347 = sbr.rel (%p345) target = $region32
      $region31: #{greedy_inference.1} parent=11 // pred_region
        _
      $region32: #{greedy_inference.1} parent=11 // pred_fallthru
        _
      // Predicated region
      $region33: #{greedy_inference.1} parent=11 // pred_check
        %p348 = pneg %p189
      $region34: #{greedy_inference.1} parent=11 // pred_check_branch
        %350 = sbr.rel (%p348) target = $region36
      $region35: #{greedy_inference.1} parent=11 // pred_region
        _
      $region36: #{greedy_inference.1} parent=11 // pred_fallthru
        _
      // Predicated region
      $region37: #{greedy_inference.1} parent=11 // pred_check
        %p351 = pneg %p210
      $region38: #{greedy_inference.1} parent=11 // pred_check_branch
        %353 = sbr.rel (%p351) target = $region40
      $region39: #{greedy_inference.1} parent=11 // pred_region
        _
      $region40: #{greedy_inference.1} parent=11 // pred_fallthru
        _
    $region12: #{greedy_inference.1} parent=5 // pred_fallthru
      _
    %p354 = scmp.lt.s32.totalorder %s18, 8
    // Predicated region
    $region41: #{greedy_inference.1} parent=5 // pred_check
      %p355 = pneg %p354
    $region42: #{greedy_inference.1} parent=5 // pred_check_branch
      %357 = sbr.rel (%p355) target = $region44
    $region43: #{greedy_inference.1} parent=5 // pred_region
      // Predicated region
      $region45: #{greedy_inference.1} parent=43 // pred_check
        %p358 = pneg %p52
      $region46: #{greedy_inference.1} parent=43 // pred_check_branch
        %360 = sbr.rel (%p358) target = $region48
      $region47: #{greedy_inference.1} parent=43 // pred_region
        %p361 = scmp.lt.s32.totalorder %s26, 7
        %s362 = scalar_select %p361, %s26, 7
        %p363 = scmp.lt.s32.totalorder %s25, 0
        %s364 = scalar_select %p363, %s25, 0
        %s365 = sadd.s32 %s364, %s362
        %s366 = smul.addr %s365, 4
        %s367 = scalar_lea.vmem %s0, %s366
      $region48: #{greedy_inference.1} parent=43 // pred_fallthru
        _
    $region44: #{greedy_inference.1} parent=5 // pred_fallthru
      _
    %p368 = scmp.le.s32.totalorder 1, %s18
    %p369 = scmp.lt.s32.totalorder %s18, 9
    %p370 = pnand %p368, %p369
    %p371 = pneg %p370
    // Predicated region
    $region49: #{greedy_inference.1} parent=5 // pred_check
      _
    $region50: #{greedy_inference.1} parent=5 // pred_check_branch
      %373 = sbr.rel (%p370) target = $region52
    $region51: #{greedy_inference.1} parent=5 // pred_region
      %s374 = ssub.s32 %s18, 1
      %p375 = scmp.lt.s32.totalorder %s28, 7
      %s376 = scalar_select %p375, %s28, 7
      %p377 = scmp.lt.s32.totalorder %s27, 0
      %s378 = scalar_select %p377, %s27, 0
      %s379 = sadd.s32 %s378, %s376
      %s380 = smul.addr %s379, 4
      %s381 = scalar_lea.vmem %s0, %s380
      %p382 = pneg %p58
      %p383 = pneg %p55
      %p384 = scmp.lt.s32.totalorder %s27, 0
      %s385 = scalar_select %p384, %s27, 0
      %s386 = smul.addr %s385, 8
      %s387 = scalar_lea.vmem %s1, %s386
      %p388 = pneg %p84
      %p389 = pneg %p81
      %p390 = pneg %p105
      %p391 = pneg %p102
      %p392 = pneg %p126
      %p393 = pneg %p123
      %p394 = pneg %p147
      %p395 = pneg %p144
      %p396 = pneg %p168
      %p397 = pneg %p165
      %p398 = pneg %p189
      %p399 = pneg %p186
      %p400 = pneg %p210
      %p401 = pneg %p207
      %p402 = pneg %p236
      %p403 = pneg %p233
      %p404 = scmp.lt.s32.totalorder %s27, 0
      %s405 = scalar_select %p404, %s27, 0
      %s406 = smul.addr %s405, 8
      %s407 = scalar_lea.vmem %s8, %s406
      %p408 = pneg %p262
      %p409 = pneg %p259
      %p410 = scmp.lt.s32.totalorder %s27, 0
      %s411 = scalar_select %p410, %s27, 0
      %s412 = smul.addr %s411, 8
      %s413 = scalar_lea.vmem %s9, %s412
      %p414 = pneg %p288
      %p415 = pneg %p285
      %p416 = scmp.lt.s32.totalorder %s27, 0
      %s417 = scalar_select %p416, %s27, 0
      %s418 = smul.addr %s417, 8
      %s419 = scalar_lea.vmem %s10, %s418
      %p420 = pneg %p314
      %p421 = pneg %p311
      %p422 = scmp.lt.s32.totalorder %s27, 0
      %s423 = scalar_select %p422, %s27, 0
      %s424 = smul.addr %s423, 8
      %s425 = scalar_lea.vmem %s11, %s424
      %p426 = scmp.lt.s32.totalorder %s28, 7
      %s427 = scalar_select %p426, %s28, 7
      %p428 = scmp.lt.s32.totalorder %s27, 0
      %s429 = scalar_select %p428, %s27, 0
      %s430 = sadd.s32 %s429, %s427
      %s431 = smul.addr %s430, 4
      %s432 = scalar_lea.vmem %s0, %s431
      %p433 = scmp.lt.s32.totalorder %s27, 0
      %s434 = scalar_select %p433, %s27, 0
      %s435 = smul.addr %s434, 8
      %s436 = scalar_lea.vmem %s1, %s435
      %p437 = scmp.lt.s32.totalorder %s27, 0
      %s438 = scalar_select %p437, %s27, 0
      %s439 = smul.addr %s438, 8
      %s440 = scalar_lea.vmem %s8, %s439
      %p441 = scmp.lt.s32.totalorder %s27, 0
      %s442 = scalar_select %p441, %s27, 0
      %s443 = smul.addr %s442, 8
      %s444 = scalar_lea.vmem %s9, %s443
      %p445 = scmp.lt.s32.totalorder %s27, 0
      %s446 = scalar_select %p445, %s27, 0
      %s447 = smul.addr %s446, 8
      %s448 = scalar_lea.vmem %s10, %s447
      %p449 = scmp.lt.s32.totalorder %s27, 0
      %s450 = scalar_select %p449, %s27, 0
      %s451 = smul.addr %s450, 8
      %s452 = scalar_lea.vmem %s11, %s451
      %p454 = scmp.eq.s32.totalorder %s28, 0
      // Predicated region
      $region53: #{greedy_inference.1} parent=51 // pred_check
        %p455 = pneg %p454
      $region54: #{greedy_inference.1} parent=51 // pred_check_branch
        %457 = sbr.rel (%p455) target = $region56
      $region55: #{greedy_inference.1} parent=51 // pred_region
        %458 = vst [vmem:[%s448] sm:$0xff] 0.0
        %459 = vst [vmem:[%s452] sm:$0xff] 0.0
        %460 = vst [vmem:[%s440] sm:$0xff] 4294967295
        %vm461 = vcmask 7168
        %462 = vst.msk [vmem:[%s444] sm:$0xff] %vm461, 0
        %463 = vst.msk [vmem:[#allocation2] sm:$0xff] %vm461, 7
      $region56: #{greedy_inference.1} parent=51 // pred_fallthru
        _
      %v464 = vld [vmem:[%s436] sm:$0xff]
      %v465 = vstv %s28
      %vm466 = vcmp.ge.s32.totalorder %v465, %v464
      %v467 = vsel %vm466, 1, 0
      %vm468 = vcmask 7168
      %469 = vst.msk [vmem:[#allocation3] sm:$0xff] %vm468, %v467
      %v470 = vsel %vm468, %v467, 2147483647
      %v471 = vrot.slane %v470, 4
      %vm472 = vcmp.lt.s32.totalorder %v470, %v471
      %v473 = vsel %vm472, %v470, %v471
      %v474 = vrot.slane %v473, 2
      %vm475 = vcmp.lt.s32.totalorder %v473, %v474
      %v476 = vsel %vm475, %v473, %v474
      %v477 = vrot.slane %v476, 1
      %vm478 = vcmp.lt.s32.totalorder %v476, %v477
      %v479 = vsel %vm478, %v476, %v477
      %vm480 = vcmask 0
      %481 = vst.msk [vmem:[#allocation4] sm:$0x1] %vm480, %v479
      %v482 = vld [vmem:[%s432] sm:$0xf]
      %483 = vst [vmem:[#allocation6] sm:$0xf] %v482
      %v484 = vld [vmem:[#allocation4] sm:$0x1]
      %s485 = vtos %v484
      %p486 = scmp.eq.s32.totalorder %s485, 0
      // Predicated region
      $region57: #{greedy_inference.1} parent=51 // pred_check
        %p487 = pneg %p486
      $region58: #{greedy_inference.1} parent=51 // pred_check_branch
        %489 = sbr.rel (%p487) target = $region60
      $region59: #{greedy_inference.1} parent=51 // pred_region
        %v490 = vld [vmem:[#allocation2] sm:$0xff]
        %v491 = vld [vmem:[%s448] sm:$0xff]
        %v492 = vld [vmem:[%s452] sm:$0xff]
        %v493 = vlaneseq
        %v494 = vand.u32 %v493, 127
        %495 = vset.pattern.permute.xlu0 0
        %496 = vperm.xlu0 %495, %v490
        %v497 = vpop.permute.xlu0 %496
        %vm498 = vcmp.eq.s32.totalorder %v494, %v497
        %p499 = scmp.ne.s32.totalorder %s28, 0
        %s500 = scalar_select %p499, 1, 0
        %v501 = vstv %s500
        %vm502 = vcmp.eq.s32.totalorder %v501, 1
        %vm503 = vmand %vm498, %vm502
        %v504 = vsel %vm503, 1, 0
        %v505 = vcvt.s32.f32 %v504
        %v506 = vpack.c.bf16 %v505, %v505
        %507 = vst [vmem:[#allocation5] sm:$0xf] %v506
        %v508 = vpack.c.bf16 %v491, %v491
        %509 = vst [vmem:[#allocation5 + $0x4] sm:$0xf] %v508
        %v510 = vld [vmem:[#allocation5] sm:$0xff]
        %v511 = vld [vmem:[%s2] sm:$0xff]
        %v512 = vld [vmem:[%s2 + $0x8] sm:$0xff]
        %v513 = vld [vmem:[%s2 + $0x10] sm:$0xff]
        %v514 = vld [vmem:[%s2 + $0x18] sm:$0xff]
        %v515 = vld [vmem:[%s2 + $0x20] sm:$0xff]
        %v516 = vld [vmem:[%s2 + $0x28] sm:$0xff]
        %v517 = vld [vmem:[%s2 + $0x30] sm:$0xff]
        %v518 = vld [vmem:[%s2 + $0x38] sm:$0xff]
        %v519 = vld [vmem:[%s2 + $0x40] sm:$0xff]
        %v520 = vld [vmem:[%s2 + $0x48] sm:$0xff]
        %v521 = vld [vmem:[%s2 + $0x50] sm:$0xff]
        %v522 = vld [vmem:[%s2 + $0x58] sm:$0xff]
        %v523 = vld [vmem:[%s2 + $0x60] sm:$0xff]
        %v524 = vld [vmem:[%s2 + $0x68] sm:$0xff]
        %v525 = vld [vmem:[%s2 + $0x70] sm:$0xff]
        %v526 = vld [vmem:[%s2 + $0x78] sm:$0xff]
        %v527 = vld [vmem:[%s2 + $0x80] sm:$0xff]
        %v528 = vld [vmem:[%s2 + $0x88] sm:$0xff]
        %v529 = vld [vmem:[%s2 + $0x90] sm:$0xff]
        %v530 = vld [vmem:[%s2 + $0x98] sm:$0xff]
        %v531 = vld [vmem:[%s2 + $0xa0] sm:$0xff]
        %v532 = vld [vmem:[%s2 + $0xa8] sm:$0xff]
        %v533 = vld [vmem:[%s2 + $0xb0] sm:$0xff]
        %v534 = vld [vmem:[%s2 + $0xb8] sm:$0xff]
        %v535 = vld [vmem:[%s2 + $0xc0] sm:$0xff]
        %v536 = vld [vmem:[%s2 + $0xc8] sm:$0xff]
        %v537 = vld [vmem:[%s2 + $0xd0] sm:$0xff]
        %v538 = vld [vmem:[%s2 + $0xd8] sm:$0xff]
        %v539 = vld [vmem:[%s2 + $0xe0] sm:$0xff]
        %v540 = vld [vmem:[%s2 + $0xe8] sm:$0xff]
        %v541 = vld [vmem:[%s2 + $0xf0] sm:$0xff]
        %v542 = vld [vmem:[%s2 + $0xf8] sm:$0xff]
        %v543 = vld [vmem:[%s2 + $0x100] sm:$0xff]
        %v544 = vld [vmem:[%s2 + $0x108] sm:$0xff]
        %v545 = vld [vmem:[%s2 + $0x110] sm:$0xff]
        %v546 = vld [vmem:[%s2 + $0x118] sm:$0xff]
        %v547 = vld [vmem:[%s2 + $0x120] sm:$0xff]
        %v548 = vld [vmem:[%s2 + $0x128] sm:$0xff]
        %v549 = vld [vmem:[%s2 + $0x130] sm:$0xff]
        %v550 = vld [vmem:[%s2 + $0x138] sm:$0xff]
        %v551 = vld [vmem:[%s2 + $0x140] sm:$0xff]
        %v552 = vld [vmem:[%s2 + $0x148] sm:$0xff]
        %v553 = vld [vmem:[%s2 + $0x150] sm:$0xff]
        %v554 = vld [vmem:[%s2 + $0x158] sm:$0xff]
        %v555 = vld [vmem:[%s2 + $0x160] sm:$0xff]
        %v556 = vld [vmem:[%s2 + $0x168] sm:$0xff]
        %v557 = vld [vmem:[%s2 + $0x170] sm:$0xff]
        %v558 = vld [vmem:[%s2 + $0x178] sm:$0xff]
        %v559 = vld [vmem:[%s2 + $0x180] sm:$0xff]
        %v560 = vld [vmem:[%s2 + $0x188] sm:$0xff]
        %v561 = vld [vmem:[%s2 + $0x190] sm:$0xff]
        %v562 = vld [vmem:[%s2 + $0x198] sm:$0xff]
        %v563 = vld [vmem:[%s2 + $0x1a0] sm:$0xff]
        %v564 = vld [vmem:[%s2 + $0x1a8] sm:$0xff]
        %v565 = vld [vmem:[%s2 + $0x1b0] sm:$0xff]
        %v566 = vld [vmem:[%s2 + $0x1b8] sm:$0xff]
        %v567 = vld [vmem:[%s2 + $0x1c0] sm:$0xff]
        %v568 = vld [vmem:[%s2 + $0x1c8] sm:$0xff]
        %v569 = vld [vmem:[%s2 + $0x1d0] sm:$0xff]
        %v570 = vld [vmem:[%s2 + $0x1d8] sm:$0xff]
        %v571 = vld [vmem:[%s2 + $0x1e0] sm:$0xff]
        %v572 = vld [vmem:[%s2 + $0x1e8] sm:$0xff]
        %v573 = vld [vmem:[%s2 + $0x1f0] sm:$0xff]
        %v574 = vld [vmem:[%s2 + $0x1f8] sm:$0xff]
        %v575 = vld [vmem:[%s3] sm:$0xf]
        %v577 = vlaneseq
        %v578 = vshrl.u32 %v577, 7
        %v579 = vsub.s32 0, %v578
        %v580 = vrot.slane %v575, %v579
        %v581 = vlaneseq
        %v582 = vshrl.u32 %v581, 7
        %v583 = vsub.s32 1, %v582
        %v584 = vrot.slane %v575, %v583
        %v585 = vlaneseq
        %v586 = vshrl.u32 %v585, 7
        %v587 = vsub.s32 2, %v586
        %v588 = vrot.slane %v575, %v587
        %v589 = vlaneseq
        %v590 = vshrl.u32 %v589, 7
        %v591 = vsub.s32 3, %v590
        %v592 = vrot.slane %v575, %v591
        %v598 = vunpack.c.l.b16 %v510
        %v599 = vunpack.c.h.b16 %v510
        %v600 = vpack.c.b16 %v598, %v598
        %v601 = vpack.c.b16 %v599, %v599
        %v668 = vunpack.c.l.b16 %v511
        %v669 = vunpack.c.h.b16 %v511
        %v670 = vunpack.c.l.b16 %v512
        %v671 = vunpack.c.h.b16 %v512
        %v672 = vunpack.c.l.b16 %v513
        %v673 = vunpack.c.h.b16 %v513
        %v674 = vunpack.c.l.b16 %v514
        %v675 = vunpack.c.h.b16 %v514
        %v676 = vunpack.c.l.b16 %v515
        %v677 = vunpack.c.h.b16 %v515
        %v678 = vunpack.c.l.b16 %v516
        %v679 = vunpack.c.h.b16 %v516
        %v680 = vunpack.c.l.b16 %v517
        %v681 = vunpack.c.h.b16 %v517
        %v682 = vunpack.c.l.b16 %v518
        %v683 = vunpack.c.h.b16 %v518
        %v684 = vunpack.c.l.b16 %v519
        %v685 = vunpack.c.h.b16 %v519
        %v686 = vunpack.c.l.b16 %v520
        %v687 = vunpack.c.h.b16 %v520
        %v688 = vunpack.c.l.b16 %v521
        %v689 = vunpack.c.h.b16 %v521
        %v690 = vunpack.c.l.b16 %v522
        %v691 = vunpack.c.h.b16 %v522
        %v692 = vunpack.c.l.b16 %v523
        %v693 = vunpack.c.h.b16 %v523
        %v694 = vunpack.c.l.b16 %v524
        %v695 = vunpack.c.h.b16 %v524
        %v696 = vunpack.c.l.b16 %v525
        %v697 = vunpack.c.h.b16 %v525
        %v698 = vunpack.c.l.b16 %v526
        %v699 = vunpack.c.h.b16 %v526
        %v700 = vunpack.c.l.b16 %v527
        %v701 = vunpack.c.h.b16 %v527
        %v702 = vunpack.c.l.b16 %v528
        %v703 = vunpack.c.h.b16 %v528
        %v704 = vunpack.c.l.b16 %v529
        %v705 = vunpack.c.h.b16 %v529
        %v706 = vunpack.c.l.b16 %v530
        %v707 = vunpack.c.h.b16 %v530
        %v708 = vunpack.c.l.b16 %v531
        %v709 = vunpack.c.h.b16 %v531
        %v710 = vunpack.c.l.b16 %v532
        %v711 = vunpack.c.h.b16 %v532
        %v712 = vunpack.c.l.b16 %v533
        %v713 = vunpack.c.h.b16 %v533
        %v714 = vunpack.c.l.b16 %v534
        %v715 = vunpack.c.h.b16 %v534
        %v716 = vunpack.c.l.b16 %v535
        %v717 = vunpack.c.h.b16 %v535
        %v718 = vunpack.c.l.b16 %v536
        %v719 = vunpack.c.h.b16 %v536
        %v720 = vunpack.c.l.b16 %v537
        %v721 = vunpack.c.h.b16 %v537
        %v722 = vunpack.c.l.b16 %v538
        %v723 = vunpack.c.h.b16 %v538
        %v724 = vunpack.c.l.b16 %v539
        %v725 = vunpack.c.h.b16 %v539
        %v726 = vunpack.c.l.b16 %v540
        %v727 = vunpack.c.h.b16 %v540
        %v728 = vunpack.c.l.b16 %v541
        %v729 = vunpack.c.h.b16 %v541
        %v730 = vunpack.c.l.b16 %v542
        %v731 = vunpack.c.h.b16 %v542
        %v732 = vunpack.c.l.b16 %v543
        %v733 = vunpack.c.h.b16 %v543
        %v734 = vunpack.c.l.b16 %v544
        %v735 = vunpack.c.h.b16 %v544
        %v736 = vunpack.c.l.b16 %v545
        %v737 = vunpack.c.h.b16 %v545
        %v738 = vunpack.c.l.b16 %v546
        %v739 = vunpack.c.h.b16 %v546
        %v740 = vunpack.c.l.b16 %v547
        %v741 = vunpack.c.h.b16 %v547
        %v742 = vunpack.c.l.b16 %v548
        %v743 = vunpack.c.h.b16 %v548
        %v744 = vunpack.c.l.b16 %v549
        %v745 = vunpack.c.h.b16 %v549
        %v746 = vunpack.c.l.b16 %v550
        %v747 = vunpack.c.h.b16 %v550
        %v748 = vunpack.c.l.b16 %v551
        %v749 = vunpack.c.h.b16 %v551
        %v750 = vunpack.c.l.b16 %v552
        %v751 = vunpack.c.h.b16 %v552
        %v752 = vunpack.c.l.b16 %v553
        %v753 = vunpack.c.h.b16 %v553
        %v754 = vunpack.c.l.b16 %v554
        %v755 = vunpack.c.h.b16 %v554
        %v756 = vunpack.c.l.b16 %v555
        %v757 = vunpack.c.h.b16 %v555
        %v758 = vunpack.c.l.b16 %v556
        %v759 = vunpack.c.h.b16 %v556
        %v760 = vunpack.c.l.b16 %v557
        %v761 = vunpack.c.h.b16 %v557
        %v762 = vunpack.c.l.b16 %v558
        %v763 = vunpack.c.h.b16 %v558
        %v764 = vunpack.c.l.b16 %v559
        %v765 = vunpack.c.h.b16 %v559
        %v766 = vunpack.c.l.b16 %v560
        %v767 = vunpack.c.h.b16 %v560
        %v768 = vunpack.c.l.b16 %v561
        %v769 = vunpack.c.h.b16 %v561
        %v770 = vunpack.c.l.b16 %v562
        %v771 = vunpack.c.h.b16 %v562
        %v772 = vunpack.c.l.b16 %v563
        %v773 = vunpack.c.h.b16 %v563
        %v774 = vunpack.c.l.b16 %v564
        %v775 = vunpack.c.h.b16 %v564
        %v776 = vunpack.c.l.b16 %v565
        %v777 = vunpack.c.h.b16 %v565
        %v778 = vunpack.c.l.b16 %v566
        %v779 = vunpack.c.h.b16 %v566
        %v780 = vunpack.c.l.b16 %v567
        %v781 = vunpack.c.h.b16 %v567
        %v782 = vunpack.c.l.b16 %v568
        %v783 = vunpack.c.h.b16 %v568
        %v784 = vunpack.c.l.b16 %v569
        %v785 = vunpack.c.h.b16 %v569
        %v786 = vunpack.c.l.b16 %v570
        %v787 = vunpack.c.h.b16 %v570
        %v788 = vunpack.c.l.b16 %v571
        %v789 = vunpack.c.h.b16 %v571
        %v790 = vunpack.c.l.b16 %v572
        %v791 = vunpack.c.h.b16 %v572
        %v792 = vunpack.c.l.b16 %v573
        %v793 = vunpack.c.h.b16 %v573
        %v794 = vunpack.c.l.b16 %v574
        %v795 = vunpack.c.h.b16 %v574
        %v796 = vpack.c.b16 %v672, %v668
        %v797 = vpack.c.b16 %v673, %v669
        %v798 = vpack.c.b16 %v674, %v670
        %v799 = vpack.c.b16 %v675, %v671
        %v800 = vpack.c.b16 %v680, %v676
        %v801 = vpack.c.b16 %v681, %v677
        %v802 = vpack.c.b16 %v682, %v678
        %v803 = vpack.c.b16 %v683, %v679
        %v804 = vpack.c.b16 %v688, %v684
        %v805 = vpack.c.b16 %v689, %v685
        %v806 = vpack.c.b16 %v690, %v686
        %v807 = vpack.c.b16 %v691, %v687
        %v808 = vpack.c.b16 %v696, %v692
        %v809 = vpack.c.b16 %v697, %v693
        %v810 = vpack.c.b16 %v698, %v694
        %v811 = vpack.c.b16 %v699, %v695
        %v812 = vpack.c.b16 %v704, %v700
        %v813 = vpack.c.b16 %v705, %v701
        %v814 = vpack.c.b16 %v706, %v702
        %v815 = vpack.c.b16 %v707, %v703
        %v816 = vpack.c.b16 %v712, %v708
        %v817 = vpack.c.b16 %v713, %v709
        %v818 = vpack.c.b16 %v714, %v710
        %v819 = vpack.c.b16 %v715, %v711
        %v820 = vpack.c.b16 %v720, %v716
        %v821 = vpack.c.b16 %v721, %v717
        %v822 = vpack.c.b16 %v722, %v718
        %v823 = vpack.c.b16 %v723, %v719
        %v824 = vpack.c.b16 %v728, %v724
        %v825 = vpack.c.b16 %v729, %v725
        %v826 = vpack.c.b16 %v730, %v726
        %v827 = vpack.c.b16 %v731, %v727
        %v828 = vpack.c.b16 %v736, %v732
        %v829 = vpack.c.b16 %v737, %v733
        %v830 = vpack.c.b16 %v738, %v734
        %v831 = vpack.c.b16 %v739, %v735
        %v832 = vpack.c.b16 %v744, %v740
        %v833 = vpack.c.b16 %v745, %v741
        %v834 = vpack.c.b16 %v746, %v742
        %v835 = vpack.c.b16 %v747, %v743
        %v836 = vpack.c.b16 %v752, %v748
        %v837 = vpack.c.b16 %v753, %v749
        %v838 = vpack.c.b16 %v754, %v750
        %v839 = vpack.c.b16 %v755, %v751
        %v840 = vpack.c.b16 %v760, %v756
        %v841 = vpack.c.b16 %v761, %v757
        %v842 = vpack.c.b16 %v762, %v758
        %v843 = vpack.c.b16 %v763, %v759
        %v844 = vpack.c.b16 %v768, %v764
        %v845 = vpack.c.b16 %v769, %v765
        %v846 = vpack.c.b16 %v770, %v766
        %v847 = vpack.c.b16 %v771, %v767
        %v848 = vpack.c.b16 %v776, %v772
        %v849 = vpack.c.b16 %v777, %v773
        %v850 = vpack.c.b16 %v778, %v774
        %v851 = vpack.c.b16 %v779, %v775
        %v852 = vpack.c.b16 %v784, %v780
        %v853 = vpack.c.b16 %v785, %v781
        %v854 = vpack.c.b16 %v786, %v782
        %v855 = vpack.c.b16 %v787, %v783
        %v856 = vpack.c.b16 %v792, %v788
        %v857 = vpack.c.b16 %v793, %v789
        %v858 = vpack.c.b16 %v794, %v790
        %v859 = vpack.c.b16 %v795, %v791
        %924 = vmatprep.subr.bf16.mxu0 %v797
        %925 = vmatpush1.bf16.msra.mxu0 %v796
        %926 = vmatprep.subr.bf16.mxu0 %v801
        %927 = vmatpush1.bf16.msra.mxu0 %v800
        %928 = vmatprep.subr.bf16.mxu0 %v805
        %929 = vmatpush1.bf16.msra.mxu0 %v804
        %930 = vmatprep.subr.bf16.mxu0 %v809
        %931 = vmatpush1.bf16.msra.mxu0 %v808
        %932 = vmatprep.subr.bf16.mxu0 %v813
        %933 = vmatpush1.bf16.msra.mxu0 %v812
        %934 = vmatprep.subr.bf16.mxu0 %v817
        %935 = vmatpush1.bf16.msra.mxu0 %v816
        %936 = vmatprep.subr.bf16.mxu0 %v821
        %937 = vmatpush1.bf16.msra.mxu0 %v820
        %938 = vmatprep.subr.bf16.mxu0 %v825
        %939 = vmatpush1.bf16.msra.mxu0 %v824
        %940 = vmatprep.subr.bf16.mxu0 %v829
        %941 = vmatpush1.bf16.msra.mxu0 %v828
        %942 = vmatprep.subr.bf16.mxu0 %v833
        %943 = vmatpush1.bf16.msra.mxu0 %v832
        %944 = vmatprep.subr.bf16.mxu0 %v837
        %945 = vmatpush1.bf16.msra.mxu0 %v836
        %946 = vmatprep.subr.bf16.mxu0 %v841
        %947 = vmatpush1.bf16.msra.mxu0 %v840
        %948 = vmatprep.subr.bf16.mxu0 %v845
        %949 = vmatpush1.bf16.msra.mxu0 %v844
        %950 = vmatprep.subr.bf16.mxu0 %v849
        %951 = vmatpush1.bf16.msra.mxu0 %v848
        %952 = vmatprep.subr.bf16.mxu0 %v853
        %953 = vmatpush1.bf16.msra.mxu0 %v852
        %954 = vmatprep.subr.bf16.mxu0 %v857
        %955 = vmatpush1.bf16.msra.mxu0 %v856
        %956 = vmatprep.mubr.bf16.mxu0 %v601
        %957 = vmatmul.mubr.bf16.gmra.mrb[0].mxu0 %v600
        %v958 = vpop.f32.mrb[0].mxu0
        %v959 = vadd.f32 %v580, %v958
        %v960 = vpop.f32.mrb[0].mxu0
        %v961 = vadd.f32 %v584, %v960
        %v962 = vpop.f32.mrb[0].mxu0
        %v963 = vpop.f32.mrb[0].mxu0
        %964 = vdwg.mxu0
        %965 = vmatprep.subr.bf16.mxu0 %v799
        %966 = vmatpush1.bf16.msra.mxu0 %v798
        %967 = vmatprep.subr.bf16.mxu0 %v803
        %968 = vmatpush1.bf16.msra.mxu0 %v802
        %969 = vmatprep.subr.bf16.mxu0 %v807
        %970 = vmatpush1.bf16.msra.mxu0 %v806
        %971 = vmatprep.subr.bf16.mxu0 %v811
        %972 = vmatpush1.bf16.msra.mxu0 %v810
        %973 = vmatprep.subr.bf16.mxu0 %v815
        %974 = vmatpush1.bf16.msra.mxu0 %v814
        %975 = vmatprep.subr.bf16.mxu0 %v819
        %976 = vmatpush1.bf16.msra.mxu0 %v818
        %977 = vmatprep.subr.bf16.mxu0 %v823
        %978 = vmatpush1.bf16.msra.mxu0 %v822
        %979 = vmatprep.subr.bf16.mxu0 %v827
        %980 = vmatpush1.bf16.msra.mxu0 %v826
        %981 = vmatprep.subr.bf16.mxu0 %v831
        %982 = vmatpush1.bf16.msra.mxu0 %v830
        %983 = vmatprep.subr.bf16.mxu0 %v835
        %984 = vmatpush1.bf16.msra.mxu0 %v834
        %985 = vmatprep.subr.bf16.mxu0 %v839
        %986 = vmatpush1.bf16.msra.mxu0 %v838
        %987 = vmatprep.subr.bf16.mxu0 %v843
        %988 = vmatpush1.bf16.msra.mxu0 %v842
        %989 = vmatprep.subr.bf16.mxu0 %v847
        %990 = vmatpush1.bf16.msra.mxu0 %v846
        %991 = vmatprep.subr.bf16.mxu0 %v851
        %992 = vmatpush1.bf16.msra.mxu0 %v850
        %993 = vmatprep.subr.bf16.mxu0 %v855
        %994 = vmatpush1.bf16.msra.mxu0 %v854
        %995 = vmatprep.subr.bf16.mxu0 %v859
        %996 = vmatpush1.bf16.msra.mxu0 %v858
        %997 = vmatprep.mubr.bf16.mxu0 %v601
        %998 = vmatmul.mubr.bf16.gmra.mrb[0].mxu0 %v600
        %v999 = vpop.f32.mrb[0].mxu0
        %v1000 = vadd.f32 %v588, %v999
        %v1001 = vpop.f32.mrb[0].mxu0
        %v1002 = vadd.f32 %v592, %v1001
        %v1003 = vpop.f32.mrb[0].mxu0
        %v1004 = vpop.f32.mrb[0].mxu0
        %1005 = vdwg.mxu0
        %v1006 = vxor.u32 %v959, 2147483648
        %v1007 = vmul.f32 %v1006, 1.442695
        %v1008 = vpow.pop %v1007
        %v1009 = vadd.f32 %v1008, 1.0
        %v1010 = vrcp.pop %v1009
        %v1011 = vmul.f32 1.0, %v1010
        %v1012 = vxor.u32 %v961, 2147483648
        %v1013 = vmul.f32 %v1012, 1.442695
        %v1014 = vpow.pop %v1013
        %v1015 = vadd.f32 %v1014, 1.0
        %v1016 = vrcp.pop %v1015
        %v1017 = vmul.f32 1.0, %v1016
        %v1018 = vtanh.pop %v1000
        %v1019 = vxor.u32 %v1002, 2147483648
        %v1020 = vmul.f32 %v1019, 1.442695
        %v1021 = vpow.pop %v1020
        %v1022 = vadd.f32 %v1021, 1.0
        %v1023 = vrcp.pop %v1022
        %v1024 = vmul.f32 1.0, %v1023
        %v1025 = vmul.f32 %v1017, %v492
        %v1026 = vmul.f32 %v1011, %v1018
        %v1027 = vadd.f32 %v1025, %v1026
        %v1028 = vtanh.pop %v1027
        %v1029 = vmul.f32 %v1024, %v1028
        %v1030 = vpack.c.bf16 %v1029, %v1029
        %1031 = vst [vmem:[#allocation6 + $0x4] sm:$0xf] %v1030
        %v1032 = vld [vmem:[#allocation6] sm:$0xff]
        %v1033 = vld [vmem:[%s4] sm:$0xf]
        %v1034 = vld [vmem:[%s4 + $0x4] sm:$0xf]
        %v1035 = vld [vmem:[%s4 + $0x8] sm:$0xf]
        %v1036 = vld [vmem:[%s4 + $0xc] sm:$0xf]
        %v1037 = vld [vmem:[%s4 + $0x10] sm:$0xf]
        %v1038 = vld [vmem:[%s4 + $0x14] sm:$0xf]
        %v1039 = vld [vmem:[%s4 + $0x18] sm:$0xf]
        %v1040 = vld [vmem:[%s4 + $0x1c] sm:$0xf]
        %v1041 = vld [vmem:[%s4 + $0x20] sm:$0xf]
        %v1042 = vld [vmem:[%s4 + $0x24] sm:$0xf]
        %v1043 = vld [vmem:[%s4 + $0x28] sm:$0xf]
        %v1044 = vld [vmem:[%s4 + $0x2c] sm:$0xf]
        %v1045 = vld [vmem:[%s4 + $0x30] sm:$0xf]
        %v1046 = vld [vmem:[%s4 + $0x34] sm:$0xf]
        %v1047 = vld [vmem:[%s4 + $0x38] sm:$0xf]
        %v1048 = vld [vmem:[%s4 + $0x3c] sm:$0xf]
        %v1049 = vld [vmem:[%s4 + $0x40] sm:$0xf]
        %v1050 = vld [vmem:[%s4 + $0x44] sm:$0xf]
        %v1051 = vld [vmem:[%s4 + $0x48] sm:$0xf]
        %v1052 = vld [vmem:[%s4 + $0x4c] sm:$0xf]
        %v1053 = vld [vmem:[%s4 + $0x50] sm:$0xf]
        %v1054 = vld [vmem:[%s4 + $0x54] sm:$0xf]
        %v1055 = vld [vmem:[%s4 + $0x58] sm:$0xf]
        %v1056 = vld [vmem:[%s4 + $0x5c] sm:$0xf]
        %v1057 = vld [vmem:[%s4 + $0x60] sm:$0xf]
        %v1058 = vld [vmem:[%s4 + $0x64] sm:$0xf]
        %v1059 = vld [vmem:[%s4 + $0x68] sm:$0xf]
        %v1060 = vld [vmem:[%s4 + $0x6c] sm:$0xf]
        %v1061 = vld [vmem:[%s4 + $0x70] sm:$0xf]
        %v1062 = vld [vmem:[%s4 + $0x74] sm:$0xf]
        %v1063 = vld [vmem:[%s4 + $0x78] sm:$0xf]
        %v1064 = vld [vmem:[%s4 + $0x7c] sm:$0xf]
        %v1065 = vld [vmem:[%s5] sm:$0x1]
        %v1067 = vlaneseq
        %v1068 = vshrl.u32 %v1067, 7
        %v1069 = vsub.s32 0, %v1068
        %v1070 = vrot.slane %v1065, %v1069
        %v1073 = vunpack.c.l.b16 %v1032
        %v1074 = vunpack.c.h.b16 %v1032
        %v1075 = vpack.c.b16 %v1073, %v1073
        %v1076 = vpack.c.b16 %v1074, %v1074
        %v1111 = vunpack.c.l.b16 %v1033
        %v1112 = vunpack.c.l.b16 %v1034
        %v1113 = vunpack.c.l.b16 %v1035
        %v1114 = vunpack.c.l.b16 %v1036
        %v1115 = vunpack.c.l.b16 %v1037
        %v1116 = vunpack.c.l.b16 %v1038
        %v1117 = vunpack.c.l.b16 %v1039
        %v1118 = vunpack.c.l.b16 %v1040
        %v1119 = vunpack.c.l.b16 %v1041
        %v1120 = vunpack.c.l.b16 %v1042
        %v1121 = vunpack.c.l.b16 %v1043
        %v1122 = vunpack.c.l.b16 %v1044
        %v1123 = vunpack.c.l.b16 %v1045
        %v1124 = vunpack.c.l.b16 %v1046
        %v1125 = vunpack.c.l.b16 %v1047
        %v1126 = vunpack.c.l.b16 %v1048
        %v1127 = vunpack.c.l.b16 %v1049
        %v1128 = vunpack.c.l.b16 %v1050
        %v1129 = vunpack.c.l.b16 %v1051
        %v1130 = vunpack.c.l.b16 %v1052
        %v1131 = vunpack.c.l.b16 %v1053
        %v1132 = vunpack.c.l.b16 %v1054
        %v1133 = vunpack.c.l.b16 %v1055
        %v1134 = vunpack.c.l.b16 %v1056
        %v1135 = vunpack.c.l.b16 %v1057
        %v1136 = vunpack.c.l.b16 %v1058
        %v1137 = vunpack.c.l.b16 %v1059
        %v1138 = vunpack.c.l.b16 %v1060
        %v1139 = vunpack.c.l.b16 %v1061
        %v1140 = vunpack.c.l.b16 %v1062
        %v1141 = vunpack.c.l.b16 %v1063
        %v1142 = vunpack.c.l.b16 %v1064
        %v1143 = vpack.c.b16 %v1112, %v1111
        %v1144 = vpack.c.b16 %v1114, %v1113
        %v1145 = vpack.c.b16 %v1116, %v1115
        %v1146 = vpack.c.b16 %v1118, %v1117
        %v1147 = vpack.c.b16 %v1120, %v1119
        %v1148 = vpack.c.b16 %v1122, %v1121
        %v1149 = vpack.c.b16 %v1124, %v1123
        %v1150 = vpack.c.b16 %v1126, %v1125
        %v1151 = vpack.c.b16 %v1128, %v1127
        %v1152 = vpack.c.b16 %v1130, %v1129
        %v1153 = vpack.c.b16 %v1132, %v1131
        %v1154 = vpack.c.b16 %v1134, %v1133
        %v1155 = vpack.c.b16 %v1136, %v1135
        %v1156 = vpack.c.b16 %v1138, %v1137
        %v1157 = vpack.c.b16 %v1140, %v1139
        %v1158 = vpack.c.b16 %v1142, %v1141
        %1175 = vmatprep.subr.bf16.mxu0 0
        %1176 = vmatpush1.bf16.msra.mxu0 %v1143
        %1177 = vmatprep.subr.bf16.mxu0 0
        %1178 = vmatpush1.bf16.msra.mxu0 %v1144
        %1179 = vmatprep.subr.bf16.mxu0 0
        %1180 = vmatpush1.bf16.msra.mxu0 %v1145
        %1181 = vmatprep.subr.bf16.mxu0 0
        %1182 = vmatpush1.bf16.msra.mxu0 %v1146
        %1183 = vmatprep.subr.bf16.mxu0 0
        %1184 = vmatpush1.bf16.msra.mxu0 %v1147
        %1185 = vmatprep.subr.bf16.mxu0 0
        %1186 = vmatpush1.bf16.msra.mxu0 %v1148
        %1187 = vmatprep.subr.bf16.mxu0 0
        %1188 = vmatpush1.bf16.msra.mxu0 %v1149
        %1189 = vmatprep.subr.bf16.mxu0 0
        %1190 = vmatpush1.bf16.msra.mxu0 %v1150
        %1191 = vmatprep.subr.bf16.mxu0 0
        %1192 = vmatpush1.bf16.msra.mxu0 %v1151
        %1193 = vmatprep.subr.bf16.mxu0 0
        %1194 = vmatpush1.bf16.msra.mxu0 %v1152
        %1195 = vmatprep.subr.bf16.mxu0 0
        %1196 = vmatpush1.bf16.msra.mxu0 %v1153
        %1197 = vmatprep.subr.bf16.mxu0 0
        %1198 = vmatpush1.bf16.msra.mxu0 %v1154
        %1199 = vmatprep.subr.bf16.mxu0 0
        %1200 = vmatpush1.bf16.msra.mxu0 %v1155
        %1201 = vmatprep.subr.bf16.mxu0 0
        %1202 = vmatpush1.bf16.msra.mxu0 %v1156
        %1203 = vmatprep.subr.bf16.mxu0 0
        %1204 = vmatpush1.bf16.msra.mxu0 %v1157
        %1205 = vmatprep.subr.bf16.mxu0 0
        %1206 = vmatpush1.bf16.msra.mxu0 %v1158
        %1207 = vmatprep.mubr.bf16.mxu0 %v1076
        %1208 = vmatmul.mubr.bf16.gmra.mrb[0].mxu0 %v1075
        %v1209 = vpop.f32.mrb[0].mxu0
        %v1210 = vadd.f32 %v1070, %v1209
        %v1211 = vpop.f32.mrb[0].mxu0
        %v1212 = vpop.f32.mrb[0].mxu0
        %v1213 = vpop.f32.mrb[0].mxu0
        %1214 = vdwg.mxu0
        %v1215 = vmax.f32 %v1210, 0.0
        %v1216 = vpack.c.bf16 %v1215, %v1215
        %v1217 = vld [vmem:[%s6] sm:$0xf]
        %v1218 = vld [vmem:[%s6 + $0x4] sm:$0xf]
        %v1219 = vld [vmem:[%s6 + $0x8] sm:$0xf]
        %v1220 = vld [vmem:[%s6 + $0xc] sm:$0xf]
        %v1221 = vld [vmem:[%s6 + $0x10] sm:$0xf]
        %v1222 = vld [vmem:[%s6 + $0x14] sm:$0xf]
        %v1223 = vld [vmem:[%s6 + $0x18] sm:$0xf]
        %v1224 = vld [vmem:[%s6 + $0x1c] sm:$0xf]
        %v1225 = vld [vmem:[%s6 + $0x20] sm:$0xf]
        %v1226 = vld [vmem:[%s6 + $0x24] sm:$0xf]
        %v1227 = vld [vmem:[%s6 + $0x28] sm:$0xf]
        %v1228 = vld [vmem:[%s6 + $0x2c] sm:$0xf]
        %v1229 = vld [vmem:[%s6 + $0x30] sm:$0xf]
        %v1230 = vld [vmem:[%s6 + $0x34] sm:$0xf]
        %v1231 = vld [vmem:[%s6 + $0x38] sm:$0xf]
        %v1232 = vld [vmem:[%s6 + $0x3c] sm:$0xf]
        %v1233 = vld [vmem:[%s7] sm:$0x1]
        %v1235 = vlaneseq
        %v1236 = vshrl.u32 %v1235, 7
        %v1237 = vsub.s32 0, %v1236
        %v1238 = vrot.slane %v1233, %v1237
        %v1256 = vunpack.c.l.b16 %v1217
        %v1257 = vunpack.c.l.b16 %v1218
        %v1258 = vunpack.c.l.b16 %v1219
        %v1259 = vunpack.c.l.b16 %v1220
        %v1260 = vunpack.c.l.b16 %v1221
        %v1261 = vunpack.c.l.b16 %v1222
        %v1262 = vunpack.c.l.b16 %v1223
        %v1263 = vunpack.c.l.b16 %v1224
        %v1264 = vunpack.c.l.b16 %v1225
        %v1265 = vunpack.c.l.b16 %v1226
        %v1266 = vunpack.c.l.b16 %v1227
        %v1267 = vunpack.c.l.b16 %v1228
        %v1268 = vunpack.c.l.b16 %v1229
        %v1269 = vunpack.c.l.b16 %v1230
        %v1270 = vunpack.c.l.b16 %v1231
        %v1271 = vunpack.c.l.b16 %v1232
        %v1272 = vpack.c.b16 %v1257, %v1256
        %v1273 = vpack.c.b16 %v1259, %v1258
        %v1274 = vpack.c.b16 %v1261, %v1260
        %v1275 = vpack.c.b16 %v1263, %v1262
        %v1276 = vpack.c.b16 %v1265, %v1264
        %v1277 = vpack.c.b16 %v1267, %v1266
        %v1278 = vpack.c.b16 %v1269, %v1268
        %v1279 = vpack.c.b16 %v1271, %v1270
        %1288 = vmatprep.subr.bf16.mxu0 0
        %1289 = vmatpush1.bf16.msra.mxu0 %v1272
        %1290 = vmatprep.subr.bf16.mxu0 0
        %1291 = vmatpush1.bf16.msra.mxu0 %v1273
        %1292 = vmatprep.subr.bf16.mxu0 0
        %1293 = vmatpush1.bf16.msra.mxu0 %v1274
        %1294 = vmatprep.subr.bf16.mxu0 0
        %1295 = vmatpush1.bf16.msra.mxu0 %v1275
        %1296 = vmatprep.subr.bf16.mxu0 0
        %1297 = vmatpush1.bf16.msra.mxu0 %v1276
        %1298 = vmatprep.subr.bf16.mxu0 0
        %1299 = vmatpush1.bf16.msra.mxu0 %v1277
        %1300 = vmatprep.subr.bf16.mxu0 0
        %1301 = vmatpush1.bf16.msra.mxu0 %v1278
        %1302 = vmatprep.subr.bf16.mxu0 0
        %1303 = vmatpush1.bf16.msra.mxu0 %v1279
        %1304 = vmatprep.subr.bf16.mxu0 0
        %1305 = vmatpush1.bf16.msra.mxu0 0
        %1306 = vmatprep.subr.bf16.mxu0 0
        %1307 = vmatpush1.bf16.msra.mxu0 0
        %1308 = vmatprep.subr.bf16.mxu0 0
        %1309 = vmatpush1.bf16.msra.mxu0 0
        %1310 = vmatprep.subr.bf16.mxu0 0
        %1311 = vmatpush1.bf16.msra.mxu0 0
        %1312 = vmatprep.subr.bf16.mxu0 0
        %1313 = vmatpush1.bf16.msra.mxu0 0
        %1314 = vmatprep.subr.bf16.mxu0 0
        %1315 = vmatpush1.bf16.msra.mxu0 0
        %1316 = vmatprep.subr.bf16.mxu0 0
        %1317 = vmatpush1.bf16.msra.mxu0 0
        %1318 = vmatprep.subr.bf16.mxu0 0
        %1319 = vmatpush1.bf16.msra.mxu0 0
        %1320 = vmatprep.mubr.bf16.mxu0 0
        %1321 = vmatmul.mubr.bf16.gmra.mrb[0].mxu0 %v1216
        %v1322 = vpop.f32.mrb[0].mxu0
        %v1323 = vadd.f32 %v1238, %v1322
        %v1324 = vpop.f32.mrb[0].mxu0
        %v1325 = vpop.f32.mrb[0].mxu0
        %v1326 = vpop.f32.mrb[0].mxu0
        %1327 = vdwg.mxu0
        %1328 = vmax.xlane.f32.xlu0 %v1323
        %v1329 = vpop.xlane.xlu0 %1328
        %vm1330 = vcmp.eq.f32.partialorder %v1323, %v1329
        %v1331 = vsel %vm1330, %v494, 128
        %v1332 = vand.u32 %v1331, 65535
        %v1333 = vshra.s32 %v1331, 16
        %v1334 = vcvt.s32.f32 %v1332
        %v1335 = vcvt.s32.f32 %v1333
        %1336 = vmin.xlane.f32.xlu0 %v1335
        %v1337 = vpop.xlane.xlu0 %1336
        %vm1338 = vcmp.eq.f32.partialorder %v1335, %v1337
        %v1339 = vsel %vm1338, %v1334, inf
        %1340 = vmin.xlane.f32.xlu0 %v1339
        %v1341 = vpop.xlane.xlu0 %1340
        %v1342 = vcvt.f32.s32 %v1341
        %v1343 = vcvt.f32.s32 %v1337
        %v1344 = vshll.u32 %v1343, 16
        %v1345 = vadd.s32 %v1344, %v1342
        %v1346 = vld [vmem:[#allocation3] sm:$0xff]
        %vm1347 = vcmp.eq.s32.totalorder %v1345, 7
        %v1348 = vsel %vm1347, 1, 0
        %vm1349 = vcmp.gt.s32.totalorder %v1346, %v1348
        %v1350 = vsel %vm1349, %v1346, %v1348
        %1351 = vst.msk [vmem:[#allocation3] sm:$0xff] %vm468, %v1350
        %v1352 = vsel %vm468, %v1350, 2147483647
        %v1353 = vrot.slane %v1352, 4
        %vm1354 = vcmp.lt.s32.totalorder %v1352, %v1353
        %v1355 = vsel %vm1354, %v1352, %v1353
        %v1356 = vrot.slane %v1355, 2
        %vm1357 = vcmp.lt.s32.totalorder %v1355, %v1356
        %v1358 = vsel %vm1357, %v1355, %v1356
        %v1359 = vrot.slane %v1358, 1
        %vm1360 = vcmp.lt.s32.totalorder %v1358, %v1359
        %v1361 = vsel %vm1360, %v1358, %v1359
        %1362 = vst.msk [vmem:[#allocation4] sm:$0x1] %vm480, %v1361
        %vm1363 = vcmp.eq.s32.totalorder %v1361, 0
        %v1364 = vld [vmem:[%s444] sm:$0xff]
        %v1365 = vsel %vm468, %v1364, 0
        %v1366 = vrot.slane %v1365, 4
        %v1367 = vadd.s32 %v1365, %v1366
        %v1368 = vrot.slane %v1367, 2
        %v1369 = vadd.s32 %v1367, %v1368
        %v1370 = vrot.slane %v1369, 1
        %v1371 = vadd.s32 %v1369, %v1370
        %vm1372 = vcmp.gt.s32.totalorder %v1371, 0
        %vm1373 = vmxor %vm1363, 1
        %vm1374 = vcmp.gt.s32.totalorder %v1350, 0
        %v1375 = vsel %vm1372, 1, 0
        %vm1376 = vcmp.eq.s32.totalorder %v1375, 1
        %vm1377 = vmand %vm1374, %vm1376
        %v1378 = vsel %vm1373, 1, 0
        %vm1379 = vcmp.eq.s32.totalorder %v1378, 1
        %vm1380 = vmor %vm1379, %vm1377
        %v1381 = vsel %vm1380, 1, 0
        %1382 = vset.pattern.permute.xlu0 0
        %1383 = vperm.xlu0 %1382, %v1381
        %v1384 = vpop.permute.xlu0 %1383
        %vm1385 = vcmp.eq.s32.totalorder %v1384, 1
        %v1386 = vsel %vm1385, %v491, %v1029
        %1387 = vst [vmem:[%s448] sm:$0xff] %v1386
        %v1388 = vsel %vm1385, %v492, %v1027
        %1389 = vst [vmem:[%s452] sm:$0xff] %v1388
        %v1390 = vsel %vm1380, %v490, %v1345
        %1391 = vst.msk [vmem:[#allocation2] sm:$0xff] %vm468, %v1390
        %vm1392 = vcmp.eq.s32.totalorder %v1350, 0
        %v1393 = vsel %vm1363, 1, 0
        %vm1394 = vcmp.eq.s32.totalorder %v1393, 1
        %vm1395 = vmand %vm1394, %vm1392
        %1396 = vset.pattern.permute.xlu0 0
        %1397 = vperm.xlu0 %1396, %v1364
        %v1398 = vpop.permute.xlu0 %1397
        %vm1399 = vcmp.eq.s32.totalorder %v494, %v1398
        %v1400 = vsel %vm1395, 1, 0
        %1401 = vset.pattern.permute.xlu0 0
        %1402 = vperm.xlu0 %1401, %v1400
        %v1403 = vpop.permute.xlu0 %1402
        %vm1404 = vcmp.eq.s32.totalorder %v1403, 1
        %vm1405 = vmand %vm1404, %vm1399
        %v1406 = vld [vmem:[%s440] sm:$0xff]
        %v1407 = vsel %vm1405, %v1345, %v1406
        %1408 = vst [vmem:[%s440] sm:$0xff] %v1407
        %v1409 = vadd.s32 %v1364, %v1400
        %1410 = vst.msk [vmem:[%s444] sm:$0xff] %vm468, %v1409
      $region60: #{greedy_inference.1} parent=51 // pred_fallthru
        _
      %v1411 = vld [vmem:[#allocation4] sm:$0x1]
      %s1412 = vtos %v1411
      %p1413 = scmp.eq.s32.totalorder %s1412, 0
      // Predicated region
      $region61: #{greedy_inference.1} parent=51 // pred_check
        %p1414 = pneg %p1413
      $region62: #{greedy_inference.1} parent=51 // pred_check_branch
        %1416 = sbr.rel (%p1414) target = $region64
      $region63: #{greedy_inference.1} parent=51 // pred_region
        %v1417 = vld [vmem:[#allocation2] sm:$0xff]
        %v1418 = vld [vmem:[%s448] sm:$0xff]
        %v1419 = vld [vmem:[%s452] sm:$0xff]
        %v1420 = vlaneseq
        %v1421 = vand.u32 %v1420, 127
        %1422 = vset.pattern.permute.xlu0 0
        %1423 = vperm.xlu0 %1422, %v1417
        %v1424 = vpop.permute.xlu0 %1423
        %vm1425 = vcmp.eq.s32.totalorder %v1421, %v1424
        %v1426 = vsel %vm1425, 1, 0
        %v1427 = vcvt.s32.f32 %v1426
        %v1428 = vpack.c.bf16 %v1427, %v1427
        %1429 = vst [vmem:[#allocation5] sm:$0xf] %v1428
        %v1430 = vpack.c.bf16 %v1418, %v1418
        %1431 = vst [vmem:[#allocation5 + $0x4] sm:$0xf] %v1430
        %v1432 = vld [vmem:[#allocation5] sm:$0xff]
        %v1433 = vld [vmem:[%s2] sm:$0xff]
        %v1434 = vld [vmem:[%s2 + $0x8] sm:$0xff]
        %v1435 = vld [vmem:[%s2 + $0x10] sm:$0xff]
        %v1436 = vld [vmem:[%s2 + $0x18] sm:$0xff]
        %v1437 = vld [vmem:[%s2 + $0x20] sm:$0xff]
        %v1438 = vld [vmem:[%s2 + $0x28] sm:$0xff]
        %v1439 = vld [vmem:[%s2 + $0x30] sm:$0xff]
        %v1440 = vld [vmem:[%s2 + $0x38] sm:$0xff]
        %v1441 = vld [vmem:[%s2 + $0x40] sm:$0xff]
        %v1442 = vld [vmem:[%s2 + $0x48] sm:$0xff]
        %v1443 = vld [vmem:[%s2 + $0x50] sm:$0xff]
        %v1444 = vld [vmem:[%s2 + $0x58] sm:$0xff]
        %v1445 = vld [vmem:[%s2 + $0x60] sm:$0xff]
        %v1446 = vld [vmem:[%s2 + $0x68] sm:$0xff]
        %v1447 = vld [vmem:[%s2 + $0x70] sm:$0xff]
        %v1448 = vld [vmem:[%s2 + $0x78] sm:$0xff]
        %v1449 = vld [vmem:[%s2 + $0x80] sm:$0xff]
        %v1450 = vld [vmem:[%s2 + $0x88] sm:$0xff]
        %v1451 = vld [vmem:[%s2 + $0x90] sm:$0xff]
        %v1452 = vld [vmem:[%s2 + $0x98] sm:$0xff]
        %v1453 = vld [vmem:[%s2 + $0xa0] sm:$0xff]
        %v1454 = vld [vmem:[%s2 + $0xa8] sm:$0xff]
        %v1455 = vld [vmem:[%s2 + $0xb0] sm:$0xff]
        %v1456 = vld [vmem:[%s2 + $0xb8] sm:$0xff]
        %v1457 = vld [vmem:[%s2 + $0xc0] sm:$0xff]
        %v1458 = vld [vmem:[%s2 + $0xc8] sm:$0xff]
        %v1459 = vld [vmem:[%s2 + $0xd0] sm:$0xff]
        %v1460 = vld [vmem:[%s2 + $0xd8] sm:$0xff]
        %v1461 = vld [vmem:[%s2 + $0xe0] sm:$0xff]
        %v1462 = vld [vmem:[%s2 + $0xe8] sm:$0xff]
        %v1463 = vld [vmem:[%s2 + $0xf0] sm:$0xff]
        %v1464 = vld [vmem:[%s2 + $0xf8] sm:$0xff]
        %v1465 = vld [vmem:[%s2 + $0x100] sm:$0xff]
        %v1466 = vld [vmem:[%s2 + $0x108] sm:$0xff]
        %v1467 = vld [vmem:[%s2 + $0x110] sm:$0xff]
        %v1468 = vld [vmem:[%s2 + $0x118] sm:$0xff]
        %v1469 = vld [vmem:[%s2 + $0x120] sm:$0xff]
        %v1470 = vld [vmem:[%s2 + $0x128] sm:$0xff]
        %v1471 = vld [vmem:[%s2 + $0x130] sm:$0xff]
        %v1472 = vld [vmem:[%s2 + $0x138] sm:$0xff]
        %v1473 = vld [vmem:[%s2 + $0x140] sm:$0xff]
        %v1474 = vld [vmem:[%s2 + $0x148] sm:$0xff]
        %v1475 = vld [vmem:[%s2 + $0x150] sm:$0xff]
        %v1476 = vld [vmem:[%s2 + $0x158] sm:$0xff]
        %v1477 = vld [vmem:[%s2 + $0x160] sm:$0xff]
        %v1478 = vld [vmem:[%s2 + $0x168] sm:$0xff]
        %v1479 = vld [vmem:[%s2 + $0x170] sm:$0xff]
        %v1480 = vld [vmem:[%s2 + $0x178] sm:$0xff]
        %v1481 = vld [vmem:[%s2 + $0x180] sm:$0xff]
        %v1482 = vld [vmem:[%s2 + $0x188] sm:$0xff]
        %v1483 = vld [vmem:[%s2 + $0x190] sm:$0xff]
        %v1484 = vld [vmem:[%s2 + $0x198] sm:$0xff]
        %v1485 = vld [vmem:[%s2 + $0x1a0] sm:$0xff]
        %v1486 = vld [vmem:[%s2 + $0x1a8] sm:$0xff]
        %v1487 = vld [vmem:[%s2 + $0x1b0] sm:$0xff]
        %v1488 = vld [vmem:[%s2 + $0x1b8] sm:$0xff]
        %v1489 = vld [vmem:[%s2 + $0x1c0] sm:$0xff]
        %v1490 = vld [vmem:[%s2 + $0x1c8] sm:$0xff]
        %v1491 = vld [vmem:[%s2 + $0x1d0] sm:$0xff]
        %v1492 = vld [vmem:[%s2 + $0x1d8] sm:$0xff]
        %v1493 = vld [vmem:[%s2 + $0x1e0] sm:$0xff]
        %v1494 = vld [vmem:[%s2 + $0x1e8] sm:$0xff]
        %v1495 = vld [vmem:[%s2 + $0x1f0] sm:$0xff]
        %v1496 = vld [vmem:[%s2 + $0x1f8] sm:$0xff]
        %v1497 = vld [vmem:[%s3] sm:$0xf]
        %v1499 = vlaneseq
        %v1500 = vshrl.u32 %v1499, 7
        %v1501 = vsub.s32 0, %v1500
        %v1502 = vrot.slane %v1497, %v1501
        %v1503 = vlaneseq
        %v1504 = vshrl.u32 %v1503, 7
        %v1505 = vsub.s32 1, %v1504
        %v1506 = vrot.slane %v1497, %v1505
        %v1507 = vlaneseq
        %v1508 = vshrl.u32 %v1507, 7
        %v1509 = vsub.s32 2, %v1508
        %v1510 = vrot.slane %v1497, %v1509
        %v1511 = vlaneseq
        %v1512 = vshrl.u32 %v1511, 7
        %v1513 = vsub.s32 3, %v1512
        %v1514 = vrot.slane %v1497, %v1513
        %v1520 = vunpack.c.l.b16 %v1432
        %v1521 = vunpack.c.h.b16 %v1432
        %v1522 = vpack.c.b16 %v1520, %v1520
        %v1523 = vpack.c.b16 %v1521, %v1521
        %v1590 = vunpack.c.l.b16 %v1433
        %v1591 = vunpack.c.h.b16 %v1433
        %v1592 = vunpack.c.l.b16 %v1434
        %v1593 = vunpack.c.h.b16 %v1434
        %v1594 = vunpack.c.l.b16 %v1435
        %v1595 = vunpack.c.h.b16 %v1435
        %v1596 = vunpack.c.l.b16 %v1436
        %v1597 = vunpack.c.h.b16 %v1436
        %v1598 = vunpack.c.l.b16 %v1437
        %v1599 = vunpack.c.h.b16 %v1437
        %v1600 = vunpack.c.l.b16 %v1438
        %v1601 = vunpack.c.h.b16 %v1438
        %v1602 = vunpack.c.l.b16 %v1439
        %v1603 = vunpack.c.h.b16 %v1439
        %v1604 = vunpack.c.l.b16 %v1440
        %v1605 = vunpack.c.h.b16 %v1440
        %v1606 = vunpack.c.l.b16 %v1441
        %v1607 = vunpack.c.h.b16 %v1441
        %v1608 = vunpack.c.l.b16 %v1442
        %v1609 = vunpack.c.h.b16 %v1442
        %v1610 = vunpack.c.l.b16 %v1443
        %v1611 = vunpack.c.h.b16 %v1443
        %v1612 = vunpack.c.l.b16 %v1444
        %v1613 = vunpack.c.h.b16 %v1444
        %v1614 = vunpack.c.l.b16 %v1445
        %v1615 = vunpack.c.h.b16 %v1445
        %v1616 = vunpack.c.l.b16 %v1446
        %v1617 = vunpack.c.h.b16 %v1446
        %v1618 = vunpack.c.l.b16 %v1447
        %v1619 = vunpack.c.h.b16 %v1447
        %v1620 = vunpack.c.l.b16 %v1448
        %v1621 = vunpack.c.h.b16 %v1448
        %v1622 = vunpack.c.l.b16 %v1449
        %v1623 = vunpack.c.h.b16 %v1449
        %v1624 = vunpack.c.l.b16 %v1450
        %v1625 = vunpack.c.h.b16 %v1450
        %v1626 = vunpack.c.l.b16 %v1451
        %v1627 = vunpack.c.h.b16 %v1451
        %v1628 = vunpack.c.l.b16 %v1452
        %v1629 = vunpack.c.h.b16 %v1452
        %v1630 = vunpack.c.l.b16 %v1453
        %v1631 = vunpack.c.h.b16 %v1453
        %v1632 = vunpack.c.l.b16 %v1454
        %v1633 = vunpack.c.h.b16 %v1454
        %v1634 = vunpack.c.l.b16 %v1455
        %v1635 = vunpack.c.h.b16 %v1455
        %v1636 = vunpack.c.l.b16 %v1456
        %v1637 = vunpack.c.h.b16 %v1456
        %v1638 = vunpack.c.l.b16 %v1457
        %v1639 = vunpack.c.h.b16 %v1457
        %v1640 = vunpack.c.l.b16 %v1458
        %v1641 = vunpack.c.h.b16 %v1458
        %v1642 = vunpack.c.l.b16 %v1459
        %v1643 = vunpack.c.h.b16 %v1459
        %v1644 = vunpack.c.l.b16 %v1460
        %v1645 = vunpack.c.h.b16 %v1460
        %v1646 = vunpack.c.l.b16 %v1461
        %v1647 = vunpack.c.h.b16 %v1461
        %v1648 = vunpack.c.l.b16 %v1462
        %v1649 = vunpack.c.h.b16 %v1462
        %v1650 = vunpack.c.l.b16 %v1463
        %v1651 = vunpack.c.h.b16 %v1463
        %v1652 = vunpack.c.l.b16 %v1464
        %v1653 = vunpack.c.h.b16 %v1464
        %v1654 = vunpack.c.l.b16 %v1465
        %v1655 = vunpack.c.h.b16 %v1465
        %v1656 = vunpack.c.l.b16 %v1466
        %v1657 = vunpack.c.h.b16 %v1466
        %v1658 = vunpack.c.l.b16 %v1467
        %v1659 = vunpack.c.h.b16 %v1467
        %v1660 = vunpack.c.l.b16 %v1468
        %v1661 = vunpack.c.h.b16 %v1468
        %v1662 = vunpack.c.l.b16 %v1469
        %v1663 = vunpack.c.h.b16 %v1469
        %v1664 = vunpack.c.l.b16 %v1470
        %v1665 = vunpack.c.h.b16 %v1470
        %v1666 = vunpack.c.l.b16 %v1471
        %v1667 = vunpack.c.h.b16 %v1471
        %v1668 = vunpack.c.l.b16 %v1472
        %v1669 = vunpack.c.h.b16 %v1472
        %v1670 = vunpack.c.l.b16 %v1473
        %v1671 = vunpack.c.h.b16 %v1473
        %v1672 = vunpack.c.l.b16 %v1474
        %v1673 = vunpack.c.h.b16 %v1474
        %v1674 = vunpack.c.l.b16 %v1475
        %v1675 = vunpack.c.h.b16 %v1475
        %v1676 = vunpack.c.l.b16 %v1476
        %v1677 = vunpack.c.h.b16 %v1476
        %v1678 = vunpack.c.l.b16 %v1477
        %v1679 = vunpack.c.h.b16 %v1477
        %v1680 = vunpack.c.l.b16 %v1478
        %v1681 = vunpack.c.h.b16 %v1478
        %v1682 = vunpack.c.l.b16 %v1479
        %v1683 = vunpack.c.h.b16 %v1479
        %v1684 = vunpack.c.l.b16 %v1480
        %v1685 = vunpack.c.h.b16 %v1480
        %v1686 = vunpack.c.l.b16 %v1481
        %v1687 = vunpack.c.h.b16 %v1481
        %v1688 = vunpack.c.l.b16 %v1482
        %v1689 = vunpack.c.h.b16 %v1482
        %v1690 = vunpack.c.l.b16 %v1483
        %v1691 = vunpack.c.h.b16 %v1483
        %v1692 = vunpack.c.l.b16 %v1484
        %v1693 = vunpack.c.h.b16 %v1484
        %v1694 = vunpack.c.l.b16 %v1485
        %v1695 = vunpack.c.h.b16 %v1485
        %v1696 = vunpack.c.l.b16 %v1486
        %v1697 = vunpack.c.h.b16 %v1486
        %v1698 = vunpack.c.l.b16 %v1487
        %v1699 = vunpack.c.h.b16 %v1487
        %v1700 = vunpack.c.l.b16 %v1488
        %v1701 = vunpack.c.h.b16 %v1488
        %v1702 = vunpack.c.l.b16 %v1489
        %v1703 = vunpack.c.h.b16 %v1489
        %v1704 = vunpack.c.l.b16 %v1490
        %v1705 = vunpack.c.h.b16 %v1490
        %v1706 = vunpack.c.l.b16 %v1491
        %v1707 = vunpack.c.h.b16 %v1491
        %v1708 = vunpack.c.l.b16 %v1492
        %v1709 = vunpack.c.h.b16 %v1492
        %v1710 = vunpack.c.l.b16 %v1493
        %v1711 = vunpack.c.h.b16 %v1493
        %v1712 = vunpack.c.l.b16 %v1494
        %v1713 = vunpack.c.h.b16 %v1494
        %v1714 = vunpack.c.l.b16 %v1495
        %v1715 = vunpack.c.h.b16 %v1495
        %v1716 = vunpack.c.l.b16 %v1496
        %v1717 = vunpack.c.h.b16 %v1496
        %v1718 = vpack.c.b16 %v1594, %v1590
        %v1719 = vpack.c.b16 %v1595, %v1591
        %v1720 = vpack.c.b16 %v1596, %v1592
        %v1721 = vpack.c.b16 %v1597, %v1593
        %v1722 = vpack.c.b16 %v1602, %v1598
        %v1723 = vpack.c.b16 %v1603, %v1599
        %v1724 = vpack.c.b16 %v1604, %v1600
        %v1725 = vpack.c.b16 %v1605, %v1601
        %v1726 = vpack.c.b16 %v1610, %v1606
        %v1727 = vpack.c.b16 %v1611, %v1607
        %v1728 = vpack.c.b16 %v1612, %v1608
        %v1729 = vpack.c.b16 %v1613, %v1609
        %v1730 = vpack.c.b16 %v1618, %v1614
        %v1731 = vpack.c.b16 %v1619, %v1615
        %v1732 = vpack.c.b16 %v1620, %v1616
        %v1733 = vpack.c.b16 %v1621, %v1617
        %v1734 = vpack.c.b16 %v1626, %v1622
        %v1735 = vpack.c.b16 %v1627, %v1623
        %v1736 = vpack.c.b16 %v1628, %v1624
        %v1737 = vpack.c.b16 %v1629, %v1625
        %v1738 = vpack.c.b16 %v1634, %v1630
        %v1739 = vpack.c.b16 %v1635, %v1631
        %v1740 = vpack.c.b16 %v1636, %v1632
        %v1741 = vpack.c.b16 %v1637, %v1633
        %v1742 = vpack.c.b16 %v1642, %v1638
        %v1743 = vpack.c.b16 %v1643, %v1639
        %v1744 = vpack.c.b16 %v1644, %v1640
        %v1745 = vpack.c.b16 %v1645, %v1641
        %v1746 = vpack.c.b16 %v1650, %v1646
        %v1747 = vpack.c.b16 %v1651, %v1647
        %v1748 = vpack.c.b16 %v1652, %v1648
        %v1749 = vpack.c.b16 %v1653, %v1649
        %v1750 = vpack.c.b16 %v1658, %v1654
        %v1751 = vpack.c.b16 %v1659, %v1655
        %v1752 = vpack.c.b16 %v1660, %v1656
        %v1753 = vpack.c.b16 %v1661, %v1657
        %v1754 = vpack.c.b16 %v1666, %v1662
        %v1755 = vpack.c.b16 %v1667, %v1663
        %v1756 = vpack.c.b16 %v1668, %v1664
        %v1757 = vpack.c.b16 %v1669, %v1665
        %v1758 = vpack.c.b16 %v1674, %v1670
        %v1759 = vpack.c.b16 %v1675, %v1671
        %v1760 = vpack.c.b16 %v1676, %v1672
        %v1761 = vpack.c.b16 %v1677, %v1673
        %v1762 = vpack.c.b16 %v1682, %v1678
        %v1763 = vpack.c.b16 %v1683, %v1679
        %v1764 = vpack.c.b16 %v1684, %v1680
        %v1765 = vpack.c.b16 %v1685, %v1681
        %v1766 = vpack.c.b16 %v1690, %v1686
        %v1767 = vpack.c.b16 %v1691, %v1687
        %v1768 = vpack.c.b16 %v1692, %v1688
        %v1769 = vpack.c.b16 %v1693, %v1689
        %v1770 = vpack.c.b16 %v1698, %v1694
        %v1771 = vpack.c.b16 %v1699, %v1695
        %v1772 = vpack.c.b16 %v1700, %v1696
        %v1773 = vpack.c.b16 %v1701, %v1697
        %v1774 = vpack.c.b16 %v1706, %v1702
        %v1775 = vpack.c.b16 %v1707, %v1703
        %v1776 = vpack.c.b16 %v1708, %v1704
        %v1777 = vpack.c.b16 %v1709, %v1705
        %v1778 = vpack.c.b16 %v1714, %v1710
        %v1779 = vpack.c.b16 %v1715, %v1711
        %v1780 = vpack.c.b16 %v1716, %v1712
        %v1781 = vpack.c.b16 %v1717, %v1713
        %1846 = vmatprep.subr.bf16.mxu0 %v1719
        %1847 = vmatpush1.bf16.msra.mxu0 %v1718
        %1848 = vmatprep.subr.bf16.mxu0 %v1723
        %1849 = vmatpush1.bf16.msra.mxu0 %v1722
        %1850 = vmatprep.subr.bf16.mxu0 %v1727
        %1851 = vmatpush1.bf16.msra.mxu0 %v1726
        %1852 = vmatprep.subr.bf16.mxu0 %v1731
        %1853 = vmatpush1.bf16.msra.mxu0 %v1730
        %1854 = vmatprep.subr.bf16.mxu0 %v1735
        %1855 = vmatpush1.bf16.msra.mxu0 %v1734
        %1856 = vmatprep.subr.bf16.mxu0 %v1739
        %1857 = vmatpush1.bf16.msra.mxu0 %v1738
        %1858 = vmatprep.subr.bf16.mxu0 %v1743
        %1859 = vmatpush1.bf16.msra.mxu0 %v1742
        %1860 = vmatprep.subr.bf16.mxu0 %v1747
        %1861 = vmatpush1.bf16.msra.mxu0 %v1746
        %1862 = vmatprep.subr.bf16.mxu0 %v1751
        %1863 = vmatpush1.bf16.msra.mxu0 %v1750
        %1864 = vmatprep.subr.bf16.mxu0 %v1755
        %1865 = vmatpush1.bf16.msra.mxu0 %v1754
        %1866 = vmatprep.subr.bf16.mxu0 %v1759
        %1867 = vmatpush1.bf16.msra.mxu0 %v1758
        %1868 = vmatprep.subr.bf16.mxu0 %v1763
        %1869 = vmatpush1.bf16.msra.mxu0 %v1762
        %1870 = vmatprep.subr.bf16.mxu0 %v1767
        %1871 = vmatpush1.bf16.msra.mxu0 %v1766
        %1872 = vmatprep.subr.bf16.mxu0 %v1771
        %1873 = vmatpush1.bf16.msra.mxu0 %v1770
        %1874 = vmatprep.subr.bf16.mxu0 %v1775
        %1875 = vmatpush1.bf16.msra.mxu0 %v1774
        %1876 = vmatprep.subr.bf16.mxu0 %v1779
        %1877 = vmatpush1.bf16.msra.mxu0 %v1778
        %1878 = vmatprep.mubr.bf16.mxu0 %v1523
        %1879 = vmatmul.mubr.bf16.gmra.mrb[0].mxu0 %v1522
        %v1880 = vpop.f32.mrb[0].mxu0
        %v1881 = vadd.f32 %v1502, %v1880
        %v1882 = vpop.f32.mrb[0].mxu0
        %v1883 = vadd.f32 %v1506, %v1882
        %v1884 = vpop.f32.mrb[0].mxu0
        %v1885 = vpop.f32.mrb[0].mxu0
        %1886 = vdwg.mxu0
        %1887 = vmatprep.subr.bf16.mxu0 %v1721
        %1888 = vmatpush1.bf16.msra.mxu0 %v1720
        %1889 = vmatprep.subr.bf16.mxu0 %v1725
        %1890 = vmatpush1.bf16.msra.mxu0 %v1724
        %1891 = vmatprep.subr.bf16.mxu0 %v1729
        %1892 = vmatpush1.bf16.msra.mxu0 %v1728
        %1893 = vmatprep.subr.bf16.mxu0 %v1733
        %1894 = vmatpush1.bf16.msra.mxu0 %v1732
        %1895 = vmatprep.subr.bf16.mxu0 %v1737
        %1896 = vmatpush1.bf16.msra.mxu0 %v1736
        %1897 = vmatprep.subr.bf16.mxu0 %v1741
        %1898 = vmatpush1.bf16.msra.mxu0 %v1740
        %1899 = vmatprep.subr.bf16.mxu0 %v1745
        %1900 = vmatpush1.bf16.msra.mxu0 %v1744
        %1901 = vmatprep.subr.bf16.mxu0 %v1749
        %1902 = vmatpush1.bf16.msra.mxu0 %v1748
        %1903 = vmatprep.subr.bf16.mxu0 %v1753
        %1904 = vmatpush1.bf16.msra.mxu0 %v1752
        %1905 = vmatprep.subr.bf16.mxu0 %v1757
        %1906 = vmatpush1.bf16.msra.mxu0 %v1756
        %1907 = vmatprep.subr.bf16.mxu0 %v1761
        %1908 = vmatpush1.bf16.msra.mxu0 %v1760
        %1909 = vmatprep.subr.bf16.mxu0 %v1765
        %1910 = vmatpush1.bf16.msra.mxu0 %v1764
        %1911 = vmatprep.subr.bf16.mxu0 %v1769
        %1912 = vmatpush1.bf16.msra.mxu0 %v1768
        %1913 = vmatprep.subr.bf16.mxu0 %v1773
        %1914 = vmatpush1.bf16.msra.mxu0 %v1772
        %1915 = vmatprep.subr.bf16.mxu0 %v1777
        %1916 = vmatpush1.bf16.msra.mxu0 %v1776
        %1917 = vmatprep.subr.bf16.mxu0 %v1781
        %1918 = vmatpush1.bf16.msra.mxu0 %v1780
        %1919 = vmatprep.mubr.bf16.mxu0 %v1523
        %1920 = vmatmul.mubr.bf16.gmra.mrb[0].mxu0 %v1522
        %v1921 = vpop.f32.mrb[0].mxu0
        %v1922 = vadd.f32 %v1510, %v1921
        %v1923 = vpop.f32.mrb[0].mxu0
        %v1924 = vadd.f32 %v1514, %v1923
        %v1925 = vpop.f32.mrb[0].mxu0
        %v1926 = vpop.f32.mrb[0].mxu0
        %1927 = vdwg.mxu0
        %v1928 = vxor.u32 %v1881, 2147483648
        %v1929 = vmul.f32 %v1928, 1.442695
        %v1930 = vpow.pop %v1929
        %v1931 = vadd.f32 %v1930, 1.0
        %v1932 = vrcp.pop %v1931
        %v1933 = vmul.f32 1.0, %v1932
        %v1934 = vxor.u32 %v1883, 2147483648
        %v1935 = vmul.f32 %v1934, 1.442695
        %v1936 = vpow.pop %v1935
        %v1937 = vadd.f32 %v1936, 1.0
        %v1938 = vrcp.pop %v1937
        %v1939 = vmul.f32 1.0, %v1938
        %v1940 = vtanh.pop %v1922
        %v1941 = vxor.u32 %v1924, 2147483648
        %v1942 = vmul.f32 %v1941, 1.442695
        %v1943 = vpow.pop %v1942
        %v1944 = vadd.f32 %v1943, 1.0
        %v1945 = vrcp.pop %v1944
        %v1946 = vmul.f32 1.0, %v1945
        %v1947 = vmul.f32 %v1939, %v1419
        %v1948 = vmul.f32 %v1933, %v1940
        %v1949 = vadd.f32 %v1947, %v1948
        %v1950 = vtanh.pop %v1949
        %v1951 = vmul.f32 %v1946, %v1950
        %v1952 = vpack.c.bf16 %v1951, %v1951
        %1953 = vst [vmem:[#allocation6 + $0x4] sm:$0xf] %v1952
        %v1954 = vld [vmem:[#allocation6] sm:$0xff]
        %v1955 = vld [vmem:[%s4] sm:$0xf]
        %v1956 = vld [vmem:[%s4 + $0x4] sm:$0xf]
        %v1957 = vld [vmem:[%s4 + $0x8] sm:$0xf]
        %v1958 = vld [vmem:[%s4 + $0xc] sm:$0xf]
        %v1959 = vld [vmem:[%s4 + $0x10] sm:$0xf]
        %v1960 = vld [vmem:[%s4 + $0x14] sm:$0xf]
        %v1961 = vld [vmem:[%s4 + $0x18] sm:$0xf]
        %v1962 = vld [vmem:[%s4 + $0x1c] sm:$0xf]
        %v1963 = vld [vmem:[%s4 + $0x20] sm:$0xf]
        %v1964 = vld [vmem:[%s4 + $0x24] sm:$0xf]
        %v1965 = vld [vmem:[%s4 + $0x28] sm:$0xf]
        %v1966 = vld [vmem:[%s4 + $0x2c] sm:$0xf]
        %v1967 = vld [vmem:[%s4 + $0x30] sm:$0xf]
        %v1968 = vld [vmem:[%s4 + $0x34] sm:$0xf]
        %v1969 = vld [vmem:[%s4 + $0x38] sm:$0xf]
        %v1970 = vld [vmem:[%s4 + $0x3c] sm:$0xf]
        %v1971 = vld [vmem:[%s4 + $0x40] sm:$0xf]
        %v1972 = vld [vmem:[%s4 + $0x44] sm:$0xf]
        %v1973 = vld [vmem:[%s4 + $0x48] sm:$0xf]
        %v1974 = vld [vmem:[%s4 + $0x4c] sm:$0xf]
        %v1975 = vld [vmem:[%s4 + $0x50] sm:$0xf]
        %v1976 = vld [vmem:[%s4 + $0x54] sm:$0xf]
        %v1977 = vld [vmem:[%s4 + $0x58] sm:$0xf]
        %v1978 = vld [vmem:[%s4 + $0x5c] sm:$0xf]
        %v1979 = vld [vmem:[%s4 + $0x60] sm:$0xf]
        %v1980 = vld [vmem:[%s4 + $0x64] sm:$0xf]
        %v1981 = vld [vmem:[%s4 + $0x68] sm:$0xf]
        %v1982 = vld [vmem:[%s4 + $0x6c] sm:$0xf]
        %v1983 = vld [vmem:[%s4 + $0x70] sm:$0xf]
        %v1984 = vld [vmem:[%s4 + $0x74] sm:$0xf]
        %v1985 = vld [vmem:[%s4 + $0x78] sm:$0xf]
        %v1986 = vld [vmem:[%s4 + $0x7c] sm:$0xf]
        %v1987 = vld [vmem:[%s5] sm:$0x1]
        %v1989 = vlaneseq
        %v1990 = vshrl.u32 %v1989, 7
        %v1991 = vsub.s32 0, %v1990
        %v1992 = vrot.slane %v1987, %v1991
        %v1995 = vunpack.c.l.b16 %v1954
        %v1996 = vunpack.c.h.b16 %v1954
        %v1997 = vpack.c.b16 %v1995, %v1995
        %v1998 = vpack.c.b16 %v1996, %v1996
        %v2033 = vunpack.c.l.b16 %v1955
        %v2034 = vunpack.c.l.b16 %v1956
        %v2035 = vunpack.c.l.b16 %v1957
        %v2036 = vunpack.c.l.b16 %v1958
        %v2037 = vunpack.c.l.b16 %v1959
        %v2038 = vunpack.c.l.b16 %v1960
        %v2039 = vunpack.c.l.b16 %v1961
        %v2040 = vunpack.c.l.b16 %v1962
        %v2041 = vunpack.c.l.b16 %v1963
        %v2042 = vunpack.c.l.b16 %v1964
        %v2043 = vunpack.c.l.b16 %v1965
        %v2044 = vunpack.c.l.b16 %v1966
        %v2045 = vunpack.c.l.b16 %v1967
        %v2046 = vunpack.c.l.b16 %v1968
        %v2047 = vunpack.c.l.b16 %v1969
        %v2048 = vunpack.c.l.b16 %v1970
        %v2049 = vunpack.c.l.b16 %v1971
        %v2050 = vunpack.c.l.b16 %v1972
        %v2051 = vunpack.c.l.b16 %v1973
        %v2052 = vunpack.c.l.b16 %v1974
        %v2053 = vunpack.c.l.b16 %v1975
        %v2054 = vunpack.c.l.b16 %v1976
        %v2055 = vunpack.c.l.b16 %v1977
        %v2056 = vunpack.c.l.b16 %v1978
        %v2057 = vunpack.c.l.b16 %v1979
        %v2058 = vunpack.c.l.b16 %v1980
        %v2059 = vunpack.c.l.b16 %v1981
        %v2060 = vunpack.c.l.b16 %v1982
        %v2061 = vunpack.c.l.b16 %v1983
        %v2062 = vunpack.c.l.b16 %v1984
        %v2063 = vunpack.c.l.b16 %v1985
        %v2064 = vunpack.c.l.b16 %v1986
        %v2065 = vpack.c.b16 %v2034, %v2033
        %v2066 = vpack.c.b16 %v2036, %v2035
        %v2067 = vpack.c.b16 %v2038, %v2037
        %v2068 = vpack.c.b16 %v2040, %v2039
        %v2069 = vpack.c.b16 %v2042, %v2041
        %v2070 = vpack.c.b16 %v2044, %v2043
        %v2071 = vpack.c.b16 %v2046, %v2045
        %v2072 = vpack.c.b16 %v2048, %v2047
        %v2073 = vpack.c.b16 %v2050, %v2049
        %v2074 = vpack.c.b16 %v2052, %v2051
        %v2075 = vpack.c.b16 %v2054, %v2053
        %v2076 = vpack.c.b16 %v2056, %v2055
        %v2077 = vpack.c.b16 %v2058, %v2057
        %v2078 = vpack.c.b16 %v2060, %v2059
        %v2079 = vpack.c.b16 %v2062, %v2061
        %v2080 = vpack.c.b16 %v2064, %v2063
        %2097 = vmatprep.subr.bf16.mxu0 0
        %2098 = vmatpush1.bf16.msra.mxu0 %v2065
        %2099 = vmatprep.subr.bf16.mxu0 0
        %2100 = vmatpush1.bf16.msra.mxu0 %v2066
        %2101 = vmatprep.subr.bf16.mxu0 0
        %2102 = vmatpush1.bf16.msra.mxu0 %v2067
        %2103 = vmatprep.subr.bf16.mxu0 0
        %2104 = vmatpush1.bf16.msra.mxu0 %v2068
        %2105 = vmatprep.subr.bf16.mxu0 0
        %2106 = vmatpush1.bf16.msra.mxu0 %v2069
        %2107 = vmatprep.subr.bf16.mxu0 0
        %2108 = vmatpush1.bf16.msra.mxu0 %v2070
        %2109 = vmatprep.subr.bf16.mxu0 0
        %2110 = vmatpush1.bf16.msra.mxu0 %v2071
        %2111 = vmatprep.subr.bf16.mxu0 0
        %2112 = vmatpush1.bf16.msra.mxu0 %v2072
        %2113 = vmatprep.subr.bf16.mxu0 0
        %2114 = vmatpush1.bf16.msra.mxu0 %v2073
        %2115 = vmatprep.subr.bf16.mxu0 0
        %2116 = vmatpush1.bf16.msra.mxu0 %v2074
        %2117 = vmatprep.subr.bf16.mxu0 0
        %2118 = vmatpush1.bf16.msra.mxu0 %v2075
        %2119 = vmatprep.subr.bf16.mxu0 0
        %2120 = vmatpush1.bf16.msra.mxu0 %v2076
        %2121 = vmatprep.subr.bf16.mxu0 0
        %2122 = vmatpush1.bf16.msra.mxu0 %v2077
        %2123 = vmatprep.subr.bf16.mxu0 0
        %2124 = vmatpush1.bf16.msra.mxu0 %v2078
        %2125 = vmatprep.subr.bf16.mxu0 0
        %2126 = vmatpush1.bf16.msra.mxu0 %v2079
        %2127 = vmatprep.subr.bf16.mxu0 0
        %2128 = vmatpush1.bf16.msra.mxu0 %v2080
        %2129 = vmatprep.mubr.bf16.mxu0 %v1998
        %2130 = vmatmul.mubr.bf16.gmra.mrb[0].mxu0 %v1997
        %v2131 = vpop.f32.mrb[0].mxu0
        %v2132 = vadd.f32 %v1992, %v2131
        %v2133 = vpop.f32.mrb[0].mxu0
        %v2134 = vpop.f32.mrb[0].mxu0
        %v2135 = vpop.f32.mrb[0].mxu0
        %2136 = vdwg.mxu0
        %v2137 = vmax.f32 %v2132, 0.0
        %v2138 = vpack.c.bf16 %v2137, %v2137
        %v2139 = vld [vmem:[%s6] sm:$0xf]
        %v2140 = vld [vmem:[%s6 + $0x4] sm:$0xf]
        %v2141 = vld [vmem:[%s6 + $0x8] sm:$0xf]
        %v2142 = vld [vmem:[%s6 + $0xc] sm:$0xf]
        %v2143 = vld [vmem:[%s6 + $0x10] sm:$0xf]
        %v2144 = vld [vmem:[%s6 + $0x14] sm:$0xf]
        %v2145 = vld [vmem:[%s6 + $0x18] sm:$0xf]
        %v2146 = vld [vmem:[%s6 + $0x1c] sm:$0xf]
        %v2147 = vld [vmem:[%s6 + $0x20] sm:$0xf]
        %v2148 = vld [vmem:[%s6 + $0x24] sm:$0xf]
        %v2149 = vld [vmem:[%s6 + $0x28] sm:$0xf]
        %v2150 = vld [vmem:[%s6 + $0x2c] sm:$0xf]
        %v2151 = vld [vmem:[%s6 + $0x30] sm:$0xf]
        %v2152 = vld [vmem:[%s6 + $0x34] sm:$0xf]
        %v2153 = vld [vmem:[%s6 + $0x38] sm:$0xf]
        %v2154 = vld [vmem:[%s6 + $0x3c] sm:$0xf]
        %v2155 = vld [vmem:[%s7] sm:$0x1]
        %v2157 = vlaneseq
        %v2158 = vshrl.u32 %v2157, 7
        %v2159 = vsub.s32 0, %v2158
        %v2160 = vrot.slane %v2155, %v2159
        %v2178 = vunpack.c.l.b16 %v2139
        %v2179 = vunpack.c.l.b16 %v2140
        %v2180 = vunpack.c.l.b16 %v2141
        %v2181 = vunpack.c.l.b16 %v2142
        %v2182 = vunpack.c.l.b16 %v2143
        %v2183 = vunpack.c.l.b16 %v2144
        %v2184 = vunpack.c.l.b16 %v2145
        %v2185 = vunpack.c.l.b16 %v2146
        %v2186 = vunpack.c.l.b16 %v2147
        %v2187 = vunpack.c.l.b16 %v2148
        %v2188 = vunpack.c.l.b16 %v2149
        %v2189 = vunpack.c.l.b16 %v2150
        %v2190 = vunpack.c.l.b16 %v2151
        %v2191 = vunpack.c.l.b16 %v2152
        %v2192 = vunpack.c.l.b16 %v2153
        %v2193 = vunpack.c.l.b16 %v2154
        %v2194 = vpack.c.b16 %v2179, %v2178
        %v2195 = vpack.c.b16 %v2181, %v2180
        %v2196 = vpack.c.b16 %v2183, %v2182
        %v2197 = vpack.c.b16 %v2185, %v2184
        %v2198 = vpack.c.b16 %v2187, %v2186
        %v2199 = vpack.c.b16 %v2189, %v2188
        %v2200 = vpack.c.b16 %v2191, %v2190
        %v2201 = vpack.c.b16 %v2193, %v2192
        %2210 = vmatprep.subr.bf16.mxu0 0
        %2211 = vmatpush1.bf16.msra.mxu0 %v2194
        %2212 = vmatprep.subr.bf16.mxu0 0
        %2213 = vmatpush1.bf16.msra.mxu0 %v2195
        %2214 = vmatprep.subr.bf16.mxu0 0
        %2215 = vmatpush1.bf16.msra.mxu0 %v2196
        %2216 = vmatprep.subr.bf16.mxu0 0
        %2217 = vmatpush1.bf16.msra.mxu0 %v2197
        %2218 = vmatprep.subr.bf16.mxu0 0
        %2219 = vmatpush1.bf16.msra.mxu0 %v2198
        %2220 = vmatprep.subr.bf16.mxu0 0
        %2221 = vmatpush1.bf16.msra.mxu0 %v2199
        %2222 = vmatprep.subr.bf16.mxu0 0
        %2223 = vmatpush1.bf16.msra.mxu0 %v2200
        %2224 = vmatprep.subr.bf16.mxu0 0
        %2225 = vmatpush1.bf16.msra.mxu0 %v2201
        %2226 = vmatprep.subr.bf16.mxu0 0
        %2227 = vmatpush1.bf16.msra.mxu0 0
        %2228 = vmatprep.subr.bf16.mxu0 0
        %2229 = vmatpush1.bf16.msra.mxu0 0
        %2230 = vmatprep.subr.bf16.mxu0 0
        %2231 = vmatpush1.bf16.msra.mxu0 0
        %2232 = vmatprep.subr.bf16.mxu0 0
        %2233 = vmatpush1.bf16.msra.mxu0 0
        %2234 = vmatprep.subr.bf16.mxu0 0
        %2235 = vmatpush1.bf16.msra.mxu0 0
        %2236 = vmatprep.subr.bf16.mxu0 0
        %2237 = vmatpush1.bf16.msra.mxu0 0
        %2238 = vmatprep.subr.bf16.mxu0 0
        %2239 = vmatpush1.bf16.msra.mxu0 0
        %2240 = vmatprep.subr.bf16.mxu0 0
        %2241 = vmatpush1.bf16.msra.mxu0 0
        %2242 = vmatprep.mubr.bf16.mxu0 0
        %2243 = vmatmul.mubr.bf16.gmra.mrb[0].mxu0 %v2138
        %v2244 = vpop.f32.mrb[0].mxu0
        %v2245 = vadd.f32 %v2160, %v2244
        %v2246 = vpop.f32.mrb[0].mxu0
        %v2247 = vpop.f32.mrb[0].mxu0
        %v2248 = vpop.f32.mrb[0].mxu0
        %2249 = vdwg.mxu0
        %2250 = vmax.xlane.f32.xlu0 %v2245
        %v2251 = vpop.xlane.xlu0 %2250
        %vm2252 = vcmp.eq.f32.partialorder %v2245, %v2251
        %v2253 = vsel %vm2252, %v1421, 128
        %v2254 = vand.u32 %v2253, 65535
        %v2255 = vshra.s32 %v2253, 16
        %v2256 = vcvt.s32.f32 %v2254
        %v2257 = vcvt.s32.f32 %v2255
        %2258 = vmin.xlane.f32.xlu0 %v2257
        %v2259 = vpop.xlane.xlu0 %2258
        %vm2260 = vcmp.eq.f32.partialorder %v2257, %v2259
        %v2261 = vsel %vm2260, %v2256, inf
        %2262 = vmin.xlane.f32.xlu0 %v2261
        %v2263 = vpop.xlane.xlu0 %2262
        %v2264 = vcvt.f32.s32 %v2263
        %v2265 = vcvt.f32.s32 %v2259
        %v2266 = vshll.u32 %v2265, 16
        %v2267 = vadd.s32 %v2266, %v2264
        %v2268 = vld [vmem:[#allocation3] sm:$0xff]
        %vm2269 = vcmp.eq.s32.totalorder %v2267, 7
        %v2270 = vsel %vm2269, 1, 0
        %vm2271 = vcmp.gt.s32.totalorder %v2268, %v2270
        %v2272 = vsel %vm2271, %v2268, %v2270
        %2273 = vst.msk [vmem:[#allocation3] sm:$0xff] %vm468, %v2272
        %v2274 = vsel %vm468, %v2272, 2147483647
        %v2275 = vrot.slane %v2274, 4
        %vm2276 = vcmp.lt.s32.totalorder %v2274, %v2275
        %v2277 = vsel %vm2276, %v2274, %v2275
        %v2278 = vrot.slane %v2277, 2
        %vm2279 = vcmp.lt.s32.totalorder %v2277, %v2278
        %v2280 = vsel %vm2279, %v2277, %v2278
        %v2281 = vrot.slane %v2280, 1
        %vm2282 = vcmp.lt.s32.totalorder %v2280, %v2281
        %v2283 = vsel %vm2282, %v2280, %v2281
        %2284 = vst.msk [vmem:[#allocation4] sm:$0x1] %vm480, %v2283
        %vm2285 = vcmp.eq.s32.totalorder %v2283, 0
        %v2286 = vld [vmem:[%s444] sm:$0xff]
        %v2287 = vsel %vm468, %v2286, 0
        %v2288 = vrot.slane %v2287, 4
        %v2289 = vadd.s32 %v2287, %v2288
        %v2290 = vrot.slane %v2289, 2
        %v2291 = vadd.s32 %v2289, %v2290
        %v2292 = vrot.slane %v2291, 1
        %v2293 = vadd.s32 %v2291, %v2292
        %vm2294 = vcmp.gt.s32.totalorder %v2293, 0
        %vm2295 = vmxor %vm2285, 1
        %vm2296 = vcmp.gt.s32.totalorder %v2272, 0
        %v2297 = vsel %vm2294, 1, 0
        %vm2298 = vcmp.eq.s32.totalorder %v2297, 1
        %vm2299 = vmand %vm2296, %vm2298
        %v2300 = vsel %vm2295, 1, 0
        %vm2301 = vcmp.eq.s32.totalorder %v2300, 1
        %vm2302 = vmor %vm2301, %vm2299
        %v2303 = vsel %vm2302, 1, 0
        %2304 = vset.pattern.permute.xlu0 0
        %2305 = vperm.xlu0 %2304, %v2303
        %v2306 = vpop.permute.xlu0 %2305
        %vm2307 = vcmp.eq.s32.totalorder %v2306, 1
        %v2308 = vsel %vm2307, %v1418, %v1951
        %2309 = vst [vmem:[%s448] sm:$0xff] %v2308
        %v2310 = vsel %vm2307, %v1419, %v1949
        %2311 = vst [vmem:[%s452] sm:$0xff] %v2310
        %v2312 = vsel %vm2302, %v1417, %v2267
        %2313 = vst.msk [vmem:[#allocation2] sm:$0xff] %vm468, %v2312
        %vm2314 = vcmp.eq.s32.totalorder %v2272, 0
        %v2315 = vsel %vm2285, 1, 0
        %vm2316 = vcmp.eq.s32.totalorder %v2315, 1
        %vm2317 = vmand %vm2316, %vm2314
        %2318 = vset.pattern.permute.xlu0 0
        %2319 = vperm.xlu0 %2318, %v2286
        %v2320 = vpop.permute.xlu0 %2319
        %vm2321 = vcmp.eq.s32.totalorder %v1421, %v2320
        %v2322 = vsel %vm2317, 1, 0
        %2323 = vset.pattern.permute.xlu0 0
        %2324 = vperm.xlu0 %2323, %v2322
        %v2325 = vpop.permute.xlu0 %2324
        %vm2326 = vcmp.eq.s32.totalorder %v2325, 1
        %vm2327 = vmand %vm2326, %vm2321
        %v2328 = vld [vmem:[%s440] sm:$0xff]
        %v2329 = vsel %vm2327, %v2267, %v2328
        %2330 = vst [vmem:[%s440] sm:$0xff] %v2329
        %v2331 = vadd.s32 %v2286, %v2322
        %2332 = vst.msk [vmem:[%s444] sm:$0xff] %vm468, %v2331
      $region64: #{greedy_inference.1} parent=51 // pred_fallthru
        _
      %v2333 = vld [vmem:[#allocation4] sm:$0x1]
      %s2334 = vtos %v2333
      %p2335 = scmp.eq.s32.totalorder %s2334, 0
      // Predicated region
      $region65: #{greedy_inference.1} parent=51 // pred_check
        %p2336 = pneg %p2335
      $region66: #{greedy_inference.1} parent=51 // pred_check_branch
        %2338 = sbr.rel (%p2336) target = $region68
      $region67: #{greedy_inference.1} parent=51 // pred_region
        %v2339 = vld [vmem:[#allocation2] sm:$0xff]
        %v2340 = vld [vmem:[%s448] sm:$0xff]
        %v2341 = vld [vmem:[%s452] sm:$0xff]
        %v2342 = vlaneseq
        %v2343 = vand.u32 %v2342, 127
        %2344 = vset.pattern.permute.xlu0 0
        %2345 = vperm.xlu0 %2344, %v2339
        %v2346 = vpop.permute.xlu0 %2345
        %vm2347 = vcmp.eq.s32.totalorder %v2343, %v2346
        %v2348 = vsel %vm2347, 1, 0
        %v2349 = vcvt.s32.f32 %v2348
        %v2350 = vpack.c.bf16 %v2349, %v2349
        %2351 = vst [vmem:[#allocation5] sm:$0xf] %v2350
        %v2352 = vpack.c.bf16 %v2340, %v2340
        %2353 = vst [vmem:[#allocation5 + $0x4] sm:$0xf] %v2352
        %v2354 = vld [vmem:[#allocation5] sm:$0xff]
        %v2355 = vld [vmem:[%s2] sm:$0xff]
        %v2356 = vld [vmem:[%s2 + $0x8] sm:$0xff]
        %v2357 = vld [vmem:[%s2 + $0x10] sm:$0xff]
        %v2358 = vld [vmem:[%s2 + $0x18] sm:$0xff]
        %v2359 = vld [vmem:[%s2 + $0x20] sm:$0xff]
        %v2360 = vld [vmem:[%s2 + $0x28] sm:$0xff]
        %v2361 = vld [vmem:[%s2 + $0x30] sm:$0xff]
        %v2362 = vld [vmem:[%s2 + $0x38] sm:$0xff]
        %v2363 = vld [vmem:[%s2 + $0x40] sm:$0xff]
        %v2364 = vld [vmem:[%s2 + $0x48] sm:$0xff]
        %v2365 = vld [vmem:[%s2 + $0x50] sm:$0xff]
        %v2366 = vld [vmem:[%s2 + $0x58] sm:$0xff]
        %v2367 = vld [vmem:[%s2 + $0x60] sm:$0xff]
        %v2368 = vld [vmem:[%s2 + $0x68] sm:$0xff]
        %v2369 = vld [vmem:[%s2 + $0x70] sm:$0xff]
        %v2370 = vld [vmem:[%s2 + $0x78] sm:$0xff]
        %v2371 = vld [vmem:[%s2 + $0x80] sm:$0xff]
        %v2372 = vld [vmem:[%s2 + $0x88] sm:$0xff]
        %v2373 = vld [vmem:[%s2 + $0x90] sm:$0xff]
        %v2374 = vld [vmem:[%s2 + $0x98] sm:$0xff]
        %v2375 = vld [vmem:[%s2 + $0xa0] sm:$0xff]
        %v2376 = vld [vmem:[%s2 + $0xa8] sm:$0xff]
        %v2377 = vld [vmem:[%s2 + $0xb0] sm:$0xff]
        %v2378 = vld [vmem:[%s2 + $0xb8] sm:$0xff]
        %v2379 = vld [vmem:[%s2 + $0xc0] sm:$0xff]
        %v2380 = vld [vmem:[%s2 + $0xc8] sm:$0xff]
        %v2381 = vld [vmem:[%s2 + $0xd0] sm:$0xff]
        %v2382 = vld [vmem:[%s2 + $0xd8] sm:$0xff]
        %v2383 = vld [vmem:[%s2 + $0xe0] sm:$0xff]
        %v2384 = vld [vmem:[%s2 + $0xe8] sm:$0xff]
        %v2385 = vld [vmem:[%s2 + $0xf0] sm:$0xff]
        %v2386 = vld [vmem:[%s2 + $0xf8] sm:$0xff]
        %v2387 = vld [vmem:[%s2 + $0x100] sm:$0xff]
        %v2388 = vld [vmem:[%s2 + $0x108] sm:$0xff]
        %v2389 = vld [vmem:[%s2 + $0x110] sm:$0xff]
        %v2390 = vld [vmem:[%s2 + $0x118] sm:$0xff]
        %v2391 = vld [vmem:[%s2 + $0x120] sm:$0xff]
        %v2392 = vld [vmem:[%s2 + $0x128] sm:$0xff]
        %v2393 = vld [vmem:[%s2 + $0x130] sm:$0xff]
        %v2394 = vld [vmem:[%s2 + $0x138] sm:$0xff]
        %v2395 = vld [vmem:[%s2 + $0x140] sm:$0xff]
        %v2396 = vld [vmem:[%s2 + $0x148] sm:$0xff]
        %v2397 = vld [vmem:[%s2 + $0x150] sm:$0xff]
        %v2398 = vld [vmem:[%s2 + $0x158] sm:$0xff]
        %v2399 = vld [vmem:[%s2 + $0x160] sm:$0xff]
        %v2400 = vld [vmem:[%s2 + $0x168] sm:$0xff]
        %v2401 = vld [vmem:[%s2 + $0x170] sm:$0xff]
        %v2402 = vld [vmem:[%s2 + $0x178] sm:$0xff]
        %v2403 = vld [vmem:[%s2 + $0x180] sm:$0xff]
        %v2404 = vld [vmem:[%s2 + $0x188] sm:$0xff]
        %v2405 = vld [vmem:[%s2 + $0x190] sm:$0xff]
        %v2406 = vld [vmem:[%s2 + $0x198] sm:$0xff]
        %v2407 = vld [vmem:[%s2 + $0x1a0] sm:$0xff]
        %v2408 = vld [vmem:[%s2 + $0x1a8] sm:$0xff]
        %v2409 = vld [vmem:[%s2 + $0x1b0] sm:$0xff]
        %v2410 = vld [vmem:[%s2 + $0x1b8] sm:$0xff]
        %v2411 = vld [vmem:[%s2 + $0x1c0] sm:$0xff]
        %v2412 = vld [vmem:[%s2 + $0x1c8] sm:$0xff]
        %v2413 = vld [vmem:[%s2 + $0x1d0] sm:$0xff]
        %v2414 = vld [vmem:[%s2 + $0x1d8] sm:$0xff]
        %v2415 = vld [vmem:[%s2 + $0x1e0] sm:$0xff]
        %v2416 = vld [vmem:[%s2 + $0x1e8] sm:$0xff]
        %v2417 = vld [vmem:[%s2 + $0x1f0] sm:$0xff]
        %v2418 = vld [vmem:[%s2 + $0x1f8] sm:$0xff]
        %v2419 = vld [vmem:[%s3] sm:$0xf]
        %v2421 = vlaneseq
        %v2422 = vshrl.u32 %v2421, 7
        %v2423 = vsub.s32 0, %v2422
        %v2424 = vrot.slane %v2419, %v2423
        %v2425 = vlaneseq
        %v2426 = vshrl.u32 %v2425, 7
        %v2427 = vsub.s32 1, %v2426
        %v2428 = vrot.slane %v2419, %v2427
        %v2429 = vlaneseq
        %v2430 = vshrl.u32 %v2429, 7
        %v2431 = vsub.s32 2, %v2430
        %v2432 = vrot.slane %v2419, %v2431
        %v2433 = vlaneseq
        %v2434 = vshrl.u32 %v2433, 7
        %v2435 = vsub.s32 3, %v2434
        %v2436 = vrot.slane %v2419, %v2435
        %v2442 = vunpack.c.l.b16 %v2354
        %v2443 = vunpack.c.h.b16 %v2354
        %v2444 = vpack.c.b16 %v2442, %v2442
        %v2445 = vpack.c.b16 %v2443, %v2443
        %v2512 = vunpack.c.l.b16 %v2355
        %v2513 = vunpack.c.h.b16 %v2355
        %v2514 = vunpack.c.l.b16 %v2356
        %v2515 = vunpack.c.h.b16 %v2356
        %v2516 = vunpack.c.l.b16 %v2357
        %v2517 = vunpack.c.h.b16 %v2357
        %v2518 = vunpack.c.l.b16 %v2358
        %v2519 = vunpack.c.h.b16 %v2358
        %v2520 = vunpack.c.l.b16 %v2359
        %v2521 = vunpack.c.h.b16 %v2359
        %v2522 = vunpack.c.l.b16 %v2360
        %v2523 = vunpack.c.h.b16 %v2360
        %v2524 = vunpack.c.l.b16 %v2361
        %v2525 = vunpack.c.h.b16 %v2361
        %v2526 = vunpack.c.l.b16 %v2362
        %v2527 = vunpack.c.h.b16 %v2362
        %v2528 = vunpack.c.l.b16 %v2363
        %v2529 = vunpack.c.h.b16 %v2363
        %v2530 = vunpack.c.l.b16 %v2364
        %v2531 = vunpack.c.h.b16 %v2364
        %v2532 = vunpack.c.l.b16 %v2365
        %v2533 = vunpack.c.h.b16 %v2365
        %v2534 = vunpack.c.l.b16 %v2366
        %v2535 = vunpack.c.h.b16 %v2366
        %v2536 = vunpack.c.l.b16 %v2367
        %v2537 = vunpack.c.h.b16 %v2367
        %v2538 = vunpack.c.l.b16 %v2368
        %v2539 = vunpack.c.h.b16 %v2368
        %v2540 = vunpack.c.l.b16 %v2369
        %v2541 = vunpack.c.h.b16 %v2369
        %v2542 = vunpack.c.l.b16 %v2370
        %v2543 = vunpack.c.h.b16 %v2370
        %v2544 = vunpack.c.l.b16 %v2371
        %v2545 = vunpack.c.h.b16 %v2371
        %v2546 = vunpack.c.l.b16 %v2372
        %v2547 = vunpack.c.h.b16 %v2372
        %v2548 = vunpack.c.l.b16 %v2373
        %v2549 = vunpack.c.h.b16 %v2373
        %v2550 = vunpack.c.l.b16 %v2374
        %v2551 = vunpack.c.h.b16 %v2374
        %v2552 = vunpack.c.l.b16 %v2375
        %v2553 = vunpack.c.h.b16 %v2375
        %v2554 = vunpack.c.l.b16 %v2376
        %v2555 = vunpack.c.h.b16 %v2376
        %v2556 = vunpack.c.l.b16 %v2377
        %v2557 = vunpack.c.h.b16 %v2377
        %v2558 = vunpack.c.l.b16 %v2378
        %v2559 = vunpack.c.h.b16 %v2378
        %v2560 = vunpack.c.l.b16 %v2379
        %v2561 = vunpack.c.h.b16 %v2379
        %v2562 = vunpack.c.l.b16 %v2380
        %v2563 = vunpack.c.h.b16 %v2380
        %v2564 = vunpack.c.l.b16 %v2381
        %v2565 = vunpack.c.h.b16 %v2381
        %v2566 = vunpack.c.l.b16 %v2382
        %v2567 = vunpack.c.h.b16 %v2382
        %v2568 = vunpack.c.l.b16 %v2383
        %v2569 = vunpack.c.h.b16 %v2383
        %v2570 = vunpack.c.l.b16 %v2384
        %v2571 = vunpack.c.h.b16 %v2384
        %v2572 = vunpack.c.l.b16 %v2385
        %v2573 = vunpack.c.h.b16 %v2385
        %v2574 = vunpack.c.l.b16 %v2386
        %v2575 = vunpack.c.h.b16 %v2386
        %v2576 = vunpack.c.l.b16 %v2387
        %v2577 = vunpack.c.h.b16 %v2387
        %v2578 = vunpack.c.l.b16 %v2388
        %v2579 = vunpack.c.h.b16 %v2388
        %v2580 = vunpack.c.l.b16 %v2389
        %v2581 = vunpack.c.h.b16 %v2389
        %v2582 = vunpack.c.l.b16 %v2390
        %v2583 = vunpack.c.h.b16 %v2390
        %v2584 = vunpack.c.l.b16 %v2391
        %v2585 = vunpack.c.h.b16 %v2391
        %v2586 = vunpack.c.l.b16 %v2392
        %v2587 = vunpack.c.h.b16 %v2392
        %v2588 = vunpack.c.l.b16 %v2393
        %v2589 = vunpack.c.h.b16 %v2393
        %v2590 = vunpack.c.l.b16 %v2394
        %v2591 = vunpack.c.h.b16 %v2394
        %v2592 = vunpack.c.l.b16 %v2395
        %v2593 = vunpack.c.h.b16 %v2395
        %v2594 = vunpack.c.l.b16 %v2396
        %v2595 = vunpack.c.h.b16 %v2396
        %v2596 = vunpack.c.l.b16 %v2397
        %v2597 = vunpack.c.h.b16 %v2397
        %v2598 = vunpack.c.l.b16 %v2398
        %v2599 = vunpack.c.h.b16 %v2398
        %v2600 = vunpack.c.l.b16 %v2399
        %v2601 = vunpack.c.h.b16 %v2399
        %v2602 = vunpack.c.l.b16 %v2400
        %v2603 = vunpack.c.h.b16 %v2400
        %v2604 = vunpack.c.l.b16 %v2401
        %v2605 = vunpack.c.h.b16 %v2401
        %v2606 = vunpack.c.l.b16 %v2402
        %v2607 = vunpack.c.h.b16 %v2402
        %v2608 = vunpack.c.l.b16 %v2403
        %v2609 = vunpack.c.h.b16 %v2403
        %v2610 = vunpack.c.l.b16 %v2404
        %v2611 = vunpack.c.h.b16 %v2404
        %v2612 = vunpack.c.l.b16 %v2405
        %v2613 = vunpack.c.h.b16 %v2405
        %v2614 = vunpack.c.l.b16 %v2406
        %v2615 = vunpack.c.h.b16 %v2406
        %v2616 = vunpack.c.l.b16 %v2407
        %v2617 = vunpack.c.h.b16 %v2407
        %v2618 = vunpack.c.l.b16 %v2408
        %v2619 = vunpack.c.h.b16 %v2408
        %v2620 = vunpack.c.l.b16 %v2409
        %v2621 = vunpack.c.h.b16 %v2409
        %v2622 = vunpack.c.l.b16 %v2410
        %v2623 = vunpack.c.h.b16 %v2410
        %v2624 = vunpack.c.l.b16 %v2411
        %v2625 = vunpack.c.h.b16 %v2411
        %v2626 = vunpack.c.l.b16 %v2412
        %v2627 = vunpack.c.h.b16 %v2412
        %v2628 = vunpack.c.l.b16 %v2413
        %v2629 = vunpack.c.h.b16 %v2413
        %v2630 = vunpack.c.l.b16 %v2414
        %v2631 = vunpack.c.h.b16 %v2414
        %v2632 = vunpack.c.l.b16 %v2415
        %v2633 = vunpack.c.h.b16 %v2415
        %v2634 = vunpack.c.l.b16 %v2416
        %v2635 = vunpack.c.h.b16 %v2416
        %v2636 = vunpack.c.l.b16 %v2417
        %v2637 = vunpack.c.h.b16 %v2417
        %v2638 = vunpack.c.l.b16 %v2418
        %v2639 = vunpack.c.h.b16 %v2418
        %v2640 = vpack.c.b16 %v2516, %v2512
        %v2641 = vpack.c.b16 %v2517, %v2513
        %v2642 = vpack.c.b16 %v2518, %v2514
        %v2643 = vpack.c.b16 %v2519, %v2515
        %v2644 = vpack.c.b16 %v2524, %v2520
        %v2645 = vpack.c.b16 %v2525, %v2521
        %v2646 = vpack.c.b16 %v2526, %v2522
        %v2647 = vpack.c.b16 %v2527, %v2523
        %v2648 = vpack.c.b16 %v2532, %v2528
        %v2649 = vpack.c.b16 %v2533, %v2529
        %v2650 = vpack.c.b16 %v2534, %v2530
        %v2651 = vpack.c.b16 %v2535, %v2531
        %v2652 = vpack.c.b16 %v2540, %v2536
        %v2653 = vpack.c.b16 %v2541, %v2537
        %v2654 = vpack.c.b16 %v2542, %v2538
        %v2655 = vpack.c.b16 %v2543, %v2539
        %v2656 = vpack.c.b16 %v2548, %v2544
        %v2657 = vpack.c.b16 %v2549, %v2545
        %v2658 = vpack.c.b16 %v2550, %v2546
        %v2659 = vpack.c.b16 %v2551, %v2547
        %v2660 = vpack.c.b16 %v2556, %v2552
        %v2661 = vpack.c.b16 %v2557, %v2553
        %v2662 = vpack.c.b16 %v2558, %v2554
        %v2663 = vpack.c.b16 %v2559, %v2555
        %v2664 = vpack.c.b16 %v2564, %v2560
        %v2665 = vpack.c.b16 %v2565, %v2561
        %v2666 = vpack.c.b16 %v2566, %v2562
        %v2667 = vpack.c.b16 %v2567, %v2563
        %v2668 = vpack.c.b16 %v2572, %v2568
        %v2669 = vpack.c.b16 %v2573, %v2569
        %v2670 = vpack.c.b16 %v2574, %v2570
        %v2671 = vpack.c.b16 %v2575, %v2571
        %v2672 = vpack.c.b16 %v2580, %v2576
        %v2673 = vpack.c.b16 %v2581, %v2577
        %v2674 = vpack.c.b16 %v2582, %v2578
        %v2675 = vpack.c.b16 %v2583, %v2579
        %v2676 = vpack.c.b16 %v2588, %v2584
        %v2677 = vpack.c.b16 %v2589, %v2585
        %v2678 = vpack.c.b16 %v2590, %v2586
        %v2679 = vpack.c.b16 %v2591, %v2587
        %v2680 = vpack.c.b16 %v2596, %v2592
        %v2681 = vpack.c.b16 %v2597, %v2593
        %v2682 = vpack.c.b16 %v2598, %v2594
        %v2683 = vpack.c.b16 %v2599, %v2595
        %v2684 = vpack.c.b16 %v2604, %v2600
        %v2685 = vpack.c.b16 %v2605, %v2601
        %v2686 = vpack.c.b16 %v2606, %v2602
        %v2687 = vpack.c.b16 %v2607, %v2603
        %v2688 = vpack.c.b16 %v2612, %v2608
        %v2689 = vpack.c.b16 %v2613, %v2609
        %v2690 = vpack.c.b16 %v2614, %v2610
        %v2691 = vpack.c.b16 %v2615, %v2611
        %v2692 = vpack.c.b16 %v2620, %v2616
        %v2693 = vpack.c.b16 %v2621, %v2617
        %v2694 = vpack.c.b16 %v2622, %v2618
        %v2695 = vpack.c.b16 %v2623, %v2619
        %v2696 = vpack.c.b16 %v2628, %v2624
        %v2697 = vpack.c.b16 %v2629, %v2625
        %v2698 = vpack.c.b16 %v2630, %v2626
        %v2699 = vpack.c.b16 %v2631, %v2627
        %v2700 = vpack.c.b16 %v2636, %v2632
        %v2701 = vpack.c.b16 %v2637, %v2633
        %v2702 = vpack.c.b16 %v2638, %v2634
        %v2703 = vpack.c.b16 %v2639, %v2635
        %2768 = vmatprep.subr.bf16.mxu0 %v2641
        %2769 = vmatpush1.bf16.msra.mxu0 %v2640
        %2770 = vmatprep.subr.bf16.mxu0 %v2645
        %2771 = vmatpush1.bf16.msra.mxu0 %v2644
        %2772 = vmatprep.subr.bf16.mxu0 %v2649
        %2773 = vmatpush1.bf16.msra.mxu0 %v2648
        %2774 = vmatprep.subr.bf16.mxu0 %v2653
        %2775 = vmatpush1.bf16.msra.mxu0 %v2652
        %2776 = vmatprep.subr.bf16.mxu0 %v2657
        %2777 = vmatpush1.bf16.msra.mxu0 %v2656
        %2778 = vmatprep.subr.bf16.mxu0 %v2661
        %2779 = vmatpush1.bf16.msra.mxu0 %v2660
        %2780 = vmatprep.subr.bf16.mxu0 %v2665
        %2781 = vmatpush1.bf16.msra.mxu0 %v2664
        %2782 = vmatprep.subr.bf16.mxu0 %v2669
        %2783 = vmatpush1.bf16.msra.mxu0 %v2668
        %2784 = vmatprep.subr.bf16.mxu0 %v2673
        %2785 = vmatpush1.bf16.msra.mxu0 %v2672
        %2786 = vmatprep.subr.bf16.mxu0 %v2677
        %2787 = vmatpush1.bf16.msra.mxu0 %v2676
        %2788 = vmatprep.subr.bf16.mxu0 %v2681
        %2789 = vmatpush1.bf16.msra.mxu0 %v2680
        %2790 = vmatprep.subr.bf16.mxu0 %v2685
        %2791 = vmatpush1.bf16.msra.mxu0 %v2684
        %2792 = vmatprep.subr.bf16.mxu0 %v2689
        %2793 = vmatpush1.bf16.msra.mxu0 %v2688
        %2794 = vmatprep.subr.bf16.mxu0 %v2693
        %2795 = vmatpush1.bf16.msra.mxu0 %v2692
        %2796 = vmatprep.subr.bf16.mxu0 %v2697
        %2797 = vmatpush1.bf16.msra.mxu0 %v2696
        %2798 = vmatprep.subr.bf16.mxu0 %v2701
        %2799 = vmatpush1.bf16.msra.mxu0 %v2700
        %2800 = vmatprep.mubr.bf16.mxu0 %v2445
        %2801 = vmatmul.mubr.bf16.gmra.mrb[0].mxu0 %v2444
        %v2802 = vpop.f32.mrb[0].mxu0
        %v2803 = vadd.f32 %v2424, %v2802
        %v2804 = vpop.f32.mrb[0].mxu0
        %v2805 = vadd.f32 %v2428, %v2804
        %v2806 = vpop.f32.mrb[0].mxu0
        %v2807 = vpop.f32.mrb[0].mxu0
        %2808 = vdwg.mxu0
        %2809 = vmatprep.subr.bf16.mxu0 %v2643
        %2810 = vmatpush1.bf16.msra.mxu0 %v2642
        %2811 = vmatprep.subr.bf16.mxu0 %v2647
        %2812 = vmatpush1.bf16.msra.mxu0 %v2646
        %2813 = vmatprep.subr.bf16.mxu0 %v2651
        %2814 = vmatpush1.bf16.msra.mxu0 %v2650
        %2815 = vmatprep.subr.bf16.mxu0 %v2655
        %2816 = vmatpush1.bf16.msra.mxu0 %v2654
        %2817 = vmatprep.subr.bf16.mxu0 %v2659
        %2818 = vmatpush1.bf16.msra.mxu0 %v2658
        %2819 = vmatprep.subr.bf16.mxu0 %v2663
        %2820 = vmatpush1.bf16.msra.mxu0 %v2662
        %2821 = vmatprep.subr.bf16.mxu0 %v2667
        %2822 = vmatpush1.bf16.msra.mxu0 %v2666
        %2823 = vmatprep.subr.bf16.mxu0 %v2671
        %2824 = vmatpush1.bf16.msra.mxu0 %v2670
        %2825 = vmatprep.subr.bf16.mxu0 %v2675
        %2826 = vmatpush1.bf16.msra.mxu0 %v2674
        %2827 = vmatprep.subr.bf16.mxu0 %v2679
        %2828 = vmatpush1.bf16.msra.mxu0 %v2678
        %2829 = vmatprep.subr.bf16.mxu0 %v2683
        %2830 = vmatpush1.bf16.msra.mxu0 %v2682
        %2831 = vmatprep.subr.bf16.mxu0 %v2687
        %2832 = vmatpush1.bf16.msra.mxu0 %v2686
        %2833 = vmatprep.subr.bf16.mxu0 %v2691
        %2834 = vmatpush1.bf16.msra.mxu0 %v2690
        %2835 = vmatprep.subr.bf16.mxu0 %v2695
        %2836 = vmatpush1.bf16.msra.mxu0 %v2694
        %2837 = vmatprep.subr.bf16.mxu0 %v2699
        %2838 = vmatpush1.bf16.msra.mxu0 %v2698
        %2839 = vmatprep.subr.bf16.mxu0 %v2703
        %2840 = vmatpush1.bf16.msra.mxu0 %v2702
        %2841 = vmatprep.mubr.bf16.mxu0 %v2445
        %2842 = vmatmul.mubr.bf16.gmra.mrb[0].mxu0 %v2444
        %v2843 = vpop.f32.mrb[0].mxu0
        %v2844 = vadd.f32 %v2432, %v2843
        %v2845 = vpop.f32.mrb[0].mxu0
        %v2846 = vadd.f32 %v2436, %v2845
        %v2847 = vpop.f32.mrb[0].mxu0
        %v2848 = vpop.f32.mrb[0].mxu0
        %2849 = vdwg.mxu0
        %v2850 = vxor.u32 %v2803, 2147483648
        %v2851 = vmul.f32 %v2850, 1.442695
        %v2852 = vpow.pop %v2851
        %v2853 = vadd.f32 %v2852, 1.0
        %v2854 = vrcp.pop %v2853
        %v2855 = vmul.f32 1.0, %v2854
        %v2856 = vxor.u32 %v2805, 2147483648
        %v2857 = vmul.f32 %v2856, 1.442695
        %v2858 = vpow.pop %v2857
        %v2859 = vadd.f32 %v2858, 1.0
        %v2860 = vrcp.pop %v2859
        %v2861 = vmul.f32 1.0, %v2860
        %v2862 = vtanh.pop %v2844
        %v2863 = vxor.u32 %v2846, 2147483648
        %v2864 = vmul.f32 %v2863, 1.442695
        %v2865 = vpow.pop %v2864
        %v2866 = vadd.f32 %v2865, 1.0
        %v2867 = vrcp.pop %v2866
        %v2868 = vmul.f32 1.0, %v2867
        %v2869 = vmul.f32 %v2861, %v2341
        %v2870 = vmul.f32 %v2855, %v2862
        %v2871 = vadd.f32 %v2869, %v2870
        %v2872 = vtanh.pop %v2871
        %v2873 = vmul.f32 %v2868, %v2872
        %v2874 = vpack.c.bf16 %v2873, %v2873
        %2875 = vst [vmem:[#allocation6 + $0x4] sm:$0xf] %v2874
        %v2876 = vld [vmem:[#allocation6] sm:$0xff]
        %v2877 = vld [vmem:[%s4] sm:$0xf]
        %v2878 = vld [vmem:[%s4 + $0x4] sm:$0xf]
        %v2879 = vld [vmem:[%s4 + $0x8] sm:$0xf]
        %v2880 = vld [vmem:[%s4 + $0xc] sm:$0xf]
        %v2881 = vld [vmem:[%s4 + $0x10] sm:$0xf]
        %v2882 = vld [vmem:[%s4 + $0x14] sm:$0xf]
        %v2883 = vld [vmem:[%s4 + $0x18] sm:$0xf]
        %v2884 = vld [vmem:[%s4 + $0x1c] sm:$0xf]
        %v2885 = vld [vmem:[%s4 + $0x20] sm:$0xf]
        %v2886 = vld [vmem:[%s4 + $0x24] sm:$0xf]
        %v2887 = vld [vmem:[%s4 + $0x28] sm:$0xf]
        %v2888 = vld [vmem:[%s4 + $0x2c] sm:$0xf]
        %v2889 = vld [vmem:[%s4 + $0x30] sm:$0xf]
        %v2890 = vld [vmem:[%s4 + $0x34] sm:$0xf]
        %v2891 = vld [vmem:[%s4 + $0x38] sm:$0xf]
        %v2892 = vld [vmem:[%s4 + $0x3c] sm:$0xf]
        %v2893 = vld [vmem:[%s4 + $0x40] sm:$0xf]
        %v2894 = vld [vmem:[%s4 + $0x44] sm:$0xf]
        %v2895 = vld [vmem:[%s4 + $0x48] sm:$0xf]
        %v2896 = vld [vmem:[%s4 + $0x4c] sm:$0xf]
        %v2897 = vld [vmem:[%s4 + $0x50] sm:$0xf]
        %v2898 = vld [vmem:[%s4 + $0x54] sm:$0xf]
        %v2899 = vld [vmem:[%s4 + $0x58] sm:$0xf]
        %v2900 = vld [vmem:[%s4 + $0x5c] sm:$0xf]
        %v2901 = vld [vmem:[%s4 + $0x60] sm:$0xf]
        %v2902 = vld [vmem:[%s4 + $0x64] sm:$0xf]
        %v2903 = vld [vmem:[%s4 + $0x68] sm:$0xf]
        %v2904 = vld [vmem:[%s4 + $0x6c] sm:$0xf]
        %v2905 = vld [vmem:[%s4 + $0x70] sm:$0xf]
        %v2906 = vld [vmem:[%s4 + $0x74] sm:$0xf]
        %v2907 = vld [vmem:[%s4 + $0x78] sm:$0xf]
        %v2908 = vld [vmem:[%s4 + $0x7c] sm:$0xf]
        %v2909 = vld [vmem:[%s5] sm:$0x1]
        %v2911 = vlaneseq
        %v2912 = vshrl.u32 %v2911, 7
        %v2913 = vsub.s32 0, %v2912
        %v2914 = vrot.slane %v2909, %v2913
        %v2917 = vunpack.c.l.b16 %v2876
        %v2918 = vunpack.c.h.b16 %v2876
        %v2919 = vpack.c.b16 %v2917, %v2917
        %v2920 = vpack.c.b16 %v2918, %v2918
        %v2955 = vunpack.c.l.b16 %v2877
        %v2956 = vunpack.c.l.b16 %v2878
        %v2957 = vunpack.c.l.b16 %v2879
        %v2958 = vunpack.c.l.b16 %v2880
        %v2959 = vunpack.c.l.b16 %v2881
        %v2960 = vunpack.c.l.b16 %v2882
        %v2961 = vunpack.c.l.b16 %v2883
        %v2962 = vunpack.c.l.b16 %v2884
        %v2963 = vunpack.c.l.b16 %v2885
        %v2964 = vunpack.c.l.b16 %v2886
        %v2965 = vunpack.c.l.b16 %v2887
        %v2966 = vunpack.c.l.b16 %v2888
        %v2967 = vunpack.c.l.b16 %v2889
        %v2968 = vunpack.c.l.b16 %v2890
        %v2969 = vunpack.c.l.b16 %v2891
        %v2970 = vunpack.c.l.b16 %v2892
        %v2971 = vunpack.c.l.b16 %v2893
        %v2972 = vunpack.c.l.b16 %v2894
        %v2973 = vunpack.c.l.b16 %v2895
        %v2974 = vunpack.c.l.b16 %v2896
        %v2975 = vunpack.c.l.b16 %v2897
        %v2976 = vunpack.c.l.b16 %v2898
        %v2977 = vunpack.c.l.b16 %v2899
        %v2978 = vunpack.c.l.b16 %v2900
        %v2979 = vunpack.c.l.b16 %v2901
        %v2980 = vunpack.c.l.b16 %v2902
        %v2981 = vunpack.c.l.b16 %v2903
        %v2982 = vunpack.c.l.b16 %v2904
        %v2983 = vunpack.c.l.b16 %v2905
        %v2984 = vunpack.c.l.b16 %v2906
        %v2985 = vunpack.c.l.b16 %v2907
        %v2986 = vunpack.c.l.b16 %v2908
        %v2987 = vpack.c.b16 %v2956, %v2955
        %v2988 = vpack.c.b16 %v2958, %v2957
        %v2989 = vpack.c.b16 %v2960, %v2959
        %v2990 = vpack.c.b16 %v2962, %v2961
        %v2991 = vpack.c.b16 %v2964, %v2963
        %v2992 = vpack.c.b16 %v2966, %v2965
        %v2993 = vpack.c.b16 %v2968, %v2967
        %v2994 = vpack.c.b16 %v2970, %v2969
        %v2995 = vpack.c.b16 %v2972, %v2971
        %v2996 = vpack.c.b16 %v2974, %v2973
        %v2997 = vpack.c.b16 %v2976, %v2975
        %v2998 = vpack.c.b16 %v2978, %v2977
        %v2999 = vpack.c.b16 %v2980, %v2979
        %v3000 = vpack.c.b16 %v2982, %v2981
        %v3001 = vpack.c.b16 %v2984, %v2983
        %v3002 = vpack.c.b16 %v2986, %v2985
        %3019 = vmatprep.subr.bf16.mxu0 0
        %3020 = vmatpush1.bf16.msra.mxu0 %v2987
        %3021 = vmatprep.subr.bf16.mxu0 0
        %3022 = vmatpush1.bf16.msra.mxu0 %v2988
        %3023 = vmatprep.subr.bf16.mxu0 0
        %3024 = vmatpush1.bf16.msra.mxu0 %v2989
        %3025 = vmatprep.subr.bf16.mxu0 0
        %3026 = vmatpush1.bf16.msra.mxu0 %v2990
        %3027 = vmatprep.subr.bf16.mxu0 0
        %3028 = vmatpush1.bf16.msra.mxu0 %v2991
        %3029 = vmatprep.subr.bf16.mxu0 0
        %3030 = vmatpush1.bf16.msra.mxu0 %v2992
        %3031 = vmatprep.subr.bf16.mxu0 0
        %3032 = vmatpush1.bf16.msra.mxu0 %v2993
        %3033 = vmatprep.subr.bf16.mxu0 0
        %3034 = vmatpush1.bf16.msra.mxu0 %v2994
        %3035 = vmatprep.subr.bf16.mxu0 0
        %3036 = vmatpush1.bf16.msra.mxu0 %v2995
        %3037 = vmatprep.subr.bf16.mxu0 0
        %3038 = vmatpush1.bf16.msra.mxu0 %v2996
        %3039 = vmatprep.subr.bf16.mxu0 0
        %3040 = vmatpush1.bf16.msra.mxu0 %v2997
        %3041 = vmatprep.subr.bf16.mxu0 0
        %3042 = vmatpush1.bf16.msra.mxu0 %v2998
        %3043 = vmatprep.subr.bf16.mxu0 0
        %3044 = vmatpush1.bf16.msra.mxu0 %v2999
        %3045 = vmatprep.subr.bf16.mxu0 0
        %3046 = vmatpush1.bf16.msra.mxu0 %v3000
        %3047 = vmatprep.subr.bf16.mxu0 0
        %3048 = vmatpush1.bf16.msra.mxu0 %v3001
        %3049 = vmatprep.subr.bf16.mxu0 0
        %3050 = vmatpush1.bf16.msra.mxu0 %v3002
        %3051 = vmatprep.mubr.bf16.mxu0 %v2920
        %3052 = vmatmul.mubr.bf16.gmra.mrb[0].mxu0 %v2919
        %v3053 = vpop.f32.mrb[0].mxu0
        %v3054 = vadd.f32 %v2914, %v3053
        %v3055 = vpop.f32.mrb[0].mxu0
        %v3056 = vpop.f32.mrb[0].mxu0
        %v3057 = vpop.f32.mrb[0].mxu0
        %3058 = vdwg.mxu0
        %v3059 = vmax.f32 %v3054, 0.0
        %v3060 = vpack.c.bf16 %v3059, %v3059
        %v3061 = vld [vmem:[%s6] sm:$0xf]
        %v3062 = vld [vmem:[%s6 + $0x4] sm:$0xf]
        %v3063 = vld [vmem:[%s6 + $0x8] sm:$0xf]
        %v3064 = vld [vmem:[%s6 + $0xc] sm:$0xf]
        %v3065 = vld [vmem:[%s6 + $0x10] sm:$0xf]
        %v3066 = vld [vmem:[%s6 + $0x14] sm:$0xf]
        %v3067 = vld [vmem:[%s6 + $0x18] sm:$0xf]
        %v3068 = vld [vmem:[%s6 + $0x1c] sm:$0xf]
        %v3069 = vld [vmem:[%s6 + $0x20] sm:$0xf]
        %v3070 = vld [vmem:[%s6 + $0x24] sm:$0xf]
        %v3071 = vld [vmem:[%s6 + $0x28] sm:$0xf]
        %v3072 = vld [vmem:[%s6 + $0x2c] sm:$0xf]
        %v3073 = vld [vmem:[%s6 + $0x30] sm:$0xf]
        %v3074 = vld [vmem:[%s6 + $0x34] sm:$0xf]
        %v3075 = vld [vmem:[%s6 + $0x38] sm:$0xf]
        %v3076 = vld [vmem:[%s6 + $0x3c] sm:$0xf]
        %v3077 = vld [vmem:[%s7] sm:$0x1]
        %v3079 = vlaneseq
        %v3080 = vshrl.u32 %v3079, 7
        %v3081 = vsub.s32 0, %v3080
        %v3082 = vrot.slane %v3077, %v3081
        %v3100 = vunpack.c.l.b16 %v3061
        %v3101 = vunpack.c.l.b16 %v3062
        %v3102 = vunpack.c.l.b16 %v3063
        %v3103 = vunpack.c.l.b16 %v3064
        %v3104 = vunpack.c.l.b16 %v3065
        %v3105 = vunpack.c.l.b16 %v3066
        %v3106 = vunpack.c.l.b16 %v3067
        %v3107 = vunpack.c.l.b16 %v3068
        %v3108 = vunpack.c.l.b16 %v3069
        %v3109 = vunpack.c.l.b16 %v3070
        %v3110 = vunpack.c.l.b16 %v3071
        %v3111 = vunpack.c.l.b16 %v3072
        %v3112 = vunpack.c.l.b16 %v3073
        %v3113 = vunpack.c.l.b16 %v3074
        %v3114 = vunpack.c.l.b16 %v3075
        %v3115 = vunpack.c.l.b16 %v3076
        %v3116 = vpack.c.b16 %v3101, %v3100
        %v3117 = vpack.c.b16 %v3103, %v3102
        %v3118 = vpack.c.b16 %v3105, %v3104
        %v3119 = vpack.c.b16 %v3107, %v3106
        %v3120 = vpack.c.b16 %v3109, %v3108
        %v3121 = vpack.c.b16 %v3111, %v3110
        %v3122 = vpack.c.b16 %v3113, %v3112
        %v3123 = vpack.c.b16 %v3115, %v3114
        %3132 = vmatprep.subr.bf16.mxu0 0
        %3133 = vmatpush1.bf16.msra.mxu0 %v3116
        %3134 = vmatprep.subr.bf16.mxu0 0
        %3135 = vmatpush1.bf16.msra.mxu0 %v3117
        %3136 = vmatprep.subr.bf16.mxu0 0
        %3137 = vmatpush1.bf16.msra.mxu0 %v3118
        %3138 = vmatprep.subr.bf16.mxu0 0
        %3139 = vmatpush1.bf16.msra.mxu0 %v3119
        %3140 = vmatprep.subr.bf16.mxu0 0
        %3141 = vmatpush1.bf16.msra.mxu0 %v3120
        %3142 = vmatprep.subr.bf16.mxu0 0
        %3143 = vmatpush1.bf16.msra.mxu0 %v3121
        %3144 = vmatprep.subr.bf16.mxu0 0
        %3145 = vmatpush1.bf16.msra.mxu0 %v3122
        %3146 = vmatprep.subr.bf16.mxu0 0
        %3147 = vmatpush1.bf16.msra.mxu0 %v3123
        %3148 = vmatprep.subr.bf16.mxu0 0
        %3149 = vmatpush1.bf16.msra.mxu0 0
        %3150 = vmatprep.subr.bf16.mxu0 0
        %3151 = vmatpush1.bf16.msra.mxu0 0
        %3152 = vmatprep.subr.bf16.mxu0 0
        %3153 = vmatpush1.bf16.msra.mxu0 0
        %3154 = vmatprep.subr.bf16.mxu0 0
        %3155 = vmatpush1.bf16.msra.mxu0 0
        %3156 = vmatprep.subr.bf16.mxu0 0
        %3157 = vmatpush1.bf16.msra.mxu0 0
        %3158 = vmatprep.subr.bf16.mxu0 0
        %3159 = vmatpush1.bf16.msra.mxu0 0
        %3160 = vmatprep.subr.bf16.mxu0 0
        %3161 = vmatpush1.bf16.msra.mxu0 0
        %3162 = vmatprep.subr.bf16.mxu0 0
        %3163 = vmatpush1.bf16.msra.mxu0 0
        %3164 = vmatprep.mubr.bf16.mxu0 0
        %3165 = vmatmul.mubr.bf16.gmra.mrb[0].mxu0 %v3060
        %v3166 = vpop.f32.mrb[0].mxu0
        %v3167 = vadd.f32 %v3082, %v3166
        %v3168 = vpop.f32.mrb[0].mxu0
        %v3169 = vpop.f32.mrb[0].mxu0
        %v3170 = vpop.f32.mrb[0].mxu0
        %3171 = vdwg.mxu0
        %3172 = vmax.xlane.f32.xlu0 %v3167
        %v3173 = vpop.xlane.xlu0 %3172
        %vm3174 = vcmp.eq.f32.partialorder %v3167, %v3173
        %v3175 = vsel %vm3174, %v2343, 128
        %v3176 = vand.u32 %v3175, 65535
        %v3177 = vshra.s32 %v3175, 16
        %v3178 = vcvt.s32.f32 %v3176
        %v3179 = vcvt.s32.f32 %v3177
        %3180 = vmin.xlane.f32.xlu0 %v3179
        %v3181 = vpop.xlane.xlu0 %3180
        %vm3182 = vcmp.eq.f32.partialorder %v3179, %v3181
        %v3183 = vsel %vm3182, %v3178, inf
        %3184 = vmin.xlane.f32.xlu0 %v3183
        %v3185 = vpop.xlane.xlu0 %3184
        %v3186 = vcvt.f32.s32 %v3185
        %v3187 = vcvt.f32.s32 %v3181
        %v3188 = vshll.u32 %v3187, 16
        %v3189 = vadd.s32 %v3188, %v3186
        %v3190 = vld [vmem:[#allocation3] sm:$0xff]
        %vm3191 = vcmp.eq.s32.totalorder %v3189, 7
        %v3192 = vsel %vm3191, 1, 0
        %vm3193 = vcmp.gt.s32.totalorder %v3190, %v3192
        %v3194 = vsel %vm3193, %v3190, %v3192
        %3195 = vst.msk [vmem:[#allocation3] sm:$0xff] %vm468, %v3194
        %v3196 = vsel %vm468, %v3194, 2147483647
        %v3197 = vrot.slane %v3196, 4
        %vm3198 = vcmp.lt.s32.totalorder %v3196, %v3197
        %v3199 = vsel %vm3198, %v3196, %v3197
        %v3200 = vrot.slane %v3199, 2
        %vm3201 = vcmp.lt.s32.totalorder %v3199, %v3200
        %v3202 = vsel %vm3201, %v3199, %v3200
        %v3203 = vrot.slane %v3202, 1
        %vm3204 = vcmp.lt.s32.totalorder %v3202, %v3203
        %v3205 = vsel %vm3204, %v3202, %v3203
        %3206 = vst.msk [vmem:[#allocation4] sm:$0x1] %vm480, %v3205
        %vm3207 = vcmp.eq.s32.totalorder %v3205, 0
        %v3208 = vld [vmem:[%s444] sm:$0xff]
        %v3209 = vsel %vm468, %v3208, 0
        %v3210 = vrot.slane %v3209, 4
        %v3211 = vadd.s32 %v3209, %v3210
        %v3212 = vrot.slane %v3211, 2
        %v3213 = vadd.s32 %v3211, %v3212
        %v3214 = vrot.slane %v3213, 1
        %v3215 = vadd.s32 %v3213, %v3214
        %vm3216 = vcmp.gt.s32.totalorder %v3215, 0
        %vm3217 = vmxor %vm3207, 1
        %vm3218 = vcmp.gt.s32.totalorder %v3194, 0
        %v3219 = vsel %vm3216, 1, 0
        %vm3220 = vcmp.eq.s32.totalorder %v3219, 1
        %vm3221 = vmand %vm3218, %vm3220
        %v3222 = vsel %vm3217, 1, 0
        %vm3223 = vcmp.eq.s32.totalorder %v3222, 1
        %vm3224 = vmor %vm3223, %vm3221
        %v3225 = vsel %vm3224, 1, 0
        %3226 = vset.pattern.permute.xlu0 0
        %3227 = vperm.xlu0 %3226, %v3225
        %v3228 = vpop.permute.xlu0 %3227
        %vm3229 = vcmp.eq.s32.totalorder %v3228, 1
        %v3230 = vsel %vm3229, %v2340, %v2873
        %3231 = vst [vmem:[%s448] sm:$0xff] %v3230
        %v3232 = vsel %vm3229, %v2341, %v2871
        %3233 = vst [vmem:[%s452] sm:$0xff] %v3232
        %v3234 = vsel %vm3224, %v2339, %v3189
        %3235 = vst.msk [vmem:[#allocation2] sm:$0xff] %vm468, %v3234
        %vm3236 = vcmp.eq.s32.totalorder %v3194, 0
        %v3237 = vsel %vm3207, 1, 0
        %vm3238 = vcmp.eq.s32.totalorder %v3237, 1
        %vm3239 = vmand %vm3238, %vm3236
        %3240 = vset.pattern.permute.xlu0 0
        %3241 = vperm.xlu0 %3240, %v3208
        %v3242 = vpop.permute.xlu0 %3241
        %vm3243 = vcmp.eq.s32.totalorder %v2343, %v3242
        %v3244 = vsel %vm3239, 1, 0
        %3245 = vset.pattern.permute.xlu0 0
        %3246 = vperm.xlu0 %3245, %v3244
        %v3247 = vpop.permute.xlu0 %3246
        %vm3248 = vcmp.eq.s32.totalorder %v3247, 1
        %vm3249 = vmand %vm3248, %vm3243
        %v3250 = vld [vmem:[%s440] sm:$0xff]
        %v3251 = vsel %vm3249, %v3189, %v3250
        %3252 = vst [vmem:[%s440] sm:$0xff] %v3251
        %v3253 = vadd.s32 %v3208, %v3244
        %3254 = vst.msk [vmem:[%s444] sm:$0xff] %vm468, %v3253
      $region68: #{greedy_inference.1} parent=51 // pred_fallthru
        _
      %p3255 = scmp.lt.s32.totalorder %s27, 0
      %s3256 = scalar_select %p3255, %s27, 0
      %s3257 = smul.addr %s3256, 8
      %s3258 = scalar_lea.vmem %s8, %s3257
      %p3259 = scmp.lt.s32.totalorder %s27, 0
      %s3260 = scalar_select %p3259, %s27, 0
      %s3261 = smul.addr %s3260, 8
      %s3262 = scalar_lea.vmem %s9, %s3261
      %p3263 = scmp.lt.s32.totalorder %s27, 0
      %s3264 = scalar_select %p3263, %s27, 0
      %s3265 = smul.addr %s3264, 8
      %s3266 = scalar_lea.vmem %s10, %s3265
      %p3267 = scmp.lt.s32.totalorder %s27, 0
      %s3268 = scalar_select %p3267, %s27, 0
      %s3269 = smul.addr %s3268, 8
      %s3270 = scalar_lea.vmem %s11, %s3269
      // Predicated region
      $region69: #{greedy_inference.1} parent=51 // pred_check
        %p3271 = pneg %p233
      $region70: #{greedy_inference.1} parent=51 // pred_check_branch
        %3273 = sbr.rel (%p3271) target = $region72
      $region71: #{greedy_inference.1} parent=51 // pred_region
        _
      $region72: #{greedy_inference.1} parent=51 // pred_fallthru
        _
      // Predicated region
      $region73: #{greedy_inference.1} parent=51 // pred_check
        %p3274 = pneg %p259
      $region74: #{greedy_inference.1} parent=51 // pred_check_branch
        %3276 = sbr.rel (%p3274) target = $region76
      $region75: #{greedy_inference.1} parent=51 // pred_region
        _
      $region76: #{greedy_inference.1} parent=51 // pred_fallthru
        _
      // Predicated region
      $region77: #{greedy_inference.1} parent=51 // pred_check
        %p3277 = pneg %p285
      $region78: #{greedy_inference.1} parent=51 // pred_check_branch
        %3279 = sbr.rel (%p3277) target = $region80
      $region79: #{greedy_inference.1} parent=51 // pred_region
        _
      $region80: #{greedy_inference.1} parent=51 // pred_fallthru
        _
      // Predicated region
      $region81: #{greedy_inference.1} parent=51 // pred_check
        %p3280 = pneg %p311
      $region82: #{greedy_inference.1} parent=51 // pred_check_branch
        %3282 = sbr.rel (%p3280) target = $region84
      $region83: #{greedy_inference.1} parent=51 // pred_region
        _
      $region84: #{greedy_inference.1} parent=51 // pred_fallthru
        _
      // Predicated region
      $region85: #{greedy_inference.1} parent=51 // pred_check
        %p3283 = pneg %p233
      $region86: #{greedy_inference.1} parent=51 // pred_check_branch
        %3285 = sbr.rel (%p3283) target = $region88
      $region87: #{greedy_inference.1} parent=51 // pred_region
        %p3286 = scmp.lt.s32.totalorder %s27, 0
        %s3287 = scalar_select %p3286, %s27, 0
        %s3288 = smul.addr %s3287, 8
        %s3289 = scalar_lea.vmem %s8, %s3288
      $region88: #{greedy_inference.1} parent=51 // pred_fallthru
        _
      // Predicated region
      $region89: #{greedy_inference.1} parent=51 // pred_check
        %p3290 = pneg %p259
      $region90: #{greedy_inference.1} parent=51 // pred_check_branch
        %3292 = sbr.rel (%p3290) target = $region92
      $region91: #{greedy_inference.1} parent=51 // pred_region
        %p3293 = scmp.lt.s32.totalorder %s27, 0
        %s3294 = scalar_select %p3293, %s27, 0
        %s3295 = smul.addr %s3294, 8
        %s3296 = scalar_lea.vmem %s9, %s3295
      $region92: #{greedy_inference.1} parent=51 // pred_fallthru
        _
      // Predicated region
      $region93: #{greedy_inference.1} parent=51 // pred_check
        %p3297 = pneg %p285
      $region94: #{greedy_inference.1} parent=51 // pred_check_branch
        %3299 = sbr.rel (%p3297) target = $region96
      $region95: #{greedy_inference.1} parent=51 // pred_region
        %p3300 = scmp.lt.s32.totalorder %s27, 0
        %s3301 = scalar_select %p3300, %s27, 0
        %s3302 = smul.addr %s3301, 8
        %s3303 = scalar_lea.vmem %s10, %s3302
      $region96: #{greedy_inference.1} parent=51 // pred_fallthru
        _
      // Predicated region
      $region97: #{greedy_inference.1} parent=51 // pred_check
        %p3304 = pneg %p311
      $region98: #{greedy_inference.1} parent=51 // pred_check_branch
        %3306 = sbr.rel (%p3304) target = $region100
      $region99: #{greedy_inference.1} parent=51 // pred_region
        %p3307 = scmp.lt.s32.totalorder %s27, 0
        %s3308 = scalar_select %p3307, %s27, 0
        %s3309 = smul.addr %s3308, 8
        %s3310 = scalar_lea.vmem %s11, %s3309
      $region100: #{greedy_inference.1} parent=51 // pred_fallthru
        _
    $region52: #{greedy_inference.1} parent=5 // pred_fallthru
      _
    %p3311 = scmp.le.s32.totalorder 2, %s18
    // Predicated region
    $region101: #{greedy_inference.1} parent=5 // pred_check
      %p3312 = pneg %p3311
    $region102: #{greedy_inference.1} parent=5 // pred_check_branch
      %3314 = sbr.rel (%p3312) target = $region104
    $region103: #{greedy_inference.1} parent=5 // pred_region
      %s3315 = ssub.s32 %s18, 2
    $region104: #{greedy_inference.1} parent=5 // pred_fallthru
      _
  $region6: #{greedy_inference.1} parent=0 // loop_footer
    %s22 = sadd.s32 1, %s18
  $region7: #{greedy_inference.1} parent=0 // loop_footer_branch
    %17 = sbr.rel target = $region3
  $region8: #{greedy_inference.1} parent=0 // loop_exit
    _

</llo_original>
